<compile_context>
chip_gen: v6e
topology: v6e:2x2x1
jax: 0.10.0
libtpu: 0.0.40
codegen_flags: <defaults>
</compile_context>

<pallas_src>
import functools

import jax
import jax.numpy as jnp
from jax import lax
from jax.experimental import pallas as pl
from jax.experimental.pallas import tpu as pltpu

NEG_INF = -1e9


# ------------------------- fused decoder-block kernel -----------------------

def _decoder_block_kernel(
    # per-block data tiles
    tgt_ref, enc_ref, dmask_ref, mmask_ref,
    # self-attention params (head-padded)
    wqkv1_ref, bqkv1_ref, wo1_ref, bo1_ref, ln1g_ref, ln1b_ref,
    # cross-attention params (head-padded)
    wq2_ref, bq2_ref, wkv2_ref, bkv2_ref, wo2_ref, bo2_ref, ln2g_ref, ln2b_ref,
    # FFN params
    w1_ref, b1_ref, w2_ref, b2_ref, ln3g_ref, ln3b_ref,
    # outputs
    out_ref, attn_ref,
    *, num_heads, head_pitch, eps):
    hp = head_pitch
    dhp = num_heads * hp
    d = tgt_ref.shape[-1]
    dh = d // num_heads
    scale = float(dh) ** -0.5

    # Grid-invariant weights: load once per block, stay VMEM/vreg resident.
    wqkv1, bqkv1 = wqkv1_ref[...], bqkv1_ref[...]
    wo1, bo1 = wo1_ref[...], bo1_ref[...]
    ln1g, ln1b = ln1g_ref[...], ln1b_ref[...]
    wq2, bq2 = wq2_ref[...], bq2_ref[...]
    wkv2, bkv2 = wkv2_ref[...], bkv2_ref[...]
    wo2, bo2 = wo2_ref[...], bo2_ref[...]
    ln2g, ln2b = ln2g_ref[...], ln2b_ref[...]
    w1, b1 = w1_ref[...], b1_ref[...]
    w2, b2 = w2_ref[...], b2_ref[...]
    ln3g, ln3b = ln3g_ref[...], ln3b_ref[...]

    def layer_norm(h, g, beta):
        mean = jnp.mean(h, axis=-1, keepdims=True)
        var = jnp.mean(jnp.square(h - mean), axis=-1, keepdims=True)
        return (h - mean) * lax.rsqrt(var + eps) * g + beta

    def attend(q, k, v, neg_mask, wo, bo, exact_softmax):
        """q/k/v: (S, H*hp), each head in its own full 128-lane group.
        neg_mask: (Sq, Sk) additive mask, already multiplied by -1e9 (hoisted).
        Per-head contexts are lane-concatenated and projected with ONE matmul
        (K = H*hp) against the row-padded wo — no per-head output dots."""
        ctx_parts, prob_parts = [], []
        for h in range(num_heads):
            sl = slice(h * hp, (h + 1) * hp)       # full-lane-group view: free
            s = lax.dot_general(q[:, sl], k[:, sl], (((1,), (1,)), ((), ())),
                                preferred_element_type=jnp.float32)
            s = s + neg_mask
            s = s - jnp.max(s, axis=-1, keepdims=True)
            e = jnp.exp(s)
            denom = jnp.sum(e, axis=-1, keepdims=True)
            # NOTE: a fully-masked row yields a uniform distribution here; the
            # reference softmax would produce NaN in that degenerate case.
            if exact_softmax:                       # returned weights: exact
                p = e / denom
            else:                                   # self-attn only: EUP recip
                p = e * pl.reciprocal(denom, approx=True)
            prob_parts.append(p)
            ctx_parts.append(jnp.dot(p, v[:, sl],
                                     preferred_element_type=jnp.float32))
        ctx = jnp.concatenate(ctx_parts, axis=-1)           # (Sq, H*hp)
        out = jnp.dot(ctx, wo, preferred_element_type=jnp.float32) + bo
        return out, prob_parts

    # Loops once when batch is on the grid; over the whole batch when the grid
    # is collapsed (single-TensorCore chips).
    for bi in range(tgt_ref.shape[0]):
        x = tgt_ref[bi]            # (St, D)
        enc = enc_ref[bi]          # (Se, D)
        # hoisted out of the unrolled head loops:
        neg_dmask = dmask_ref[bi].astype(jnp.float32) * NEG_INF
        neg_mmask = mmask_ref[bi].astype(jnp.float32) * NEG_INF

        # ---- self-attention (fused, head-padded QKV projection) ----
        qkv = jnp.dot(x, wqkv1, preferred_element_type=jnp.float32) + bqkv1
        q1 = qkv[:, :dhp] * scale              # softmax scale folded into q
        k1 = qkv[:, dhp:2 * dhp]
        v1 = qkv[:, 2 * dhp:]
        y1, _ = attend(q1, k1, v1, neg_dmask, wo1, bo1, exact_softmax=False)
        # dropout1: identity (eval semantics)
        y1 = layer_norm(y1 + x, ln1g, ln1b)

        # ---- cross-attention (fused, head-padded KV projection) ----
        q2 = (jnp.dot(y1, wq2, preferred_element_type=jnp.float32) + bq2) * scale
        kv2 = jnp.dot(enc, wkv2, preferred_element_type=jnp.float32) + bkv2
        k2 = kv2[:, :dhp]
        v2 = kv2[:, dhp:]
        y2, probs2 = attend(q2, k2, v2, neg_mmask, wo2, bo2, exact_softmax=True)
        # ONE lane-concatenated store of all heads' weights: (St, H*Se)
        attn_ref[bi] = jnp.concatenate(probs2, axis=-1)
        # dropout2: identity
        y2 = layer_norm(y2 + y1, ln2g, ln2b)

        # ---- feed-forward ----
        hdn = jnp.maximum(
            jnp.dot(y2, w1, preferred_element_type=jnp.float32) + b1, 0.0)
        f = jnp.dot(hdn, w2, preferred_element_type=jnp.float32) + b2
        # dropout3: identity
        out_ref[bi] = layer_norm(f + y2, ln3g, ln3b)


# ------------------------------- wrapper -------------------------------------

def decoder_block(params, encoder_output, target, training, decoder_mask,
                  memory_mask, num_heads, eps=1e-5):
    del training  # dropout is identity (eval semantics)
    b, st, d = target.shape
    se = encoder_output.shape[1]
    hid = params["w1"].shape[1]
    num_heads = int(num_heads)
    dh = d // num_heads
    hp = ((dh + 127) // 128) * 128        # head pitch: full 128-lane groups

    p1, p2 = params["mhsa1"], params["mhsa2"]

    def pad_cols(w, bias):
        # (Din, H*dh) -> (Din, H*hp); each head's dh columns at the start of a
        # full hp-lane group (zeros elsewhere).  bias -> (1, H*hp).
        if hp == dh:
            return w, bias.reshape(1, num_heads * dh)
        din = w.shape[0]
        w3 = w.reshape(din, num_heads, dh)
        wpad = jnp.pad(w3, ((0, 0), (0, 0), (0, hp - dh))).reshape(din, num_heads * hp)
        bpad = jnp.pad(bias.reshape(num_heads, dh),
                       ((0, 0), (0, hp - dh))).reshape(1, num_heads * hp)
        return wpad, bpad

    def pad_rows(wo):
        # (H*dh, Dout) -> (H*hp, Dout) with zero rows in the per-head padding.
        if hp == dh:
            return wo
        dout = wo.shape[1]
        w3 = wo.reshape(num_heads, dh, dout)
        return jnp.pad(w3, ((0, 0), (0, hp - dh), (0, 0))).reshape(num_heads * hp, dout)

    # fused + head-padded projection weights (tiny XLA-side pads/concats)
    wq1p, bq1p = pad_cols(p1["wq"], p1["bq"])
    wk1p, bk1p = pad_cols(p1["wk"], p1["bk"])
    wv1p, bv1p = pad_cols(p1["wv"], p1["bv"])
    wqkv1 = jnp.concatenate([wq1p, wk1p, wv1p], axis=1)      # (D, 3*H*hp)
    bqkv1 = jnp.concatenate([bq1p, bk1p, bv1p], axis=1)      # (1, 3*H*hp)
    wo1 = pad_rows(p1["wo"])                                  # (H*hp, D)

    wq2, bq2 = pad_cols(p2["wq"], p2["bq"])                   # (D, H*hp)
    wk2p, bk2p = pad_cols(p2["wk"], p2["bk"])
    wv2p, bv2p = pad_cols(p2["wv"], p2["bv"])
    wkv2 = jnp.concatenate([wk2p, wv2p], axis=1)              # (D, 2*H*hp)
    bkv2 = jnp.concatenate([bk2p, bv2p], axis=1)
    wo2 = pad_rows(p2["wo"])

    # compact (bf16) masks: 0/1 exactly representable, half the HBM traffic
    dmask = decoder_mask.reshape(b, st, st).astype(jnp.bfloat16)
    mmask = memory_mask.reshape(b, st, se).astype(jnp.bfloat16)

    weights = [
        wqkv1, bqkv1, wo1, p1["bo"].reshape(1, d),
        params["ln1_g"].reshape(1, d), params["ln1_b"].reshape(1, d),
        wq2, bq2, wkv2, bkv2, wo2, p2["bo"].reshape(1, d),
        params["ln2_g"].reshape(1, d), params["ln2_b"].reshape(1, d),
        params["w1"], params["b1"].reshape(1, hid),
        params["w2"], params["b2"].reshape(1, d),
        params["ln3_g"].reshape(1, d), params["ln3_b"].reshape(1, d),
    ]

    # On single-TC chips (v5e/v6e) the grid is a serial loop; collapse the
    # batch into one block so per-step pipeline overhead is not paid.  Keep a
    # batch-parallel grid on multi-TC chips (v7x) for the 2-TC split.
    try:
        kind = jax.devices()[0].device_kind.lower()
    except Exception:
        kind = ""
    single_tc = any(t in kind for t in ("v5 lite", "v5e", "v5lite", "v6"))
    batch_grid = (b > 1) and not single_tc
    n_blocks = b if batch_grid else 1
    bb = 1 if batch_grid else b

    def dspec(shape):
        nd = len(shape)
        return pl.BlockSpec((bb,) + tuple(shape[1:]),
                            lambda i, _n=nd: (i,) + (0,) * (_n - 1))

    def wspec(shape):
        # grid-invariant parameter: full array, resident across grid steps
        nd = len(shape)
        return pl.BlockSpec(tuple(shape), lambda i, _n=nd: (0,) * _n)
    # NOTE: at large D, also single-buffer these invariant weights
    # (pipeline_mode=pl.Buffered(1)) to halve their VMEM footprint.

    in_specs = [dspec((b, st, d)), dspec((b, se, d)),
                dspec((b, st, st)), dspec((b, st, se))]
    in_specs += [wspec(w.shape) for w in weights]

    out_specs = [
        pl.BlockSpec((bb, st, d), lambda i: (i, 0, 0)),
        pl.BlockSpec((bb, st, num_heads * se), lambda i: (i, 0, 0)),
    ]
    out_shape = [
        jax.ShapeDtypeStruct((b, st, d), jnp.float32),
        jax.ShapeDtypeStruct((b, st, num_heads * se), jnp.float32),
    ]

    # VMEM budget sized to the actual working set (double-buffered) + headroom.
    weight_bytes = sum(int(w.size) * w.dtype.itemsize for w in weights)
    data_bytes = (bb * st * d + bb * se * d) * 4 + (bb * st * st + bb * st * se) * 2
    out_bytes = (bb * st * d + bb * st * num_heads * se) * 4
    vmem_limit = int(min(max(6 * (weight_bytes + data_bytes + out_bytes),
                             8 * 2**20), 32 * 2**20))

    # Advisory cost so XLA schedules the wrapper-side pads/concats around us.
    flops = b * (
        2 * st * d * (3 * num_heads * hp) + 4 * num_heads * st * st * hp
        + 2 * st * (num_heads * hp) * d
        + 2 * st * d * (num_heads * hp) + 2 * se * d * (2 * num_heads * hp)
        + 4 * num_heads * st * se * hp + 2 * st * (num_heads * hp) * d
        + 4 * st * d * hid)
    transcendentals = b * (num_heads * (st * st + st * se) + 3 * st)
    bytes_accessed = (b * (st * d + se * d) * 4 + b * (st * st + st * se) * 2
                      + weight_bytes + b * (st * d + st * num_heads * se) * 4)
    cost = pl.CostEstimate(flops=int(flops), transcendentals=int(transcendentals),
                           bytes_accessed=int(bytes_accessed))

    out, attn_flat = pl.pallas_call(
        functools.partial(_decoder_block_kernel, num_heads=num_heads,
                          head_pitch=hp, eps=eps),
        grid=(n_blocks,),
        in_specs=in_specs,
        out_specs=out_specs,
        out_shape=out_shape,
        compiler_params=pltpu.CompilerParams(
            dimension_semantics=("parallel",) if batch_grid else ("arbitrary",),
            vmem_limit_bytes=vmem_limit,
        ),
        cost_estimate=cost,
    )(target, encoder_output, dmask, mmask, *weights)

    # lane-concatenated (B, St, H*Se) -> reference layout (B, H, St, Se)
    attn = jnp.transpose(attn_flat.reshape(b, st, num_heads, se), (0, 2, 1, 3))
    return out, attn


# ------------------------------ Param init ----------------------------------

def _init_linear(key, fan_in, fan_out):
    """PyTorch nn.Linear default init: U(-1/sqrt(fan_in), 1/sqrt(fan_in))."""
    kw, kb = jax.random.split(key)
    bound = 1.0 / jnp.sqrt(fan_in)
    w = jax.random.uniform(kw, (fan_in, fan_out), jnp.float32, -bound, bound)
    b = jax.random.uniform(kb, (fan_out,), jnp.float32, -bound, bound)
    return w, b


def _init_mhsa(key, d_model):
    ks = jax.random.split(key, 4)
    wq, bq = _init_linear(ks[0], d_model, d_model)
    wk, bk = _init_linear(ks[1], d_model, d_model)
    wv, bv = _init_linear(ks[2], d_model, d_model)
    wo, bo = _init_linear(ks[3], d_model, d_model)
    return dict(wq=wq, bq=bq, wk=wk, bk=bk, wv=wv, bv=bv, wo=wo, bo=bo)


def init_decoder_block(key, d_model, hidden_dim):
    ks = jax.random.split(key, 4)
    params = {
        "mhsa1": _init_mhsa(ks[0], d_model),
        "mhsa2": _init_mhsa(ks[1], d_model),
    }
    w1, b1 = _init_linear(ks[2], d_model, hidden_dim)
    w2, b2 = _init_linear(ks[3], hidden_dim, d_model)
    params.update(
        w1=w1, b1=b1, w2=w2, b2=b2,
        ln1_g=jnp.ones((d_model,), jnp.float32), ln1_b=jnp.zeros((d_model,), jnp.float32),
        ln2_g=jnp.ones((d_model,), jnp.float32), ln2_b=jnp.zeros((d_model,), jnp.float32),
        ln3_g=jnp.ones((d_model,), jnp.float32), ln3_b=jnp.zeros((d_model,), jnp.float32),
    )
    return params


# --------------------------------- Main --------------------------------------

if __name__ == "__main__":
    B, St, Se = 2, 8, 16          # batch, target seq, source (encoder) seq
    D, H, HID = 32, 4, 64         # d_model, num_heads, hidden_dim

    key = jax.random.PRNGKey(0)
    k_par, k_tgt, k_enc = jax.random.split(key, 3)

    params = init_decoder_block(k_par, D, HID)

    target = jax.random.normal(k_tgt, (B, St, D), jnp.float32)
    encoder_output = jax.random.normal(k_enc, (B, Se, D), jnp.float32)

    # causal decoder mask: 1 above the diagonal (masked), 0 elsewhere
    causal = 1.0 - jnp.tril(jnp.ones((St, St), jnp.float32))
    decoder_mask = jnp.broadcast_to(causal, (B, 1, St, St))
    # memory mask: attend everywhere
    memory_mask = jnp.zeros((B, 1, St, Se), jnp.float32)

    fwd = jax.jit(functools.partial(decoder_block, num_heads=H),
                  static_argnums=(3,))
    output, attn_weights = fwd(params, encoder_output, target, False,
                               decoder_mask, memory_mask)
    jax.block_until_ready((output, attn_weights))

    assert output.shape == (B, St, D)
    assert attn_weights.shape == (B, H, St, Se)
    assert jnp.all(jnp.isfinite(output)) and jnp.all(jnp.isfinite(attn_weights))
    # cross-attention rows (exact-division softmax) should sum to 1
    assert jnp.allclose(jnp.sum(attn_weights, axis=-1), 1.0, atol=1e-3)
    print("KERNEL_OK")
</pallas_src>

<mosaic_0001>
module attributes {stable_mosaic.version = 11 : i64} {
  func.func @_decoder_block_kernel(%arg0: i32, %arg1: memref<1x8x32xf32, #tpu.memory_space<vmem>>, %arg2: memref<1x16x32xf32, #tpu.memory_space<vmem>>, %arg3: memref<1x8x8xbf16, #tpu.memory_space<vmem>>, %arg4: memref<1x8x16xbf16, #tpu.memory_space<vmem>>, %arg5: memref<32x1536xf32, #tpu.memory_space<vmem>>, %arg6: memref<1x1536xf32, #tpu.memory_space<vmem>>, %arg7: memref<512x32xf32, #tpu.memory_space<vmem>>, %arg8: memref<1x32xf32, #tpu.memory_space<vmem>>, %arg9: memref<1x32xf32, #tpu.memory_space<vmem>>, %arg10: memref<1x32xf32, #tpu.memory_space<vmem>>, %arg11: memref<32x512xf32, #tpu.memory_space<vmem>>, %arg12: memref<1x512xf32, #tpu.memory_space<vmem>>, %arg13: memref<32x1024xf32, #tpu.memory_space<vmem>>, %arg14: memref<1x1024xf32, #tpu.memory_space<vmem>>, %arg15: memref<512x32xf32, #tpu.memory_space<vmem>>, %arg16: memref<1x32xf32, #tpu.memory_space<vmem>>, %arg17: memref<1x32xf32, #tpu.memory_space<vmem>>, %arg18: memref<1x32xf32, #tpu.memory_space<vmem>>, %arg19: memref<32x64xf32, #tpu.memory_space<vmem>>, %arg20: memref<1x64xf32, #tpu.memory_space<vmem>>, %arg21: memref<64x32xf32, #tpu.memory_space<vmem>>, %arg22: memref<1x32xf32, #tpu.memory_space<vmem>>, %arg23: memref<1x32xf32, #tpu.memory_space<vmem>>, %arg24: memref<1x32xf32, #tpu.memory_space<vmem>>, %arg25: memref<1x8x32xf32, #tpu.memory_space<vmem>>, %arg26: memref<1x8x64xf32, #tpu.memory_space<vmem>>) attributes {dimension_semantics = [#tpu.dimension_semantics<parallel>], iteration_bounds = array<i64: 2>, scalar_prefetch = 0 : i64, scratch_operands = 0 : i64, tpu.core_type = #tpu.core_type<tc>, window_params = [{transform_indices = @transform_0, window_bounds = array<i64: 1, 8, 32>}, {transform_indices = @transform_1, window_bounds = array<i64: 1, 16, 32>}, {transform_indices = @transform_2, window_bounds = array<i64: 1, 8, 8>}, {transform_indices = @transform_3, window_bounds = array<i64: 1, 8, 16>}, {pipeline_mode = #tpu.pipeline_mode<synchronous>, transform_indices = @transform_4, window_bounds = array<i64: 32, 1536>}, {pipeline_mode = #tpu.pipeline_mode<synchronous>, transform_indices = @transform_5, window_bounds = array<i64: 1, 1536>}, {pipeline_mode = #tpu.pipeline_mode<synchronous>, transform_indices = @transform_6, window_bounds = array<i64: 512, 32>}, {pipeline_mode = #tpu.pipeline_mode<synchronous>, transform_indices = @transform_7, window_bounds = array<i64: 1, 32>}, {pipeline_mode = #tpu.pipeline_mode<synchronous>, transform_indices = @transform_8, window_bounds = array<i64: 1, 32>}, {pipeline_mode = #tpu.pipeline_mode<synchronous>, transform_indices = @transform_9, window_bounds = array<i64: 1, 32>}, {pipeline_mode = #tpu.pipeline_mode<synchronous>, transform_indices = @transform_10, window_bounds = array<i64: 32, 512>}, {pipeline_mode = #tpu.pipeline_mode<synchronous>, transform_indices = @transform_11, window_bounds = array<i64: 1, 512>}, {pipeline_mode = #tpu.pipeline_mode<synchronous>, transform_indices = @transform_12, window_bounds = array<i64: 32, 1024>}, {pipeline_mode = #tpu.pipeline_mode<synchronous>, transform_indices = @transform_13, window_bounds = array<i64: 1, 1024>}, {pipeline_mode = #tpu.pipeline_mode<synchronous>, transform_indices = @transform_14, window_bounds = array<i64: 512, 32>}, {pipeline_mode = #tpu.pipeline_mode<synchronous>, transform_indices = @transform_15, window_bounds = array<i64: 1, 32>}, {pipeline_mode = #tpu.pipeline_mode<synchronous>, transform_indices = @transform_16, window_bounds = array<i64: 1, 32>}, {pipeline_mode = #tpu.pipeline_mode<synchronous>, transform_indices = @transform_17, window_bounds = array<i64: 1, 32>}, {pipeline_mode = #tpu.pipeline_mode<synchronous>, transform_indices = @transform_18, window_bounds = array<i64: 32, 64>}, {pipeline_mode = #tpu.pipeline_mode<synchronous>, transform_indices = @transform_19, window_bounds = array<i64: 1, 64>}, {pipeline_mode = #tpu.pipeline_mode<synchronous>, transform_indices = @transform_20, window_bounds = array<i64: 64, 32>}, {pipeline_mode = #tpu.pipeline_mode<synchronous>, transform_indices = @transform_21, window_bounds = array<i64: 1, 32>}, {pipeline_mode = #tpu.pipeline_mode<synchronous>, transform_indices = @transform_22, window_bounds = array<i64: 1, 32>}, {pipeline_mode = #tpu.pipeline_mode<synchronous>, transform_indices = @transform_23, window_bounds = array<i64: 1, 32>}, {transform_indices = @transform_24, window_bounds = array<i64: 1, 8, 32>}, {transform_indices = @transform_25, window_bounds = array<i64: 1, 8, 64>}]} {
    %c0 = arith.constant 0 : index
    %c0_0 = arith.constant 0 : index
    %0 = vector.load %arg5[%c0, %c0_0] : memref<32x1536xf32, #tpu.memory_space<vmem>>, vector<32x1536xf32>
    %c0_1 = arith.constant 0 : index
    %c0_2 = arith.constant 0 : index
    %1 = vector.load %arg6[%c0_1, %c0_2] : memref<1x1536xf32, #tpu.memory_space<vmem>>, vector<1x1536xf32>
    %c0_3 = arith.constant 0 : index
    %c0_4 = arith.constant 0 : index
    %2 = vector.load %arg7[%c0_3, %c0_4] : memref<512x32xf32, #tpu.memory_space<vmem>>, vector<512x32xf32>
    %c0_5 = arith.constant 0 : index
    %c0_6 = arith.constant 0 : index
    %3 = vector.load %arg8[%c0_5, %c0_6] : memref<1x32xf32, #tpu.memory_space<vmem>>, vector<1x32xf32>
    %c0_7 = arith.constant 0 : index
    %c0_8 = arith.constant 0 : index
    %4 = vector.load %arg9[%c0_7, %c0_8] : memref<1x32xf32, #tpu.memory_space<vmem>>, vector<1x32xf32>
    %c0_9 = arith.constant 0 : index
    %c0_10 = arith.constant 0 : index
    %5 = vector.load %arg10[%c0_9, %c0_10] : memref<1x32xf32, #tpu.memory_space<vmem>>, vector<1x32xf32>
    %c0_11 = arith.constant 0 : index
    %c0_12 = arith.constant 0 : index
    %6 = vector.load %arg11[%c0_11, %c0_12] : memref<32x512xf32, #tpu.memory_space<vmem>>, vector<32x512xf32>
    %c0_13 = arith.constant 0 : index
    %c0_14 = arith.constant 0 : index
    %7 = vector.load %arg12[%c0_13, %c0_14] : memref<1x512xf32, #tpu.memory_space<vmem>>, vector<1x512xf32>
    %c0_15 = arith.constant 0 : index
    %c0_16 = arith.constant 0 : index
    %8 = vector.load %arg13[%c0_15, %c0_16] : memref<32x1024xf32, #tpu.memory_space<vmem>>, vector<32x1024xf32>
    %c0_17 = arith.constant 0 : index
    %c0_18 = arith.constant 0 : index
    %9 = vector.load %arg14[%c0_17, %c0_18] : memref<1x1024xf32, #tpu.memory_space<vmem>>, vector<1x1024xf32>
    %c0_19 = arith.constant 0 : index
    %c0_20 = arith.constant 0 : index
    %10 = vector.load %arg15[%c0_19, %c0_20] : memref<512x32xf32, #tpu.memory_space<vmem>>, vector<512x32xf32>
    %c0_21 = arith.constant 0 : index
    %c0_22 = arith.constant 0 : index
    %11 = vector.load %arg16[%c0_21, %c0_22] : memref<1x32xf32, #tpu.memory_space<vmem>>, vector<1x32xf32>
    %c0_23 = arith.constant 0 : index
    %c0_24 = arith.constant 0 : index
    %12 = vector.load %arg17[%c0_23, %c0_24] : memref<1x32xf32, #tpu.memory_space<vmem>>, vector<1x32xf32>
    %c0_25 = arith.constant 0 : index
    %c0_26 = arith.constant 0 : index
    %13 = vector.load %arg18[%c0_25, %c0_26] : memref<1x32xf32, #tpu.memory_space<vmem>>, vector<1x32xf32>
    %c0_27 = arith.constant 0 : index
    %c0_28 = arith.constant 0 : index
    %14 = vector.load %arg19[%c0_27, %c0_28] : memref<32x64xf32, #tpu.memory_space<vmem>>, vector<32x64xf32>
    %c0_29 = arith.constant 0 : index
    %c0_30 = arith.constant 0 : index
    %15 = vector.load %arg20[%c0_29, %c0_30] : memref<1x64xf32, #tpu.memory_space<vmem>>, vector<1x64xf32>
    %c0_31 = arith.constant 0 : index
    %c0_32 = arith.constant 0 : index
    %16 = vector.load %arg21[%c0_31, %c0_32] : memref<64x32xf32, #tpu.memory_space<vmem>>, vector<64x32xf32>
    %c0_33 = arith.constant 0 : index
    %c0_34 = arith.constant 0 : index
    %17 = vector.load %arg22[%c0_33, %c0_34] : memref<1x32xf32, #tpu.memory_space<vmem>>, vector<1x32xf32>
    %c0_35 = arith.constant 0 : index
    %c0_36 = arith.constant 0 : index
    %18 = vector.load %arg23[%c0_35, %c0_36] : memref<1x32xf32, #tpu.memory_space<vmem>>, vector<1x32xf32>
    %c0_37 = arith.constant 0 : index
    %c0_38 = arith.constant 0 : index
    %19 = vector.load %arg24[%c0_37, %c0_38] : memref<1x32xf32, #tpu.memory_space<vmem>>, vector<1x32xf32>
    %c0_39 = arith.constant 0 : index
    %c0_40 = arith.constant 0 : index
    %c0_41 = arith.constant 0 : index
    %20 = vector.load %arg1[%c0_39, %c0_40, %c0_41] : memref<1x8x32xf32, #tpu.memory_space<vmem>>, vector<1x8x32xf32>
    %21 = vector.shape_cast %20 : vector<1x8x32xf32> to vector<8x32xf32>
    %c0_42 = arith.constant 0 : index
    %c0_43 = arith.constant 0 : index
    %c0_44 = arith.constant 0 : index
    %22 = vector.load %arg2[%c0_42, %c0_43, %c0_44] : memref<1x16x32xf32, #tpu.memory_space<vmem>>, vector<1x16x32xf32>
    %23 = vector.shape_cast %22 : vector<1x16x32xf32> to vector<16x32xf32>
    %c0_45 = arith.constant 0 : index
    %c0_46 = arith.constant 0 : index
    %c0_47 = arith.constant 0 : index
    %24 = vector.load %arg3[%c0_45, %c0_46, %c0_47] : memref<1x8x8xbf16, #tpu.memory_space<vmem>>, vector<1x8x8xbf16>
    %25 = vector.shape_cast %24 : vector<1x8x8xbf16> to vector<8x8xbf16>
    %26 = arith.extf %25 : vector<8x8xbf16> to vector<8x8xf32>
    %cst = arith.constant -1.000000e+09 : f32
    %27 = vector.broadcast %cst : f32 to vector<8x8xf32>
    %28 = arith.mulf %26, %27 : vector<8x8xf32>
    %c0_48 = arith.constant 0 : index
    %c0_49 = arith.constant 0 : index
    %c0_50 = arith.constant 0 : index
    %29 = vector.load %arg4[%c0_48, %c0_49, %c0_50] : memref<1x8x16xbf16, #tpu.memory_space<vmem>>, vector<1x8x16xbf16>
    %30 = vector.shape_cast %29 : vector<1x8x16xbf16> to vector<8x16xbf16>
    %31 = arith.extf %30 : vector<8x16xbf16> to vector<8x16xf32>
    %cst_51 = arith.constant -1.000000e+09 : f32
    %32 = vector.broadcast %cst_51 : f32 to vector<8x16xf32>
    %33 = arith.mulf %31, %32 : vector<8x16xf32>
    %cst_52 = arith.constant dense<0.000000e+00> : vector<8x1536xf32>
    %34 = tpu.matmul %21, %0, %cst_52 {dimension_numbers = #tpu.dot_dimension_numbers<[1], [0], [0], [1], [0, 0, 1, 1], [], []>} : vector<8x32xf32>, vector<32x1536xf32>, vector<8x1536xf32> -> vector<8x1536xf32>
    %35 = vector.broadcast %1 : vector<1x1536xf32> to vector<8x1536xf32>
    %36 = arith.addf %34, %35 : vector<8x1536xf32>
    %37 = vector.extract_strided_slice %36 {offsets = [0, 0], sizes = [8, 512], strides = [1, 1]} : vector<8x1536xf32> to vector<8x512xf32>
    %cst_53 = arith.constant 0.353553385 : f32
    %38 = vector.broadcast %cst_53 : f32 to vector<8x512xf32>
    %39 = arith.mulf %37, %38 : vector<8x512xf32>
    %40 = vector.extract_strided_slice %36 {offsets = [0, 512], sizes = [8, 512], strides = [1, 1]} : vector<8x1536xf32> to vector<8x512xf32>
    %41 = vector.extract_strided_slice %36 {offsets = [0, 1024], sizes = [8, 512], strides = [1, 1]} : vector<8x1536xf32> to vector<8x512xf32>
    %42 = vector.extract_strided_slice %39 {offsets = [0, 0], sizes = [8, 128], strides = [1, 1]} : vector<8x512xf32> to vector<8x128xf32>
    %43 = vector.extract_strided_slice %40 {offsets = [0, 0], sizes = [8, 128], strides = [1, 1]} : vector<8x512xf32> to vector<8x128xf32>
    %cst_54 = arith.constant dense<0.000000e+00> : vector<8x8xf32>
    %44 = tpu.matmul %42, %43, %cst_54 {dimension_numbers = #tpu.dot_dimension_numbers<[1], [1], [0], [0], [0, 0, 1, 0], [], []>} : vector<8x128xf32>, vector<8x128xf32>, vector<8x8xf32> -> vector<8x8xf32>
    %45 = arith.addf %44, %28 : vector<8x8xf32>
    %cst_55 = arith.constant dense<0xFF800000> : vector<8xf32>
    %46 = vector.multi_reduction <maximumf>, %45, %cst_55 [1] : vector<8x8xf32> to vector<8xf32>
    %47 = vector.shape_cast %46 : vector<8xf32> to vector<8x1xf32>
    %48 = vector.broadcast %47 : vector<8x1xf32> to vector<8x8xf32>
    %49 = arith.subf %45, %48 : vector<8x8xf32>
    %50 = math.exp %49 : vector<8x8xf32>
    %cst_56 = arith.constant dense<0.000000e+00> : vector<8xf32>
    %51 = vector.multi_reduction <add>, %50, %cst_56 [1] : vector<8x8xf32> to vector<8xf32>
    %52 = vector.shape_cast %51 : vector<8xf32> to vector<8x1xf32>
    %53 = tpu.reciprocal %52 {approx = true} : vector<8x1xf32> -> vector<8x1xf32>
    %54 = vector.broadcast %53 : vector<8x1xf32> to vector<8x8xf32>
    %55 = arith.mulf %50, %54 : vector<8x8xf32>
    %56 = vector.extract_strided_slice %41 {offsets = [0, 0], sizes = [8, 128], strides = [1, 1]} : vector<8x512xf32> to vector<8x128xf32>
    %cst_57 = arith.constant dense<0.000000e+00> : vector<8x128xf32>
    %57 = tpu.matmul %55, %56, %cst_57 {dimension_numbers = #tpu.dot_dimension_numbers<[1], [0], [0], [1], [0, 0, 1, 1], [], []>} : vector<8x8xf32>, vector<8x128xf32>, vector<8x128xf32> -> vector<8x128xf32>
    %58 = vector.extract_strided_slice %39 {offsets = [0, 128], sizes = [8, 128], strides = [1, 1]} : vector<8x512xf32> to vector<8x128xf32>
    %59 = vector.extract_strided_slice %40 {offsets = [0, 128], sizes = [8, 128], strides = [1, 1]} : vector<8x512xf32> to vector<8x128xf32>
    %cst_58 = arith.constant dense<0.000000e+00> : vector<8x8xf32>
    %60 = tpu.matmul %58, %59, %cst_58 {dimension_numbers = #tpu.dot_dimension_numbers<[1], [1], [0], [0], [0, 0, 1, 0], [], []>} : vector<8x128xf32>, vector<8x128xf32>, vector<8x8xf32> -> vector<8x8xf32>
    %61 = arith.addf %60, %28 : vector<8x8xf32>
    %cst_59 = arith.constant dense<0xFF800000> : vector<8xf32>
    %62 = vector.multi_reduction <maximumf>, %61, %cst_59 [1] : vector<8x8xf32> to vector<8xf32>
    %63 = vector.shape_cast %62 : vector<8xf32> to vector<8x1xf32>
    %64 = vector.broadcast %63 : vector<8x1xf32> to vector<8x8xf32>
    %65 = arith.subf %61, %64 : vector<8x8xf32>
    %66 = math.exp %65 : vector<8x8xf32>
    %cst_60 = arith.constant dense<0.000000e+00> : vector<8xf32>
    %67 = vector.multi_reduction <add>, %66, %cst_60 [1] : vector<8x8xf32> to vector<8xf32>
    %68 = vector.shape_cast %67 : vector<8xf32> to vector<8x1xf32>
    %69 = tpu.reciprocal %68 {approx = true} : vector<8x1xf32> -> vector<8x1xf32>
    %70 = vector.broadcast %69 : vector<8x1xf32> to vector<8x8xf32>
    %71 = arith.mulf %66, %70 : vector<8x8xf32>
    %72 = vector.extract_strided_slice %41 {offsets = [0, 128], sizes = [8, 128], strides = [1, 1]} : vector<8x512xf32> to vector<8x128xf32>
    %cst_61 = arith.constant dense<0.000000e+00> : vector<8x128xf32>
    %73 = tpu.matmul %71, %72, %cst_61 {dimension_numbers = #tpu.dot_dimension_numbers<[1], [0], [0], [1], [0, 0, 1, 1], [], []>} : vector<8x8xf32>, vector<8x128xf32>, vector<8x128xf32> -> vector<8x128xf32>
    %74 = vector.extract_strided_slice %39 {offsets = [0, 256], sizes = [8, 128], strides = [1, 1]} : vector<8x512xf32> to vector<8x128xf32>
    %75 = vector.extract_strided_slice %40 {offsets = [0, 256], sizes = [8, 128], strides = [1, 1]} : vector<8x512xf32> to vector<8x128xf32>
    %cst_62 = arith.constant dense<0.000000e+00> : vector<8x8xf32>
    %76 = tpu.matmul %74, %75, %cst_62 {dimension_numbers = #tpu.dot_dimension_numbers<[1], [1], [0], [0], [0, 0, 1, 0], [], []>} : vector<8x128xf32>, vector<8x128xf32>, vector<8x8xf32> -> vector<8x8xf32>
    %77 = arith.addf %76, %28 : vector<8x8xf32>
    %cst_63 = arith.constant dense<0xFF800000> : vector<8xf32>
    %78 = vector.multi_reduction <maximumf>, %77, %cst_63 [1] : vector<8x8xf32> to vector<8xf32>
    %79 = vector.shape_cast %78 : vector<8xf32> to vector<8x1xf32>
    %80 = vector.broadcast %79 : vector<8x1xf32> to vector<8x8xf32>
    %81 = arith.subf %77, %80 : vector<8x8xf32>
    %82 = math.exp %81 : vector<8x8xf32>
    %cst_64 = arith.constant dense<0.000000e+00> : vector<8xf32>
    %83 = vector.multi_reduction <add>, %82, %cst_64 [1] : vector<8x8xf32> to vector<8xf32>
    %84 = vector.shape_cast %83 : vector<8xf32> to vector<8x1xf32>
    %85 = tpu.reciprocal %84 {approx = true} : vector<8x1xf32> -> vector<8x1xf32>
    %86 = vector.broadcast %85 : vector<8x1xf32> to vector<8x8xf32>
    %87 = arith.mulf %82, %86 : vector<8x8xf32>
    %88 = vector.extract_strided_slice %41 {offsets = [0, 256], sizes = [8, 128], strides = [1, 1]} : vector<8x512xf32> to vector<8x128xf32>
    %cst_65 = arith.constant dense<0.000000e+00> : vector<8x128xf32>
    %89 = tpu.matmul %87, %88, %cst_65 {dimension_numbers = #tpu.dot_dimension_numbers<[1], [0], [0], [1], [0, 0, 1, 1], [], []>} : vector<8x8xf32>, vector<8x128xf32>, vector<8x128xf32> -> vector<8x128xf32>
    %90 = vector.extract_strided_slice %39 {offsets = [0, 384], sizes = [8, 128], strides = [1, 1]} : vector<8x512xf32> to vector<8x128xf32>
    %91 = vector.extract_strided_slice %40 {offsets = [0, 384], sizes = [8, 128], strides = [1, 1]} : vector<8x512xf32> to vector<8x128xf32>
    %cst_66 = arith.constant dense<0.000000e+00> : vector<8x8xf32>
    %92 = tpu.matmul %90, %91, %cst_66 {dimension_numbers = #tpu.dot_dimension_numbers<[1], [1], [0], [0], [0, 0, 1, 0], [], []>} : vector<8x128xf32>, vector<8x128xf32>, vector<8x8xf32> -> vector<8x8xf32>
    %93 = arith.addf %92, %28 : vector<8x8xf32>
    %cst_67 = arith.constant dense<0xFF800000> : vector<8xf32>
    %94 = vector.multi_reduction <maximumf>, %93, %cst_67 [1] : vector<8x8xf32> to vector<8xf32>
    %95 = vector.shape_cast %94 : vector<8xf32> to vector<8x1xf32>
    %96 = vector.broadcast %95 : vector<8x1xf32> to vector<8x8xf32>
    %97 = arith.subf %93, %96 : vector<8x8xf32>
    %98 = math.exp %97 : vector<8x8xf32>
    %cst_68 = arith.constant dense<0.000000e+00> : vector<8xf32>
    %99 = vector.multi_reduction <add>, %98, %cst_68 [1] : vector<8x8xf32> to vector<8xf32>
    %100 = vector.shape_cast %99 : vector<8xf32> to vector<8x1xf32>
    %101 = tpu.reciprocal %100 {approx = true} : vector<8x1xf32> -> vector<8x1xf32>
    %102 = vector.broadcast %101 : vector<8x1xf32> to vector<8x8xf32>
    %103 = arith.mulf %98, %102 : vector<8x8xf32>
    %104 = vector.extract_strided_slice %41 {offsets = [0, 384], sizes = [8, 128], strides = [1, 1]} : vector<8x512xf32> to vector<8x128xf32>
    %cst_69 = arith.constant dense<0.000000e+00> : vector<8x128xf32>
    %105 = tpu.matmul %103, %104, %cst_69 {dimension_numbers = #tpu.dot_dimension_numbers<[1], [0], [0], [1], [0, 0, 1, 1], [], []>} : vector<8x8xf32>, vector<8x128xf32>, vector<8x128xf32> -> vector<8x128xf32>
    %106 = tpu.concatenate %57, %73, %89, %105 in 1 : vector<8x128xf32>, vector<8x128xf32>, vector<8x128xf32>, vector<8x128xf32> -> vector<8x512xf32>
    %cst_70 = arith.constant dense<0.000000e+00> : vector<8x32xf32>
    %107 = tpu.matmul %106, %2, %cst_70 {dimension_numbers = #tpu.dot_dimension_numbers<[1], [0], [0], [1], [0, 0, 1, 1], [], []>} : vector<8x512xf32>, vector<512x32xf32>, vector<8x32xf32> -> vector<8x32xf32>
    %108 = vector.broadcast %3 : vector<1x32xf32> to vector<8x32xf32>
    %109 = arith.addf %107, %108 : vector<8x32xf32>
    %110 = arith.addf %109, %21 : vector<8x32xf32>
    %cst_71 = arith.constant dense<0.000000e+00> : vector<8xf32>
    %111 = vector.multi_reduction <add>, %110, %cst_71 [1] : vector<8x32xf32> to vector<8xf32>
    %112 = vector.shape_cast %111 : vector<8xf32> to vector<8x1xf32>
    %cst_72 = arith.constant 3.200000e+01 : f32
    %113 = vector.broadcast %cst_72 : f32 to vector<8x1xf32>
    %114 = arith.divf %112, %113 : vector<8x1xf32>
    %115 = vector.broadcast %114 : vector<8x1xf32> to vector<8x32xf32>
    %116 = arith.subf %110, %115 : vector<8x32xf32>
    %117 = arith.mulf %116, %116 : vector<8x32xf32>
    %cst_73 = arith.constant dense<0.000000e+00> : vector<8xf32>
    %118 = vector.multi_reduction <add>, %117, %cst_73 [1] : vector<8x32xf32> to vector<8xf32>
    %119 = vector.shape_cast %118 : vector<8xf32> to vector<8x1xf32>
    %cst_74 = arith.constant 3.200000e+01 : f32
    %120 = vector.broadcast %cst_74 : f32 to vector<8x1xf32>
    %121 = arith.divf %119, %120 : vector<8x1xf32>
    %122 = vector.broadcast %114 : vector<8x1xf32> to vector<8x32xf32>
    %123 = arith.subf %110, %122 : vector<8x32xf32>
    %cst_75 = arith.constant 9.99999974E-6 : f32
    %124 = vector.broadcast %cst_75 : f32 to vector<8x1xf32>
    %125 = arith.addf %121, %124 : vector<8x1xf32>
    %126 = math.rsqrt %125 : vector<8x1xf32>
    %127 = vector.broadcast %126 : vector<8x1xf32> to vector<8x32xf32>
    %128 = arith.mulf %123, %127 : vector<8x32xf32>
    %129 = vector.broadcast %4 : vector<1x32xf32> to vector<8x32xf32>
    %130 = arith.mulf %128, %129 : vector<8x32xf32>
    %131 = vector.broadcast %5 : vector<1x32xf32> to vector<8x32xf32>
    %132 = arith.addf %130, %131 : vector<8x32xf32>
    %cst_76 = arith.constant dense<0.000000e+00> : vector<8x512xf32>
    %133 = tpu.matmul %132, %6, %cst_76 {dimension_numbers = #tpu.dot_dimension_numbers<[1], [0], [0], [1], [0, 0, 1, 1], [], []>} : vector<8x32xf32>, vector<32x512xf32>, vector<8x512xf32> -> vector<8x512xf32>
    %134 = vector.broadcast %7 : vector<1x512xf32> to vector<8x512xf32>
    %135 = arith.addf %133, %134 : vector<8x512xf32>
    %cst_77 = arith.constant 0.353553385 : f32
    %136 = vector.broadcast %cst_77 : f32 to vector<8x512xf32>
    %137 = arith.mulf %135, %136 : vector<8x512xf32>
    %cst_78 = arith.constant dense<0.000000e+00> : vector<16x1024xf32>
    %138 = tpu.matmul %23, %8, %cst_78 {dimension_numbers = #tpu.dot_dimension_numbers<[1], [0], [0], [1], [0, 0, 1, 1], [], []>} : vector<16x32xf32>, vector<32x1024xf32>, vector<16x1024xf32> -> vector<16x1024xf32>
    %139 = vector.broadcast %9 : vector<1x1024xf32> to vector<16x1024xf32>
    %140 = arith.addf %138, %139 : vector<16x1024xf32>
    %141 = vector.extract_strided_slice %140 {offsets = [0, 0], sizes = [16, 512], strides = [1, 1]} : vector<16x1024xf32> to vector<16x512xf32>
    %142 = vector.extract_strided_slice %140 {offsets = [0, 512], sizes = [16, 512], strides = [1, 1]} : vector<16x1024xf32> to vector<16x512xf32>
    %143 = vector.extract_strided_slice %137 {offsets = [0, 0], sizes = [8, 128], strides = [1, 1]} : vector<8x512xf32> to vector<8x128xf32>
    %144 = vector.extract_strided_slice %141 {offsets = [0, 0], sizes = [16, 128], strides = [1, 1]} : vector<16x512xf32> to vector<16x128xf32>
    %cst_79 = arith.constant dense<0.000000e+00> : vector<8x16xf32>
    %145 = tpu.matmul %143, %144, %cst_79 {dimension_numbers = #tpu.dot_dimension_numbers<[1], [1], [0], [0], [0, 0, 1, 0], [], []>} : vector<8x128xf32>, vector<16x128xf32>, vector<8x16xf32> -> vector<8x16xf32>
    %146 = arith.addf %145, %33 : vector<8x16xf32>
    %cst_80 = arith.constant dense<0xFF800000> : vector<8xf32>
    %147 = vector.multi_reduction <maximumf>, %146, %cst_80 [1] : vector<8x16xf32> to vector<8xf32>
    %148 = vector.shape_cast %147 : vector<8xf32> to vector<8x1xf32>
    %149 = vector.broadcast %148 : vector<8x1xf32> to vector<8x16xf32>
    %150 = arith.subf %146, %149 : vector<8x16xf32>
    %151 = math.exp %150 : vector<8x16xf32>
    %cst_81 = arith.constant dense<0.000000e+00> : vector<8xf32>
    %152 = vector.multi_reduction <add>, %151, %cst_81 [1] : vector<8x16xf32> to vector<8xf32>
    %153 = vector.shape_cast %152 : vector<8xf32> to vector<8x1xf32>
    %154 = vector.broadcast %153 : vector<8x1xf32> to vector<8x16xf32>
    %155 = arith.divf %151, %154 : vector<8x16xf32>
    %156 = vector.extract_strided_slice %142 {offsets = [0, 0], sizes = [16, 128], strides = [1, 1]} : vector<16x512xf32> to vector<16x128xf32>
    %cst_82 = arith.constant dense<0.000000e+00> : vector<8x128xf32>
    %157 = tpu.matmul %155, %156, %cst_82 {dimension_numbers = #tpu.dot_dimension_numbers<[1], [0], [0], [1], [0, 0, 1, 1], [], []>} : vector<8x16xf32>, vector<16x128xf32>, vector<8x128xf32> -> vector<8x128xf32>
    %158 = vector.extract_strided_slice %137 {offsets = [0, 128], sizes = [8, 128], strides = [1, 1]} : vector<8x512xf32> to vector<8x128xf32>
    %159 = vector.extract_strided_slice %141 {offsets = [0, 128], sizes = [16, 128], strides = [1, 1]} : vector<16x512xf32> to vector<16x128xf32>
    %cst_83 = arith.constant dense<0.000000e+00> : vector<8x16xf32>
    %160 = tpu.matmul %158, %159, %cst_83 {dimension_numbers = #tpu.dot_dimension_numbers<[1], [1], [0], [0], [0, 0, 1, 0], [], []>} : vector<8x128xf32>, vector<16x128xf32>, vector<8x16xf32> -> vector<8x16xf32>
    %161 = arith.addf %160, %33 : vector<8x16xf32>
    %cst_84 = arith.constant dense<0xFF800000> : vector<8xf32>
    %162 = vector.multi_reduction <maximumf>, %161, %cst_84 [1] : vector<8x16xf32> to vector<8xf32>
    %163 = vector.shape_cast %162 : vector<8xf32> to vector<8x1xf32>
    %164 = vector.broadcast %163 : vector<8x1xf32> to vector<8x16xf32>
    %165 = arith.subf %161, %164 : vector<8x16xf32>
    %166 = math.exp %165 : vector<8x16xf32>
    %cst_85 = arith.constant dense<0.000000e+00> : vector<8xf32>
    %167 = vector.multi_reduction <add>, %166, %cst_85 [1] : vector<8x16xf32> to vector<8xf32>
    %168 = vector.shape_cast %167 : vector<8xf32> to vector<8x1xf32>
    %169 = vector.broadcast %168 : vector<8x1xf32> to vector<8x16xf32>
    %170 = arith.divf %166, %169 : vector<8x16xf32>
    %171 = vector.extract_strided_slice %142 {offsets = [0, 128], sizes = [16, 128], strides = [1, 1]} : vector<16x512xf32> to vector<16x128xf32>
    %cst_86 = arith.constant dense<0.000000e+00> : vector<8x128xf32>
    %172 = tpu.matmul %170, %171, %cst_86 {dimension_numbers = #tpu.dot_dimension_numbers<[1], [0], [0], [1], [0, 0, 1, 1], [], []>} : vector<8x16xf32>, vector<16x128xf32>, vector<8x128xf32> -> vector<8x128xf32>
    %173 = vector.extract_strided_slice %137 {offsets = [0, 256], sizes = [8, 128], strides = [1, 1]} : vector<8x512xf32> to vector<8x128xf32>
    %174 = vector.extract_strided_slice %141 {offsets = [0, 256], sizes = [16, 128], strides = [1, 1]} : vector<16x512xf32> to vector<16x128xf32>
    %cst_87 = arith.constant dense<0.000000e+00> : vector<8x16xf32>
    %175 = tpu.matmul %173, %174, %cst_87 {dimension_numbers = #tpu.dot_dimension_numbers<[1], [1], [0], [0], [0, 0, 1, 0], [], []>} : vector<8x128xf32>, vector<16x128xf32>, vector<8x16xf32> -> vector<8x16xf32>
    %176 = arith.addf %175, %33 : vector<8x16xf32>
    %cst_88 = arith.constant dense<0xFF800000> : vector<8xf32>
    %177 = vector.multi_reduction <maximumf>, %176, %cst_88 [1] : vector<8x16xf32> to vector<8xf32>
    %178 = vector.shape_cast %177 : vector<8xf32> to vector<8x1xf32>
    %179 = vector.broadcast %178 : vector<8x1xf32> to vector<8x16xf32>
    %180 = arith.subf %176, %179 : vector<8x16xf32>
    %181 = math.exp %180 : vector<8x16xf32>
    %cst_89 = arith.constant dense<0.000000e+00> : vector<8xf32>
    %182 = vector.multi_reduction <add>, %181, %cst_89 [1] : vector<8x16xf32> to vector<8xf32>
    %183 = vector.shape_cast %182 : vector<8xf32> to vector<8x1xf32>
    %184 = vector.broadcast %183 : vector<8x1xf32> to vector<8x16xf32>
    %185 = arith.divf %181, %184 : vector<8x16xf32>
    %186 = vector.extract_strided_slice %142 {offsets = [0, 256], sizes = [16, 128], strides = [1, 1]} : vector<16x512xf32> to vector<16x128xf32>
    %cst_90 = arith.constant dense<0.000000e+00> : vector<8x128xf32>
    %187 = tpu.matmul %185, %186, %cst_90 {dimension_numbers = #tpu.dot_dimension_numbers<[1], [0], [0], [1], [0, 0, 1, 1], [], []>} : vector<8x16xf32>, vector<16x128xf32>, vector<8x128xf32> -> vector<8x128xf32>
    %188 = vector.extract_strided_slice %137 {offsets = [0, 384], sizes = [8, 128], strides = [1, 1]} : vector<8x512xf32> to vector<8x128xf32>
    %189 = vector.extract_strided_slice %141 {offsets = [0, 384], sizes = [16, 128], strides = [1, 1]} : vector<16x512xf32> to vector<16x128xf32>
    %cst_91 = arith.constant dense<0.000000e+00> : vector<8x16xf32>
    %190 = tpu.matmul %188, %189, %cst_91 {dimension_numbers = #tpu.dot_dimension_numbers<[1], [1], [0], [0], [0, 0, 1, 0], [], []>} : vector<8x128xf32>, vector<16x128xf32>, vector<8x16xf32> -> vector<8x16xf32>
    %191 = arith.addf %190, %33 : vector<8x16xf32>
    %cst_92 = arith.constant dense<0xFF800000> : vector<8xf32>
    %192 = vector.multi_reduction <maximumf>, %191, %cst_92 [1] : vector<8x16xf32> to vector<8xf32>
    %193 = vector.shape_cast %192 : vector<8xf32> to vector<8x1xf32>
    %194 = vector.broadcast %193 : vector<8x1xf32> to vector<8x16xf32>
    %195 = arith.subf %191, %194 : vector<8x16xf32>
    %196 = math.exp %195 : vector<8x16xf32>
    %cst_93 = arith.constant dense<0.000000e+00> : vector<8xf32>
    %197 = vector.multi_reduction <add>, %196, %cst_93 [1] : vector<8x16xf32> to vector<8xf32>
    %198 = vector.shape_cast %197 : vector<8xf32> to vector<8x1xf32>
    %199 = vector.broadcast %198 : vector<8x1xf32> to vector<8x16xf32>
    %200 = arith.divf %196, %199 : vector<8x16xf32>
    %201 = vector.extract_strided_slice %142 {offsets = [0, 384], sizes = [16, 128], strides = [1, 1]} : vector<16x512xf32> to vector<16x128xf32>
    %cst_94 = arith.constant dense<0.000000e+00> : vector<8x128xf32>
    %202 = tpu.matmul %200, %201, %cst_94 {dimension_numbers = #tpu.dot_dimension_numbers<[1], [0], [0], [1], [0, 0, 1, 1], [], []>} : vector<8x16xf32>, vector<16x128xf32>, vector<8x128xf32> -> vector<8x128xf32>
    %203 = tpu.concatenate %157, %172, %187, %202 in 1 : vector<8x128xf32>, vector<8x128xf32>, vector<8x128xf32>, vector<8x128xf32> -> vector<8x512xf32>
    %cst_95 = arith.constant dense<0.000000e+00> : vector<8x32xf32>
    %204 = tpu.matmul %203, %10, %cst_95 {dimension_numbers = #tpu.dot_dimension_numbers<[1], [0], [0], [1], [0, 0, 1, 1], [], []>} : vector<8x512xf32>, vector<512x32xf32>, vector<8x32xf32> -> vector<8x32xf32>
    %205 = vector.broadcast %11 : vector<1x32xf32> to vector<8x32xf32>
    %206 = arith.addf %204, %205 : vector<8x32xf32>
    %207 = tpu.concatenate %155, %170, %185, %200 in 1 : vector<8x16xf32>, vector<8x16xf32>, vector<8x16xf32>, vector<8x16xf32> -> vector<8x64xf32>
    %c0_96 = arith.constant 0 : index
    %c0_97 = arith.constant 0 : index
    %c0_98 = arith.constant 0 : index
    %208 = vector.load %arg26[%c0_96, %c0_97, %c0_98] : memref<1x8x64xf32, #tpu.memory_space<vmem>>, vector<1x8x64xf32>
    %209 = vector.shape_cast %208 : vector<1x8x64xf32> to vector<8x64xf32>
    %210 = vector.shape_cast %207 : vector<8x64xf32> to vector<1x8x64xf32>
    tpu.vector_store %arg26[%c0_96, %c0_97, %c0_98], %210 {strides = array<i32>} : memref<1x8x64xf32, #tpu.memory_space<vmem>>, vector<1x8x64xf32>,
    %211 = arith.addf %206, %132 : vector<8x32xf32>
    %cst_99 = arith.constant dense<0.000000e+00> : vector<8xf32>
    %212 = vector.multi_reduction <add>, %211, %cst_99 [1] : vector<8x32xf32> to vector<8xf32>
    %213 = vector.shape_cast %212 : vector<8xf32> to vector<8x1xf32>
    %cst_100 = arith.constant 3.200000e+01 : f32
    %214 = vector.broadcast %cst_100 : f32 to vector<8x1xf32>
    %215 = arith.divf %213, %214 : vector<8x1xf32>
    %216 = vector.broadcast %215 : vector<8x1xf32> to vector<8x32xf32>
    %217 = arith.subf %211, %216 : vector<8x32xf32>
    %218 = arith.mulf %217, %217 : vector<8x32xf32>
    %cst_101 = arith.constant dense<0.000000e+00> : vector<8xf32>
    %219 = vector.multi_reduction <add>, %218, %cst_101 [1] : vector<8x32xf32> to vector<8xf32>
    %220 = vector.shape_cast %219 : vector<8xf32> to vector<8x1xf32>
    %cst_102 = arith.constant 3.200000e+01 : f32
    %221 = vector.broadcast %cst_102 : f32 to vector<8x1xf32>
    %222 = arith.divf %220, %221 : vector<8x1xf32>
    %223 = vector.broadcast %215 : vector<8x1xf32> to vector<8x32xf32>
    %224 = arith.subf %211, %223 : vector<8x32xf32>
    %cst_103 = arith.constant 9.99999974E-6 : f32
    %225 = vector.broadcast %cst_103 : f32 to vector<8x1xf32>
    %226 = arith.addf %222, %225 : vector<8x1xf32>
    %227 = math.rsqrt %226 : vector<8x1xf32>
    %228 = vector.broadcast %227 : vector<8x1xf32> to vector<8x32xf32>
    %229 = arith.mulf %224, %228 : vector<8x32xf32>
    %230 = vector.broadcast %12 : vector<1x32xf32> to vector<8x32xf32>
    %231 = arith.mulf %229, %230 : vector<8x32xf32>
    %232 = vector.broadcast %13 : vector<1x32xf32> to vector<8x32xf32>
    %233 = arith.addf %231, %232 : vector<8x32xf32>
    %cst_104 = arith.constant dense<0.000000e+00> : vector<8x64xf32>
    %234 = tpu.matmul %233, %14, %cst_104 {dimension_numbers = #tpu.dot_dimension_numbers<[1], [0], [0], [1], [0, 0, 1, 1], [], []>} : vector<8x32xf32>, vector<32x64xf32>, vector<8x64xf32> -> vector<8x64xf32>
    %235 = vector.broadcast %15 : vector<1x64xf32> to vector<8x64xf32>
    %236 = arith.addf %234, %235 : vector<8x64xf32>
    %cst_105 = arith.constant 0.000000e+00 : f32
    %237 = vector.broadcast %cst_105 : f32 to vector<8x64xf32>
    %238 = arith.maximumf %236, %237 : vector<8x64xf32>
    %cst_106 = arith.constant dense<0.000000e+00> : vector<8x32xf32>
    %239 = tpu.matmul %238, %16, %cst_106 {dimension_numbers = #tpu.dot_dimension_numbers<[1], [0], [0], [1], [0, 0, 1, 1], [], []>} : vector<8x64xf32>, vector<64x32xf32>, vector<8x32xf32> -> vector<8x32xf32>
    %240 = vector.broadcast %17 : vector<1x32xf32> to vector<8x32xf32>
    %241 = arith.addf %239, %240 : vector<8x32xf32>
    %242 = arith.addf %241, %233 : vector<8x32xf32>
    %cst_107 = arith.constant dense<0.000000e+00> : vector<8xf32>
    %243 = vector.multi_reduction <add>, %242, %cst_107 [1] : vector<8x32xf32> to vector<8xf32>
    %244 = vector.shape_cast %243 : vector<8xf32> to vector<8x1xf32>
    %cst_108 = arith.constant 3.200000e+01 : f32
    %245 = vector.broadcast %cst_108 : f32 to vector<8x1xf32>
    %246 = arith.divf %244, %245 : vector<8x1xf32>
    %247 = vector.broadcast %246 : vector<8x1xf32> to vector<8x32xf32>
    %248 = arith.subf %242, %247 : vector<8x32xf32>
    %249 = arith.mulf %248, %248 : vector<8x32xf32>
    %cst_109 = arith.constant dense<0.000000e+00> : vector<8xf32>
    %250 = vector.multi_reduction <add>, %249, %cst_109 [1] : vector<8x32xf32> to vector<8xf32>
    %251 = vector.shape_cast %250 : vector<8xf32> to vector<8x1xf32>
    %cst_110 = arith.constant 3.200000e+01 : f32
    %252 = vector.broadcast %cst_110 : f32 to vector<8x1xf32>
    %253 = arith.divf %251, %252 : vector<8x1xf32>
    %254 = vector.broadcast %246 : vector<8x1xf32> to vector<8x32xf32>
    %255 = arith.subf %242, %254 : vector<8x32xf32>
    %cst_111 = arith.constant 9.99999974E-6 : f32
    %256 = vector.broadcast %cst_111 : f32 to vector<8x1xf32>
    %257 = arith.addf %253, %256 : vector<8x1xf32>
    %258 = math.rsqrt %257 : vector<8x1xf32>
    %259 = vector.broadcast %258 : vector<8x1xf32> to vector<8x32xf32>
    %260 = arith.mulf %255, %259 : vector<8x32xf32>
    %261 = vector.broadcast %18 : vector<1x32xf32> to vector<8x32xf32>
    %262 = arith.mulf %260, %261 : vector<8x32xf32>
    %263 = vector.broadcast %19 : vector<1x32xf32> to vector<8x32xf32>
    %264 = arith.addf %262, %263 : vector<8x32xf32>
    %c0_112 = arith.constant 0 : index
    %c0_113 = arith.constant 0 : index
    %c0_114 = arith.constant 0 : index
    %265 = vector.load %arg25[%c0_112, %c0_113, %c0_114] : memref<1x8x32xf32, #tpu.memory_space<vmem>>, vector<1x8x32xf32>
    %266 = vector.shape_cast %265 : vector<1x8x32xf32> to vector<8x32xf32>
    %267 = vector.shape_cast %264 : vector<8x32xf32> to vector<1x8x32xf32>
    tpu.vector_store %arg25[%c0_112, %c0_113, %c0_114], %267 {strides = array<i32>} : memref<1x8x32xf32, #tpu.memory_space<vmem>>, vector<1x8x32xf32>,
    return
  }
  func.func @transform_0(%arg0: i32) -> (i32, i32, i32) {
    %c0_i32 = arith.constant 0 : i32
    %c0_i32_0 = arith.constant 0 : i32
    %c0_i32_1 = arith.constant 0 : i32
    return %arg0, %c0_i32, %c0_i32_0 : i32, i32, i32
  }
  func.func @transform_1(%arg0: i32) -> (i32, i32, i32) {
    %c0_i32 = arith.constant 0 : i32
    %c0_i32_0 = arith.constant 0 : i32
    %c0_i32_1 = arith.constant 0 : i32
    return %arg0, %c0_i32, %c0_i32_0 : i32, i32, i32
  }
  func.func @transform_2(%arg0: i32) -> (i32, i32, i32) {
    %c0_i32 = arith.constant 0 : i32
    %c0_i32_0 = arith.constant 0 : i32
    %c0_i32_1 = arith.constant 0 : i32
    return %arg0, %c0_i32, %c0_i32_0 : i32, i32, i32
  }
  func.func @transform_3(%arg0: i32) -> (i32, i32, i32) {
    %c0_i32 = arith.constant 0 : i32
    %c0_i32_0 = arith.constant 0 : i32
    %c0_i32_1 = arith.constant 0 : i32
    return %arg0, %c0_i32, %c0_i32_0 : i32, i32, i32
  }
  func.func @transform_4(%arg0: i32) -> (i32, i32) {
    %c0_i32 = arith.constant 0 : i32
    %c0_i32_0 = arith.constant 0 : i32
    %c0_i32_1 = arith.constant 0 : i32
    return %c0_i32, %c0_i32_0 : i32, i32
  }
  func.func @transform_5(%arg0: i32) -> (i32, i32) {
    %c0_i32 = arith.constant 0 : i32
    %c0_i32_0 = arith.constant 0 : i32
    %c0_i32_1 = arith.constant 0 : i32
    return %c0_i32, %c0_i32_0 : i32, i32
  }
  func.func @transform_6(%arg0: i32) -> (i32, i32) {
    %c0_i32 = arith.constant 0 : i32
    %c0_i32_0 = arith.constant 0 : i32
    %c0_i32_1 = arith.constant 0 : i32
    return %c0_i32, %c0_i32_0 : i32, i32
  }
  func.func @transform_7(%arg0: i32) -> (i32, i32) {
    %c0_i32 = arith.constant 0 : i32
    %c0_i32_0 = arith.constant 0 : i32
    %c0_i32_1 = arith.constant 0 : i32
    return %c0_i32, %c0_i32_0 : i32, i32
  }
  func.func @transform_8(%arg0: i32) -> (i32, i32) {
    %c0_i32 = arith.constant 0 : i32
    %c0_i32_0 = arith.constant 0 : i32
    %c0_i32_1 = arith.constant 0 : i32
    return %c0_i32, %c0_i32_0 : i32, i32
  }
  func.func @transform_9(%arg0: i32) -> (i32, i32) {
    %c0_i32 = arith.constant 0 : i32
    %c0_i32_0 = arith.constant 0 : i32
    %c0_i32_1 = arith.constant 0 : i32
    return %c0_i32, %c0_i32_0 : i32, i32
  }
  func.func @transform_10(%arg0: i32) -> (i32, i32) {
    %c0_i32 = arith.constant 0 : i32
    %c0_i32_0 = arith.constant 0 : i32
    %c0_i32_1 = arith.constant 0 : i32
    return %c0_i32, %c0_i32_0 : i32, i32
  }
  func.func @transform_11(%arg0: i32) -> (i32, i32) {
    %c0_i32 = arith.constant 0 : i32
    %c0_i32_0 = arith.constant 0 : i32
    %c0_i32_1 = arith.constant 0 : i32
    return %c0_i32, %c0_i32_0 : i32, i32
  }
  func.func @transform_12(%arg0: i32) -> (i32, i32) {
    %c0_i32 = arith.constant 0 : i32
    %c0_i32_0 = arith.constant 0 : i32
    %c0_i32_1 = arith.constant 0 : i32
    return %c0_i32, %c0_i32_0 : i32, i32
  }
  func.func @transform_13(%arg0: i32) -> (i32, i32) {
    %c0_i32 = arith.constant 0 : i32
    %c0_i32_0 = arith.constant 0 : i32
    %c0_i32_1 = arith.constant 0 : i32
    return %c0_i32, %c0_i32_0 : i32, i32
  }
  func.func @transform_14(%arg0: i32) -> (i32, i32) {
    %c0_i32 = arith.constant 0 : i32
    %c0_i32_0 = arith.constant 0 : i32
    %c0_i32_1 = arith.constant 0 : i32
    return %c0_i32, %c0_i32_0 : i32, i32
  }
  func.func @transform_15(%arg0: i32) -> (i32, i32) {
    %c0_i32 = arith.constant 0 : i32
    %c0_i32_0 = arith.constant 0 : i32
    %c0_i32_1 = arith.constant 0 : i32
    return %c0_i32, %c0_i32_0 : i32, i32
  }
  func.func @transform_16(%arg0: i32) -> (i32, i32) {
    %c0_i32 = arith.constant 0 : i32
    %c0_i32_0 = arith.constant 0 : i32
    %c0_i32_1 = arith.constant 0 : i32
    return %c0_i32, %c0_i32_0 : i32, i32
  }
  func.func @transform_17(%arg0: i32) -> (i32, i32) {
    %c0_i32 = arith.constant 0 : i32
    %c0_i32_0 = arith.constant 0 : i32
    %c0_i32_1 = arith.constant 0 : i32
    return %c0_i32, %c0_i32_0 : i32, i32
  }
  func.func @transform_18(%arg0: i32) -> (i32, i32) {
    %c0_i32 = arith.constant 0 : i32
    %c0_i32_0 = arith.constant 0 : i32
    %c0_i32_1 = arith.constant 0 : i32
    return %c0_i32, %c0_i32_0 : i32, i32
  }
  func.func @transform_19(%arg0: i32) -> (i32, i32) {
    %c0_i32 = arith.constant 0 : i32
    %c0_i32_0 = arith.constant 0 : i32
    %c0_i32_1 = arith.constant 0 : i32
    return %c0_i32, %c0_i32_0 : i32, i32
  }
  func.func @transform_20(%arg0: i32) -> (i32, i32) {
    %c0_i32 = arith.constant 0 : i32
    %c0_i32_0 = arith.constant 0 : i32
    %c0_i32_1 = arith.constant 0 : i32
    return %c0_i32, %c0_i32_0 : i32, i32
  }
  func.func @transform_21(%arg0: i32) -> (i32, i32) {
    %c0_i32 = arith.constant 0 : i32
    %c0_i32_0 = arith.constant 0 : i32
    %c0_i32_1 = arith.constant 0 : i32
    return %c0_i32, %c0_i32_0 : i32, i32
  }
  func.func @transform_22(%arg0: i32) -> (i32, i32) {
    %c0_i32 = arith.constant 0 : i32
    %c0_i32_0 = arith.constant 0 : i32
    %c0_i32_1 = arith.constant 0 : i32
    return %c0_i32, %c0_i32_0 : i32, i32
  }
  func.func @transform_23(%arg0: i32) -> (i32, i32) {
    %c0_i32 = arith.constant 0 : i32
    %c0_i32_0 = arith.constant 0 : i32
    %c0_i32_1 = arith.constant 0 : i32
    return %c0_i32, %c0_i32_0 : i32, i32
  }
  func.func @transform_24(%arg0: i32) -> (i32, i32, i32) {
    %c0_i32 = arith.constant 0 : i32
    %c0_i32_0 = arith.constant 0 : i32
    %c0_i32_1 = arith.constant 0 : i32
    return %arg0, %c0_i32, %c0_i32_0 : i32, i32, i32
  }
  func.func @transform_25(%arg0: i32) -> (i32, i32, i32) {
    %c0_i32 = arith.constant 0 : i32
    %c0_i32_0 = arith.constant 0 : i32
    %c0_i32_1 = arith.constant 0 : i32
    return %arg0, %c0_i32, %c0_i32_0 : i32, i32, i32
  }
}

</mosaic_0001>

<llo_original>
// kernel: decoder_block.1
$region0: #{decoder_block.1}
  #allocation0 [shape = 'u32[]', space=smem, size = 0x4, offset = 0x4, fixed_abs, tag = 'smem constant byte address 0x4 - core index']
  #allocation1 [shape = 'u32[144,128]{1,0:T(1,128)}', space=vmem, size = 0x12000, scoped, tag = 'internal scratch']
  %s0 = inlined_call_operand.vmem [shape: f32[2,8,32], index: 0, kind: input, shape index: {}]
  %s1 = inlined_call_operand.vmem [shape: f32[2,16,32], index: 1, kind: input, shape index: {}]
  %s2 = inlined_call_operand.vmem [shape: bf16[2,8,8], index: 2, kind: input, shape index: {}]
  %s3 = inlined_call_operand.vmem [shape: bf16[2,8,16], index: 3, kind: input, shape index: {}]
  %s4 = inlined_call_operand.vmem [shape: f32[32,1536], index: 4, kind: input, shape index: {}]
  %s5 = inlined_call_operand.vmem [shape: f32[1,1536], index: 5, kind: input, shape index: {}]
  %s6 = inlined_call_operand.vmem [shape: f32[512,32], index: 6, kind: input, shape index: {}]
  %s7 = inlined_call_operand.vmem [shape: f32[1,32], index: 7, kind: input, shape index: {}]
  %s8 = inlined_call_operand.vmem [shape: f32[1,32], index: 8, kind: input, shape index: {}]
  %s9 = inlined_call_operand.vmem [shape: f32[1,32], index: 9, kind: input, shape index: {}]
  %s10 = inlined_call_operand.vmem [shape: f32[32,512], index: 10, kind: input, shape index: {}]
  %s11 = inlined_call_operand.vmem [shape: f32[1,512], index: 11, kind: input, shape index: {}]
  %s12 = inlined_call_operand.vmem [shape: f32[32,1024], index: 12, kind: input, shape index: {}]
  %s13 = inlined_call_operand.vmem [shape: f32[1,1024], index: 13, kind: input, shape index: {}]
  %s14 = inlined_call_operand.vmem [shape: f32[512,32], index: 14, kind: input, shape index: {}]
  %s15 = inlined_call_operand.vmem [shape: f32[1,32], index: 15, kind: input, shape index: {}]
  %s16 = inlined_call_operand.vmem [shape: f32[1,32], index: 16, kind: input, shape index: {}]
  %s17 = inlined_call_operand.vmem [shape: f32[1,32], index: 17, kind: input, shape index: {}]
  %s18 = inlined_call_operand.vmem [shape: f32[32,64], index: 18, kind: input, shape index: {}]
  %s19 = inlined_call_operand.vmem [shape: f32[1,64], index: 19, kind: input, shape index: {}]
  %s20 = inlined_call_operand.vmem [shape: f32[64,32], index: 20, kind: input, shape index: {}]
  %s21 = inlined_call_operand.vmem [shape: f32[1,32], index: 21, kind: input, shape index: {}]
  %s22 = inlined_call_operand.vmem [shape: f32[1,32], index: 22, kind: input, shape index: {}]
  %s23 = inlined_call_operand.vmem [shape: f32[1,32], index: 23, kind: input, shape index: {}]
  %s24 = inlined_call_operand.hbm [shape: f32[2,8,32], index: 24, kind: output, shape index: {0}]
  %s25 = inlined_call_operand.vmem [shape: f32[2,8,64], index: 25, kind: output, shape index: {1}]
  %26 = xla_tuple %s24, %s25
  %s27 = sld [smem:[#allocation0]]
  $region137: #{decoder_block.1} parent=0
    _
  %s29 = ssub.s32 1, %s27
  %s30 = scalar_select 0, %s29, %s27
  $region1: #{decoder_block.1} parent=0
    #allocation2 [shape = 'u8[8192]{0}', space=vmem, size = 0x2000, scoped, tag = 'output window, operand 0']
    #allocation3 [shape = 's32[2]{0}', space=sflag, size = 0x8, scoped, tag = 'scoped memory for decoder_block.1']
    %31 = vsyncpa [#allocation3], 0
    %s32 = scalar_lea.sflag [#allocation3], 1
    %33 = vsyncpa %s32, 0
    loop: start=0, step=1, limit=4
    $region2: #{decoder_block.1} parent=1 // loop_pre_header
      _
    $region3: #{decoder_block.1} parent=1 // loop_header
      %s35 = sphi 0, %s39
      %p36 = scmp.ge.s32.totalorder %s35, 4
      %s45 = sphi 0, %s47
      %s48 = sphi 0, %s45
      %s49 = sphi 0, %s48
      %s65 = sphi 0, %s49
      %s71 = sphi 0, %s73
      %s74 = sphi 0, %s71
      %s75 = sphi 0, %s74
      %s91 = sphi 0, %s75
      %s97 = sphi 0, %s99
      %s100 = sphi 0, %s97
      %s101 = sphi 0, %s100
      %s117 = sphi 0, %s101
      %s123 = sphi 0, %s125
      %s126 = sphi 0, %s123
      %s127 = sphi 0, %s126
      %s143 = sphi 0, %s127
      %s147 = sphi 0, %s147
      %s149 = sphi 0, %s147
      %s150 = sphi 0, %s149
      %s164 = sphi 0, %s150
      %s168 = sphi 0, %s168
      %s170 = sphi 0, %s168
      %s171 = sphi 0, %s170
      %s185 = sphi 0, %s171
      %s189 = sphi 0, %s189
      %s191 = sphi 0, %s189
      %s192 = sphi 0, %s191
      %s206 = sphi 0, %s192
      %s210 = sphi 0, %s210
      %s212 = sphi 0, %s210
      %s213 = sphi 0, %s212
      %s227 = sphi 0, %s213
      %s231 = sphi 0, %s231
      %s233 = sphi 0, %s231
      %s234 = sphi 0, %s233
      %s248 = sphi 0, %s234
      %s252 = sphi 0, %s252
      %s254 = sphi 0, %s252
      %s255 = sphi 0, %s254
      %s269 = sphi 0, %s255
      %s273 = sphi 0, %s273
      %s275 = sphi 0, %s273
      %s276 = sphi 0, %s275
      %s290 = sphi 0, %s276
      %s294 = sphi 0, %s294
      %s296 = sphi 0, %s294
      %s297 = sphi 0, %s296
      %s311 = sphi 0, %s297
      %s315 = sphi 0, %s315
      %s317 = sphi 0, %s315
      %s318 = sphi 0, %s317
      %s332 = sphi 0, %s318
      %s336 = sphi 0, %s336
      %s338 = sphi 0, %s336
      %s339 = sphi 0, %s338
      %s353 = sphi 0, %s339
      %s357 = sphi 0, %s357
      %s359 = sphi 0, %s357
      %s360 = sphi 0, %s359
      %s374 = sphi 0, %s360
      %s378 = sphi 0, %s378
      %s380 = sphi 0, %s378
      %s381 = sphi 0, %s380
      %s395 = sphi 0, %s381
      %s399 = sphi 0, %s399
      %s401 = sphi 0, %s399
      %s402 = sphi 0, %s401
      %s416 = sphi 0, %s402
      %s420 = sphi 0, %s420
      %s422 = sphi 0, %s420
      %s423 = sphi 0, %s422
      %s437 = sphi 0, %s423
      %s441 = sphi 0, %s441
      %s443 = sphi 0, %s441
      %s444 = sphi 0, %s443
      %s458 = sphi 0, %s444
      %s462 = sphi 0, %s462
      %s464 = sphi 0, %s462
      %s465 = sphi 0, %s464
      %s479 = sphi 0, %s465
      %s483 = sphi 0, %s483
      %s485 = sphi 0, %s483
      %s486 = sphi 0, %s485
      %s500 = sphi 0, %s486
      %s504 = sphi 0, %s504
      %s506 = sphi 0, %s504
      %s507 = sphi 0, %s506
      %s521 = sphi 0, %s507
      %s525 = sphi 0, %s525
      %s527 = sphi 0, %s525
      %s528 = sphi 0, %s527
      %s542 = sphi 0, %s528
      %s546 = sphi 0, %s546
      %s548 = sphi 0, %s546
      %s549 = sphi 0, %s548
      %s563 = sphi 0, %s549
      %s569 = sphi 0, %s571
      %s572 = sphi 0, %s569
      %s573 = sphi 0, %s572
      %s589 = sphi 0, %s573
      %s595 = sphi 0, %s597
      %s598 = sphi 0, %s595
      %s599 = sphi 0, %s598
      %s615 = sphi 0, %s599
    $region4: #{decoder_block.1} parent=1 // loop_header_branch
      %38 = sbr.rel (%p36) target = $region8
    $region5: #{decoder_block.1} parent=1 // loop_body
      %s40 = ssub.s32 %s35, 1
      %s41 = ssub.s32 %s35, 2
      %s42 = sadd.s32 %s35, 1
      %s43 = ssub.s32 %s35, %s42
      %p44 = scmp.eq.s32.totalorder %s43, 0
      %s46 = sadd.s32 %s45, 1
      %s47 = scalar_select %p44, %s45, %s46
      %p50 = pneg %p44
      %p51 = scmp.eq.s32.totalorder %s35, 1
      %p52 = por %p50, %p51
      %p53 = scmp.ne.s32.totalorder %s45, %s48
      %p54 = scmp.eq.s32.totalorder %s35, 0
      %p55 = por %p53, %p54
      %p56 = scmp.ne.s32.totalorder %s45, %s48
      %p57 = scmp.eq.s32.totalorder %s40, 1
      %p58 = por %p56, %p57
      %p59 = scmp.ne.s32.totalorder %s48, %s49
      %p60 = scmp.eq.s32.totalorder %s40, 0
      %p61 = por %p59, %p60
      %p62 = scmp.ne.s32.totalorder %s48, %s49
      %p63 = scmp.eq.s32.totalorder %s41, 1
      %p64 = por %p62, %p63
      %p66 = scmp.ne.s32.totalorder %s49, %s65
      %p67 = scmp.eq.s32.totalorder %s41, 0
      %p68 = por %p66, %p67
      %s69 = ssub.s32 %s35, %s42
      %p70 = scmp.eq.s32.totalorder %s69, 0
      %s72 = sadd.s32 %s71, 1
      %s73 = scalar_select %p70, %s71, %s72
      %p76 = pneg %p70
      %p77 = scmp.eq.s32.totalorder %s35, 1
      %p78 = por %p76, %p77
      %p79 = scmp.ne.s32.totalorder %s71, %s74
      %p80 = scmp.eq.s32.totalorder %s35, 0
      %p81 = por %p79, %p80
      %p82 = scmp.ne.s32.totalorder %s71, %s74
      %p83 = scmp.eq.s32.totalorder %s40, 1
      %p84 = por %p82, %p83
      %p85 = scmp.ne.s32.totalorder %s74, %s75
      %p86 = scmp.eq.s32.totalorder %s40, 0
      %p87 = por %p85, %p86
      %p88 = scmp.ne.s32.totalorder %s74, %s75
      %p89 = scmp.eq.s32.totalorder %s41, 1
      %p90 = por %p88, %p89
      %p92 = scmp.ne.s32.totalorder %s75, %s91
      %p93 = scmp.eq.s32.totalorder %s41, 0
      %p94 = por %p92, %p93
      %s95 = ssub.s32 %s35, %s42
      %p96 = scmp.eq.s32.totalorder %s95, 0
      %s98 = sadd.s32 %s97, 1
      %s99 = scalar_select %p96, %s97, %s98
      %p102 = pneg %p96
      %p103 = scmp.eq.s32.totalorder %s35, 1
      %p104 = por %p102, %p103
      %p105 = scmp.ne.s32.totalorder %s97, %s100
      %p106 = scmp.eq.s32.totalorder %s35, 0
      %p107 = por %p105, %p106
      %p108 = scmp.ne.s32.totalorder %s97, %s100
      %p109 = scmp.eq.s32.totalorder %s40, 1
      %p110 = por %p108, %p109
      %p111 = scmp.ne.s32.totalorder %s100, %s101
      %p112 = scmp.eq.s32.totalorder %s40, 0
      %p113 = por %p111, %p112
      %p114 = scmp.ne.s32.totalorder %s100, %s101
      %p115 = scmp.eq.s32.totalorder %s41, 1
      %p116 = por %p114, %p115
      %p118 = scmp.ne.s32.totalorder %s101, %s117
      %p119 = scmp.eq.s32.totalorder %s41, 0
      %p120 = por %p118, %p119
      %s121 = ssub.s32 %s35, %s42
      %p122 = scmp.eq.s32.totalorder %s121, 0
      %s124 = sadd.s32 %s123, 1
      %s125 = scalar_select %p122, %s123, %s124
      %p128 = pneg %p122
      %p129 = scmp.eq.s32.totalorder %s35, 1
      %p130 = por %p128, %p129
      %p131 = scmp.ne.s32.totalorder %s123, %s126
      %p132 = scmp.eq.s32.totalorder %s35, 0
      %p133 = por %p131, %p132
      %p134 = scmp.ne.s32.totalorder %s123, %s126
      %p135 = scmp.eq.s32.totalorder %s40, 1
      %p136 = por %p134, %p135
      %p137 = scmp.ne.s32.totalorder %s126, %s127
      %p138 = scmp.eq.s32.totalorder %s40, 0
      %p139 = por %p137, %p138
      %p140 = scmp.ne.s32.totalorder %s126, %s127
      %p141 = scmp.eq.s32.totalorder %s41, 1
      %p142 = por %p140, %p141
      %p144 = scmp.ne.s32.totalorder %s127, %s143
      %p145 = scmp.eq.s32.totalorder %s41, 0
      %p146 = por %p144, %p145
      %s148 = sadd.s32 %s147, 1
      %p151 = scmp.eq.s32.totalorder %s35, 1
      %p152 = scmp.ne.s32.totalorder %s147, %s149
      %p153 = scmp.eq.s32.totalorder %s35, 0
      %p154 = por %p152, %p153
      %p155 = scmp.ne.s32.totalorder %s147, %s149
      %p156 = scmp.eq.s32.totalorder %s40, 1
      %p157 = por %p155, %p156
      %p158 = scmp.ne.s32.totalorder %s149, %s150
      %p159 = scmp.eq.s32.totalorder %s40, 0
      %p160 = por %p158, %p159
      %p161 = scmp.ne.s32.totalorder %s149, %s150
      %p162 = scmp.eq.s32.totalorder %s41, 1
      %p163 = por %p161, %p162
      %p165 = scmp.ne.s32.totalorder %s150, %s164
      %p166 = scmp.eq.s32.totalorder %s41, 0
      %p167 = por %p165, %p166
      %s169 = sadd.s32 %s168, 1
      %p172 = scmp.eq.s32.totalorder %s35, 1
      %p173 = scmp.ne.s32.totalorder %s168, %s170
      %p174 = scmp.eq.s32.totalorder %s35, 0
      %p175 = por %p173, %p174
      %p176 = scmp.ne.s32.totalorder %s168, %s170
      %p177 = scmp.eq.s32.totalorder %s40, 1
      %p178 = por %p176, %p177
      %p179 = scmp.ne.s32.totalorder %s170, %s171
      %p180 = scmp.eq.s32.totalorder %s40, 0
      %p181 = por %p179, %p180
      %p182 = scmp.ne.s32.totalorder %s170, %s171
      %p183 = scmp.eq.s32.totalorder %s41, 1
      %p184 = por %p182, %p183
      %p186 = scmp.ne.s32.totalorder %s171, %s185
      %p187 = scmp.eq.s32.totalorder %s41, 0
      %p188 = por %p186, %p187
      %s190 = sadd.s32 %s189, 1
      %p193 = scmp.eq.s32.totalorder %s35, 1
      %p194 = scmp.ne.s32.totalorder %s189, %s191
      %p195 = scmp.eq.s32.totalorder %s35, 0
      %p196 = por %p194, %p195
      %p197 = scmp.ne.s32.totalorder %s189, %s191
      %p198 = scmp.eq.s32.totalorder %s40, 1
      %p199 = por %p197, %p198
      %p200 = scmp.ne.s32.totalorder %s191, %s192
      %p201 = scmp.eq.s32.totalorder %s40, 0
      %p202 = por %p200, %p201
      %p203 = scmp.ne.s32.totalorder %s191, %s192
      %p204 = scmp.eq.s32.totalorder %s41, 1
      %p205 = por %p203, %p204
      %p207 = scmp.ne.s32.totalorder %s192, %s206
      %p208 = scmp.eq.s32.totalorder %s41, 0
      %p209 = por %p207, %p208
      %s211 = sadd.s32 %s210, 1
      %p214 = scmp.eq.s32.totalorder %s35, 1
      %p215 = scmp.ne.s32.totalorder %s210, %s212
      %p216 = scmp.eq.s32.totalorder %s35, 0
      %p217 = por %p215, %p216
      %p218 = scmp.ne.s32.totalorder %s210, %s212
      %p219 = scmp.eq.s32.totalorder %s40, 1
      %p220 = por %p218, %p219
      %p221 = scmp.ne.s32.totalorder %s212, %s213
      %p222 = scmp.eq.s32.totalorder %s40, 0
      %p223 = por %p221, %p222
      %p224 = scmp.ne.s32.totalorder %s212, %s213
      %p225 = scmp.eq.s32.totalorder %s41, 1
      %p226 = por %p224, %p225
      %p228 = scmp.ne.s32.totalorder %s213, %s227
      %p229 = scmp.eq.s32.totalorder %s41, 0
      %p230 = por %p228, %p229
      %s232 = sadd.s32 %s231, 1
      %p235 = scmp.eq.s32.totalorder %s35, 1
      %p236 = scmp.ne.s32.totalorder %s231, %s233
      %p237 = scmp.eq.s32.totalorder %s35, 0
      %p238 = por %p236, %p237
      %p239 = scmp.ne.s32.totalorder %s231, %s233
      %p240 = scmp.eq.s32.totalorder %s40, 1
      %p241 = por %p239, %p240
      %p242 = scmp.ne.s32.totalorder %s233, %s234
      %p243 = scmp.eq.s32.totalorder %s40, 0
      %p244 = por %p242, %p243
      %p245 = scmp.ne.s32.totalorder %s233, %s234
      %p246 = scmp.eq.s32.totalorder %s41, 1
      %p247 = por %p245, %p246
      %p249 = scmp.ne.s32.totalorder %s234, %s248
      %p250 = scmp.eq.s32.totalorder %s41, 0
      %p251 = por %p249, %p250
      %s253 = sadd.s32 %s252, 1
      %p256 = scmp.eq.s32.totalorder %s35, 1
      %p257 = scmp.ne.s32.totalorder %s252, %s254
      %p258 = scmp.eq.s32.totalorder %s35, 0
      %p259 = por %p257, %p258
      %p260 = scmp.ne.s32.totalorder %s252, %s254
      %p261 = scmp.eq.s32.totalorder %s40, 1
      %p262 = por %p260, %p261
      %p263 = scmp.ne.s32.totalorder %s254, %s255
      %p264 = scmp.eq.s32.totalorder %s40, 0
      %p265 = por %p263, %p264
      %p266 = scmp.ne.s32.totalorder %s254, %s255
      %p267 = scmp.eq.s32.totalorder %s41, 1
      %p268 = por %p266, %p267
      %p270 = scmp.ne.s32.totalorder %s255, %s269
      %p271 = scmp.eq.s32.totalorder %s41, 0
      %p272 = por %p270, %p271
      %s274 = sadd.s32 %s273, 1
      %p277 = scmp.eq.s32.totalorder %s35, 1
      %p278 = scmp.ne.s32.totalorder %s273, %s275
      %p279 = scmp.eq.s32.totalorder %s35, 0
      %p280 = por %p278, %p279
      %p281 = scmp.ne.s32.totalorder %s273, %s275
      %p282 = scmp.eq.s32.totalorder %s40, 1
      %p283 = por %p281, %p282
      %p284 = scmp.ne.s32.totalorder %s275, %s276
      %p285 = scmp.eq.s32.totalorder %s40, 0
      %p286 = por %p284, %p285
      %p287 = scmp.ne.s32.totalorder %s275, %s276
      %p288 = scmp.eq.s32.totalorder %s41, 1
      %p289 = por %p287, %p288
      %p291 = scmp.ne.s32.totalorder %s276, %s290
      %p292 = scmp.eq.s32.totalorder %s41, 0
      %p293 = por %p291, %p292
      %s295 = sadd.s32 %s294, 1
      %p298 = scmp.eq.s32.totalorder %s35, 1
      %p299 = scmp.ne.s32.totalorder %s294, %s296
      %p300 = scmp.eq.s32.totalorder %s35, 0
      %p301 = por %p299, %p300
      %p302 = scmp.ne.s32.totalorder %s294, %s296
      %p303 = scmp.eq.s32.totalorder %s40, 1
      %p304 = por %p302, %p303
      %p305 = scmp.ne.s32.totalorder %s296, %s297
      %p306 = scmp.eq.s32.totalorder %s40, 0
      %p307 = por %p305, %p306
      %p308 = scmp.ne.s32.totalorder %s296, %s297
      %p309 = scmp.eq.s32.totalorder %s41, 1
      %p310 = por %p308, %p309
      %p312 = scmp.ne.s32.totalorder %s297, %s311
      %p313 = scmp.eq.s32.totalorder %s41, 0
      %p314 = por %p312, %p313
      %s316 = sadd.s32 %s315, 1
      %p319 = scmp.eq.s32.totalorder %s35, 1
      %p320 = scmp.ne.s32.totalorder %s315, %s317
      %p321 = scmp.eq.s32.totalorder %s35, 0
      %p322 = por %p320, %p321
      %p323 = scmp.ne.s32.totalorder %s315, %s317
      %p324 = scmp.eq.s32.totalorder %s40, 1
      %p325 = por %p323, %p324
      %p326 = scmp.ne.s32.totalorder %s317, %s318
      %p327 = scmp.eq.s32.totalorder %s40, 0
      %p328 = por %p326, %p327
      %p329 = scmp.ne.s32.totalorder %s317, %s318
      %p330 = scmp.eq.s32.totalorder %s41, 1
      %p331 = por %p329, %p330
      %p333 = scmp.ne.s32.totalorder %s318, %s332
      %p334 = scmp.eq.s32.totalorder %s41, 0
      %p335 = por %p333, %p334
      %s337 = sadd.s32 %s336, 1
      %p340 = scmp.eq.s32.totalorder %s35, 1
      %p341 = scmp.ne.s32.totalorder %s336, %s338
      %p342 = scmp.eq.s32.totalorder %s35, 0
      %p343 = por %p341, %p342
      %p344 = scmp.ne.s32.totalorder %s336, %s338
      %p345 = scmp.eq.s32.totalorder %s40, 1
      %p346 = por %p344, %p345
      %p347 = scmp.ne.s32.totalorder %s338, %s339
      %p348 = scmp.eq.s32.totalorder %s40, 0
      %p349 = por %p347, %p348
      %p350 = scmp.ne.s32.totalorder %s338, %s339
      %p351 = scmp.eq.s32.totalorder %s41, 1
      %p352 = por %p350, %p351
      %p354 = scmp.ne.s32.totalorder %s339, %s353
      %p355 = scmp.eq.s32.totalorder %s41, 0
      %p356 = por %p354, %p355
      %s358 = sadd.s32 %s357, 1
      %p361 = scmp.eq.s32.totalorder %s35, 1
      %p362 = scmp.ne.s32.totalorder %s357, %s359
      %p363 = scmp.eq.s32.totalorder %s35, 0
      %p364 = por %p362, %p363
      %p365 = scmp.ne.s32.totalorder %s357, %s359
      %p366 = scmp.eq.s32.totalorder %s40, 1
      %p367 = por %p365, %p366
      %p368 = scmp.ne.s32.totalorder %s359, %s360
      %p369 = scmp.eq.s32.totalorder %s40, 0
      %p370 = por %p368, %p369
      %p371 = scmp.ne.s32.totalorder %s359, %s360
      %p372 = scmp.eq.s32.totalorder %s41, 1
      %p373 = por %p371, %p372
      %p375 = scmp.ne.s32.totalorder %s360, %s374
      %p376 = scmp.eq.s32.totalorder %s41, 0
      %p377 = por %p375, %p376
      %s379 = sadd.s32 %s378, 1
      %p382 = scmp.eq.s32.totalorder %s35, 1
      %p383 = scmp.ne.s32.totalorder %s378, %s380
      %p384 = scmp.eq.s32.totalorder %s35, 0
      %p385 = por %p383, %p384
      %p386 = scmp.ne.s32.totalorder %s378, %s380
      %p387 = scmp.eq.s32.totalorder %s40, 1
      %p388 = por %p386, %p387
      %p389 = scmp.ne.s32.totalorder %s380, %s381
      %p390 = scmp.eq.s32.totalorder %s40, 0
      %p391 = por %p389, %p390
      %p392 = scmp.ne.s32.totalorder %s380, %s381
      %p393 = scmp.eq.s32.totalorder %s41, 1
      %p394 = por %p392, %p393
      %p396 = scmp.ne.s32.totalorder %s381, %s395
      %p397 = scmp.eq.s32.totalorder %s41, 0
      %p398 = por %p396, %p397
      %s400 = sadd.s32 %s399, 1
      %p403 = scmp.eq.s32.totalorder %s35, 1
      %p404 = scmp.ne.s32.totalorder %s399, %s401
      %p405 = scmp.eq.s32.totalorder %s35, 0
      %p406 = por %p404, %p405
      %p407 = scmp.ne.s32.totalorder %s399, %s401
      %p408 = scmp.eq.s32.totalorder %s40, 1
      %p409 = por %p407, %p408
      %p410 = scmp.ne.s32.totalorder %s401, %s402
      %p411 = scmp.eq.s32.totalorder %s40, 0
      %p412 = por %p410, %p411
      %p413 = scmp.ne.s32.totalorder %s401, %s402
      %p414 = scmp.eq.s32.totalorder %s41, 1
      %p415 = por %p413, %p414
      %p417 = scmp.ne.s32.totalorder %s402, %s416
      %p418 = scmp.eq.s32.totalorder %s41, 0
      %p419 = por %p417, %p418
      %s421 = sadd.s32 %s420, 1
      %p424 = scmp.eq.s32.totalorder %s35, 1
      %p425 = scmp.ne.s32.totalorder %s420, %s422
      %p426 = scmp.eq.s32.totalorder %s35, 0
      %p427 = por %p425, %p426
      %p428 = scmp.ne.s32.totalorder %s420, %s422
      %p429 = scmp.eq.s32.totalorder %s40, 1
      %p430 = por %p428, %p429
      %p431 = scmp.ne.s32.totalorder %s422, %s423
      %p432 = scmp.eq.s32.totalorder %s40, 0
      %p433 = por %p431, %p432
      %p434 = scmp.ne.s32.totalorder %s422, %s423
      %p435 = scmp.eq.s32.totalorder %s41, 1
      %p436 = por %p434, %p435
      %p438 = scmp.ne.s32.totalorder %s423, %s437
      %p439 = scmp.eq.s32.totalorder %s41, 0
      %p440 = por %p438, %p439
      %s442 = sadd.s32 %s441, 1
      %p445 = scmp.eq.s32.totalorder %s35, 1
      %p446 = scmp.ne.s32.totalorder %s441, %s443
      %p447 = scmp.eq.s32.totalorder %s35, 0
      %p448 = por %p446, %p447
      %p449 = scmp.ne.s32.totalorder %s441, %s443
      %p450 = scmp.eq.s32.totalorder %s40, 1
      %p451 = por %p449, %p450
      %p452 = scmp.ne.s32.totalorder %s443, %s444
      %p453 = scmp.eq.s32.totalorder %s40, 0
      %p454 = por %p452, %p453
      %p455 = scmp.ne.s32.totalorder %s443, %s444
      %p456 = scmp.eq.s32.totalorder %s41, 1
      %p457 = por %p455, %p456
      %p459 = scmp.ne.s32.totalorder %s444, %s458
      %p460 = scmp.eq.s32.totalorder %s41, 0
      %p461 = por %p459, %p460
      %s463 = sadd.s32 %s462, 1
      %p466 = scmp.eq.s32.totalorder %s35, 1
      %p467 = scmp.ne.s32.totalorder %s462, %s464
      %p468 = scmp.eq.s32.totalorder %s35, 0
      %p469 = por %p467, %p468
      %p470 = scmp.ne.s32.totalorder %s462, %s464
      %p471 = scmp.eq.s32.totalorder %s40, 1
      %p472 = por %p470, %p471
      %p473 = scmp.ne.s32.totalorder %s464, %s465
      %p474 = scmp.eq.s32.totalorder %s40, 0
      %p475 = por %p473, %p474
      %p476 = scmp.ne.s32.totalorder %s464, %s465
      %p477 = scmp.eq.s32.totalorder %s41, 1
      %p478 = por %p476, %p477
      %p480 = scmp.ne.s32.totalorder %s465, %s479
      %p481 = scmp.eq.s32.totalorder %s41, 0
      %p482 = por %p480, %p481
      %s484 = sadd.s32 %s483, 1
      %p487 = scmp.eq.s32.totalorder %s35, 1
      %p488 = scmp.ne.s32.totalorder %s483, %s485
      %p489 = scmp.eq.s32.totalorder %s35, 0
      %p490 = por %p488, %p489
      %p491 = scmp.ne.s32.totalorder %s483, %s485
      %p492 = scmp.eq.s32.totalorder %s40, 1
      %p493 = por %p491, %p492
      %p494 = scmp.ne.s32.totalorder %s485, %s486
      %p495 = scmp.eq.s32.totalorder %s40, 0
      %p496 = por %p494, %p495
      %p497 = scmp.ne.s32.totalorder %s485, %s486
      %p498 = scmp.eq.s32.totalorder %s41, 1
      %p499 = por %p497, %p498
      %p501 = scmp.ne.s32.totalorder %s486, %s500
      %p502 = scmp.eq.s32.totalorder %s41, 0
      %p503 = por %p501, %p502
      %s505 = sadd.s32 %s504, 1
      %p508 = scmp.eq.s32.totalorder %s35, 1
      %p509 = scmp.ne.s32.totalorder %s504, %s506
      %p510 = scmp.eq.s32.totalorder %s35, 0
      %p511 = por %p509, %p510
      %p512 = scmp.ne.s32.totalorder %s504, %s506
      %p513 = scmp.eq.s32.totalorder %s40, 1
      %p514 = por %p512, %p513
      %p515 = scmp.ne.s32.totalorder %s506, %s507
      %p516 = scmp.eq.s32.totalorder %s40, 0
      %p517 = por %p515, %p516
      %p518 = scmp.ne.s32.totalorder %s506, %s507
      %p519 = scmp.eq.s32.totalorder %s41, 1
      %p520 = por %p518, %p519
      %p522 = scmp.ne.s32.totalorder %s507, %s521
      %p523 = scmp.eq.s32.totalorder %s41, 0
      %p524 = por %p522, %p523
      %s526 = sadd.s32 %s525, 1
      %p529 = scmp.eq.s32.totalorder %s35, 1
      %p530 = scmp.ne.s32.totalorder %s525, %s527
      %p531 = scmp.eq.s32.totalorder %s35, 0
      %p532 = por %p530, %p531
      %p533 = scmp.ne.s32.totalorder %s525, %s527
      %p534 = scmp.eq.s32.totalorder %s40, 1
      %p535 = por %p533, %p534
      %p536 = scmp.ne.s32.totalorder %s527, %s528
      %p537 = scmp.eq.s32.totalorder %s40, 0
      %p538 = por %p536, %p537
      %p539 = scmp.ne.s32.totalorder %s527, %s528
      %p540 = scmp.eq.s32.totalorder %s41, 1
      %p541 = por %p539, %p540
      %p543 = scmp.ne.s32.totalorder %s528, %s542
      %p544 = scmp.eq.s32.totalorder %s41, 0
      %p545 = por %p543, %p544
      %s547 = sadd.s32 %s546, 1
      %p550 = scmp.eq.s32.totalorder %s35, 1
      %p551 = scmp.ne.s32.totalorder %s546, %s548
      %p552 = scmp.eq.s32.totalorder %s35, 0
      %p553 = por %p551, %p552
      %p554 = scmp.ne.s32.totalorder %s546, %s548
      %p555 = scmp.eq.s32.totalorder %s40, 1
      %p556 = por %p554, %p555
      %p557 = scmp.ne.s32.totalorder %s548, %s549
      %p558 = scmp.eq.s32.totalorder %s40, 0
      %p559 = por %p557, %p558
      %p560 = scmp.ne.s32.totalorder %s548, %s549
      %p561 = scmp.eq.s32.totalorder %s41, 1
      %p562 = por %p560, %p561
      %p564 = scmp.ne.s32.totalorder %s549, %s563
      %p565 = scmp.eq.s32.totalorder %s41, 0
      %p566 = por %p564, %p565
      %s567 = ssub.s32 %s35, %s42
      %p568 = scmp.eq.s32.totalorder %s567, 0
      %s570 = sadd.s32 %s569, 1
      %s571 = scalar_select %p568, %s569, %s570
      %p574 = pneg %p568
      %p575 = scmp.eq.s32.totalorder %s35, 1
      %p576 = por %p574, %p575
      %p577 = scmp.ne.s32.totalorder %s569, %s572
      %p578 = scmp.eq.s32.totalorder %s35, 0
      %p579 = por %p577, %p578
      %p580 = scmp.ne.s32.totalorder %s569, %s572
      %p581 = scmp.eq.s32.totalorder %s40, 1
      %p582 = por %p580, %p581
      %p583 = scmp.ne.s32.totalorder %s572, %s573
      %p584 = scmp.eq.s32.totalorder %s40, 0
      %p585 = por %p583, %p584
      %p586 = scmp.ne.s32.totalorder %s572, %s573
      %p587 = scmp.eq.s32.totalorder %s41, 1
      %p588 = por %p586, %p587
      %p590 = scmp.ne.s32.totalorder %s573, %s589
      %p591 = scmp.eq.s32.totalorder %s41, 0
      %p592 = por %p590, %p591
      %s593 = ssub.s32 %s35, %s42
      %p594 = scmp.eq.s32.totalorder %s593, 0
      %s596 = sadd.s32 %s595, 1
      %s597 = scalar_select %p594, %s595, %s596
      %p600 = pneg %p594
      %p601 = scmp.eq.s32.totalorder %s35, 1
      %p602 = por %p600, %p601
      %p603 = scmp.ne.s32.totalorder %s595, %s598
      %p604 = scmp.eq.s32.totalorder %s35, 0
      %p605 = por %p603, %p604
      %p606 = scmp.ne.s32.totalorder %s595, %s598
      %p607 = scmp.eq.s32.totalorder %s40, 1
      %p608 = por %p606, %p607
      %p609 = scmp.ne.s32.totalorder %s598, %s599
      %p610 = scmp.eq.s32.totalorder %s40, 0
      %p611 = por %p609, %p610
      %p612 = scmp.ne.s32.totalorder %s598, %s599
      %p613 = scmp.eq.s32.totalorder %s41, 1
      %p614 = por %p612, %p613
      %p616 = scmp.ne.s32.totalorder %s599, %s615
      %p617 = scmp.eq.s32.totalorder %s41, 0
      %p618 = por %p616, %p617
      %p619 = scmp.le.s32.totalorder 1, %s35
      %p620 = scmp.lt.s32.totalorder %s35, 3
      %p621 = pnand %p619, %p620
      %p622 = pneg %p621
      // Predicated region
      $region9: #{decoder_block.1} parent=5 // pred_check
        _
      $region10: #{decoder_block.1} parent=5 // pred_check_branch
        %624 = sbr.rel (%p621) target = $region12
      $region11: #{decoder_block.1} parent=5 // pred_region
        %s625 = ssub.s32 %s35, 1
        // Predicated region
        $region13: #{decoder_block.1} parent=11 // pred_check
          %p626 = pneg %p160
        $region14: #{decoder_block.1} parent=11 // pred_check_branch
          %628 = sbr.rel (%p626) target = $region16
        $region15: #{decoder_block.1} parent=11 // pred_region
          _
        $region16: #{decoder_block.1} parent=11 // pred_fallthru
          _
        // Predicated region
        $region17: #{decoder_block.1} parent=11 // pred_check
          %p629 = pneg %p181
        $region18: #{decoder_block.1} parent=11 // pred_check_branch
          %631 = sbr.rel (%p629) target = $region20
        $region19: #{decoder_block.1} parent=11 // pred_region
          _
        $region20: #{decoder_block.1} parent=11 // pred_fallthru
          _
        // Predicated region
        $region21: #{decoder_block.1} parent=11 // pred_check
          %p632 = pneg %p202
        $region22: #{decoder_block.1} parent=11 // pred_check_branch
          %634 = sbr.rel (%p632) target = $region24
        $region23: #{decoder_block.1} parent=11 // pred_region
          _
        $region24: #{decoder_block.1} parent=11 // pred_fallthru
          _
        // Predicated region
        $region25: #{decoder_block.1} parent=11 // pred_check
          %p635 = pneg %p223
        $region26: #{decoder_block.1} parent=11 // pred_check_branch
          %637 = sbr.rel (%p635) target = $region28
        $region27: #{decoder_block.1} parent=11 // pred_region
          _
        $region28: #{decoder_block.1} parent=11 // pred_fallthru
          _
        // Predicated region
        $region29: #{decoder_block.1} parent=11 // pred_check
          %p638 = pneg %p244
        $region30: #{decoder_block.1} parent=11 // pred_check_branch
          %640 = sbr.rel (%p638) target = $region32
        $region31: #{decoder_block.1} parent=11 // pred_region
          _
        $region32: #{decoder_block.1} parent=11 // pred_fallthru
          _
        // Predicated region
        $region33: #{decoder_block.1} parent=11 // pred_check
          %p641 = pneg %p265
        $region34: #{decoder_block.1} parent=11 // pred_check_branch
          %643 = sbr.rel (%p641) target = $region36
        $region35: #{decoder_block.1} parent=11 // pred_region
          _
        $region36: #{decoder_block.1} parent=11 // pred_fallthru
          _
        // Predicated region
        $region37: #{decoder_block.1} parent=11 // pred_check
          %p644 = pneg %p286
        $region38: #{decoder_block.1} parent=11 // pred_check_branch
          %646 = sbr.rel (%p644) target = $region40
        $region39: #{decoder_block.1} parent=11 // pred_region
          _
        $region40: #{decoder_block.1} parent=11 // pred_fallthru
          _
        // Predicated region
        $region41: #{decoder_block.1} parent=11 // pred_check
          %p647 = pneg %p307
        $region42: #{decoder_block.1} parent=11 // pred_check_branch
          %649 = sbr.rel (%p647) target = $region44
        $region43: #{decoder_block.1} parent=11 // pred_region
          _
        $region44: #{decoder_block.1} parent=11 // pred_fallthru
          _
        // Predicated region
        $region45: #{decoder_block.1} parent=11 // pred_check
          %p650 = pneg %p328
        $region46: #{decoder_block.1} parent=11 // pred_check_branch
          %652 = sbr.rel (%p650) target = $region48
        $region47: #{decoder_block.1} parent=11 // pred_region
          _
        $region48: #{decoder_block.1} parent=11 // pred_fallthru
          _
        // Predicated region
        $region49: #{decoder_block.1} parent=11 // pred_check
          %p653 = pneg %p349
        $region50: #{decoder_block.1} parent=11 // pred_check_branch
          %655 = sbr.rel (%p653) target = $region52
        $region51: #{decoder_block.1} parent=11 // pred_region
          _
        $region52: #{decoder_block.1} parent=11 // pred_fallthru
          _
        // Predicated region
        $region53: #{decoder_block.1} parent=11 // pred_check
          %p656 = pneg %p370
        $region54: #{decoder_block.1} parent=11 // pred_check_branch
          %658 = sbr.rel (%p656) target = $region56
        $region55: #{decoder_block.1} parent=11 // pred_region
          _
        $region56: #{decoder_block.1} parent=11 // pred_fallthru
          _
        // Predicated region
        $region57: #{decoder_block.1} parent=11 // pred_check
          %p659 = pneg %p391
        $region58: #{decoder_block.1} parent=11 // pred_check_branch
          %661 = sbr.rel (%p659) target = $region60
        $region59: #{decoder_block.1} parent=11 // pred_region
          _
        $region60: #{decoder_block.1} parent=11 // pred_fallthru
          _
        // Predicated region
        $region61: #{decoder_block.1} parent=11 // pred_check
          %p662 = pneg %p412
        $region62: #{decoder_block.1} parent=11 // pred_check_branch
          %664 = sbr.rel (%p662) target = $region64
        $region63: #{decoder_block.1} parent=11 // pred_region
          _
        $region64: #{decoder_block.1} parent=11 // pred_fallthru
          _
        // Predicated region
        $region65: #{decoder_block.1} parent=11 // pred_check
          %p665 = pneg %p433
        $region66: #{decoder_block.1} parent=11 // pred_check_branch
          %667 = sbr.rel (%p665) target = $region68
        $region67: #{decoder_block.1} parent=11 // pred_region
          _
        $region68: #{decoder_block.1} parent=11 // pred_fallthru
          _
        // Predicated region
        $region69: #{decoder_block.1} parent=11 // pred_check
          %p668 = pneg %p454
        $region70: #{decoder_block.1} parent=11 // pred_check_branch
          %670 = sbr.rel (%p668) target = $region72
        $region71: #{decoder_block.1} parent=11 // pred_region
          _
        $region72: #{decoder_block.1} parent=11 // pred_fallthru
          _
        // Predicated region
        $region73: #{decoder_block.1} parent=11 // pred_check
          %p671 = pneg %p475
        $region74: #{decoder_block.1} parent=11 // pred_check_branch
          %673 = sbr.rel (%p671) target = $region76
        $region75: #{decoder_block.1} parent=11 // pred_region
          _
        $region76: #{decoder_block.1} parent=11 // pred_fallthru
          _
        // Predicated region
        $region77: #{decoder_block.1} parent=11 // pred_check
          %p674 = pneg %p496
        $region78: #{decoder_block.1} parent=11 // pred_check_branch
          %676 = sbr.rel (%p674) target = $region80
        $region79: #{decoder_block.1} parent=11 // pred_region
          _
        $region80: #{decoder_block.1} parent=11 // pred_fallthru
          _
        // Predicated region
        $region81: #{decoder_block.1} parent=11 // pred_check
          %p677 = pneg %p517
        $region82: #{decoder_block.1} parent=11 // pred_check_branch
          %679 = sbr.rel (%p677) target = $region84
        $region83: #{decoder_block.1} parent=11 // pred_region
          _
        $region84: #{decoder_block.1} parent=11 // pred_fallthru
          _
        // Predicated region
        $region85: #{decoder_block.1} parent=11 // pred_check
          %p680 = pneg %p538
        $region86: #{decoder_block.1} parent=11 // pred_check_branch
          %682 = sbr.rel (%p680) target = $region88
        $region87: #{decoder_block.1} parent=11 // pred_region
          _
        $region88: #{decoder_block.1} parent=11 // pred_fallthru
          _
        // Predicated region
        $region89: #{decoder_block.1} parent=11 // pred_check
          %p683 = pneg %p559
        $region90: #{decoder_block.1} parent=11 // pred_check_branch
          %685 = sbr.rel (%p683) target = $region92
        $region91: #{decoder_block.1} parent=11 // pred_region
          _
        $region92: #{decoder_block.1} parent=11 // pred_fallthru
          _
      $region12: #{decoder_block.1} parent=5 // pred_fallthru
        _
      %p686 = scmp.lt.s32.totalorder %s35, 2
      // Predicated region
      $region93: #{decoder_block.1} parent=5 // pred_check
        %p687 = pneg %p686
      $region94: #{decoder_block.1} parent=5 // pred_check_branch
        %689 = sbr.rel (%p687) target = $region96
      $region95: #{decoder_block.1} parent=5 // pred_region
        // Predicated region
        $region97: #{decoder_block.1} parent=95 // pred_check
          %p690 = pneg %p55
        $region98: #{decoder_block.1} parent=95 // pred_check_branch
          %692 = sbr.rel (%p690) target = $region100
        $region99: #{decoder_block.1} parent=95 // pred_region
          %p693 = scmp.lt.s32.totalorder %s35, 1
          %s694 = scalar_select %p693, %s35, 1
          %s695 = smul.addr %s694, 8
          %s696 = scalar_lea.vmem %s0, %s695
        $region100: #{decoder_block.1} parent=95 // pred_fallthru
          _
        // Predicated region
        $region101: #{decoder_block.1} parent=95 // pred_check
          %p697 = pneg %p81
        $region102: #{decoder_block.1} parent=95 // pred_check_branch
          %699 = sbr.rel (%p697) target = $region104
        $region103: #{decoder_block.1} parent=95 // pred_region
          %p700 = scmp.lt.s32.totalorder %s35, 1
          %s701 = scalar_select %p700, %s35, 1
          %s702 = smul.addr %s701, 2
          %s703 = smul.addr %s702, 8
          %s704 = scalar_lea.vmem %s1, %s703
        $region104: #{decoder_block.1} parent=95 // pred_fallthru
          _
        // Predicated region
        $region105: #{decoder_block.1} parent=95 // pred_check
          %p705 = pneg %p107
        $region106: #{decoder_block.1} parent=95 // pred_check_branch
          %707 = sbr.rel (%p705) target = $region108
        $region107: #{decoder_block.1} parent=95 // pred_region
          %p708 = scmp.lt.s32.totalorder %s35, 1
          %s709 = scalar_select %p708, %s35, 1
          %s710 = smul.addr %s709, 4
          %s711 = scalar_lea.vmem %s2, %s710
        $region108: #{decoder_block.1} parent=95 // pred_fallthru
          _
        // Predicated region
        $region109: #{decoder_block.1} parent=95 // pred_check
          %p712 = pneg %p133
        $region110: #{decoder_block.1} parent=95 // pred_check_branch
          %714 = sbr.rel (%p712) target = $region112
        $region111: #{decoder_block.1} parent=95 // pred_region
          %p715 = scmp.lt.s32.totalorder %s35, 1
          %s716 = scalar_select %p715, %s35, 1
          %s717 = smul.addr %s716, 4
          %s718 = scalar_lea.vmem %s3, %s717
        $region112: #{decoder_block.1} parent=95 // pred_fallthru
          _
      $region96: #{decoder_block.1} parent=5 // pred_fallthru
        _
      %p719 = scmp.le.s32.totalorder 1, %s35
      %p720 = scmp.lt.s32.totalorder %s35, 3
      %p721 = pnand %p719, %p720
      %p722 = pneg %p721
      // Predicated region
      $region113: #{decoder_block.1} parent=5 // pred_check
        _
      $region114: #{decoder_block.1} parent=5 // pred_check_branch
        %724 = sbr.rel (%p721) target = $region116
      $region115: #{decoder_block.1} parent=5 // pred_region
        %s725 = ssub.s32 %s35, 1
        %p726 = scmp.lt.s32.totalorder %s40, 1
        %s727 = scalar_select %p726, %s40, 1
        %s728 = smul.addr %s727, 8
        %s729 = scalar_lea.vmem %s0, %s728
        %p730 = pneg %p61
        %p731 = pneg %p58
        %p732 = scmp.lt.s32.totalorder %s40, 1
        %s733 = scalar_select %p732, %s40, 1
        %s734 = smul.addr %s733, 2
        %s735 = smul.addr %s734, 8
        %s736 = scalar_lea.vmem %s1, %s735
        %p737 = pneg %p87
        %p738 = pneg %p84
        %p739 = scmp.lt.s32.totalorder %s40, 1
        %s740 = scalar_select %p739, %s40, 1
        %s741 = smul.addr %s740, 4
        %s742 = scalar_lea.vmem %s2, %s741
        %p743 = pneg %p113
        %p744 = pneg %p110
        %p745 = scmp.lt.s32.totalorder %s40, 1
        %s746 = scalar_select %p745, %s40, 1
        %s747 = smul.addr %s746, 4
        %s748 = scalar_lea.vmem %s3, %s747
        %p749 = pneg %p139
        %p750 = pneg %p136
        %p751 = pneg %p160
        %p752 = pneg %p157
        %p753 = pneg %p181
        %p754 = pneg %p178
        %p755 = pneg %p202
        %p756 = pneg %p199
        %p757 = pneg %p223
        %p758 = pneg %p220
        %p759 = pneg %p244
        %p760 = pneg %p241
        %p761 = pneg %p265
        %p762 = pneg %p262
        %p763 = pneg %p286
        %p764 = pneg %p283
        %p765 = pneg %p307
        %p766 = pneg %p304
        %p767 = pneg %p328
        %p768 = pneg %p325
        %p769 = pneg %p349
        %p770 = pneg %p346
        %p771 = pneg %p370
        %p772 = pneg %p367
        %p773 = pneg %p391
        %p774 = pneg %p388
        %p775 = pneg %p412
        %p776 = pneg %p409
        %p777 = pneg %p433
        %p778 = pneg %p430
        %p779 = pneg %p454
        %p780 = pneg %p451
        %p781 = pneg %p475
        %p782 = pneg %p472
        %p783 = pneg %p496
        %p784 = pneg %p493
        %p785 = pneg %p517
        %p786 = pneg %p514
        %p787 = pneg %p538
        %p788 = pneg %p535
        %p789 = pneg %p559
        %p790 = pneg %p556
        %p791 = pneg %p585
        %p792 = pneg %p582
        %s793 = sand.u32 %s572, 1
        %s794 = scalar_lea.sflag [#allocation3], %s793
        %s795 = sand.u32 %s572, 1
        %s796 = smul.addr %s795, 8
        %s797 = scalar_lea.vmem [#allocation2], %s796
        %p798 = pneg %p611
        %p799 = pneg %p608
        %p800 = scmp.lt.s32.totalorder %s40, 1
        %s801 = scalar_select %p800, %s40, 1
        %s802 = smul.addr %s801, 8
        %s803 = scalar_lea.vmem %s25, %s802
        %p804 = scmp.lt.s32.totalorder %s40, 1
        %s805 = scalar_select %p804, %s40, 1
        %s806 = smul.addr %s805, 8
        %s807 = scalar_lea.vmem %s0, %s806
        %p808 = scmp.lt.s32.totalorder %s40, 1
        %s809 = scalar_select %p808, %s40, 1
        %s810 = smul.addr %s809, 2
        %s811 = smul.addr %s810, 8
        %s812 = scalar_lea.vmem %s1, %s811
        %p813 = scmp.lt.s32.totalorder %s40, 1
        %s814 = scalar_select %p813, %s40, 1
        %s815 = smul.addr %s814, 4
        %s816 = scalar_lea.vmem %s2, %s815
        %p817 = scmp.lt.s32.totalorder %s40, 1
        %s818 = scalar_select %p817, %s40, 1
        %s819 = smul.addr %s818, 4
        %s820 = scalar_lea.vmem %s3, %s819
        %p821 = scmp.lt.s32.totalorder %s40, 1
        %s822 = scalar_select %p821, %s40, 1
        %s823 = smul.addr %s822, 8
        %s824 = scalar_lea.vmem %s25, %s823
        %v825 = vld [vmem:[%s4] sm:$0xff]
        %v826 = vld [vmem:[%s4 + $0x8] sm:$0xff]
        %v827 = vld [vmem:[%s4 + $0x10] sm:$0xff]
        %v828 = vld [vmem:[%s4 + $0x18] sm:$0xff]
        %v829 = vld [vmem:[%s4 + $0x20] sm:$0xff]
        %v830 = vld [vmem:[%s4 + $0x28] sm:$0xff]
        %v831 = vld [vmem:[%s4 + $0x30] sm:$0xff]
        %v832 = vld [vmem:[%s4 + $0x38] sm:$0xff]
        %v833 = vld [vmem:[%s4 + $0x40] sm:$0xff]
        %v834 = vld [vmem:[%s4 + $0x48] sm:$0xff]
        %v835 = vld [vmem:[%s4 + $0x50] sm:$0xff]
        %v836 = vld [vmem:[%s4 + $0x58] sm:$0xff]
        %v837 = vld [vmem:[%s4 + $0x60] sm:$0xff]
        %v838 = vld [vmem:[%s4 + $0x68] sm:$0xff]
        %v839 = vld [vmem:[%s4 + $0x70] sm:$0xff]
        %v840 = vld [vmem:[%s4 + $0x78] sm:$0xff]
        %v841 = vld [vmem:[%s4 + $0x80] sm:$0xff]
        %v842 = vld [vmem:[%s4 + $0x88] sm:$0xff]
        %v843 = vld [vmem:[%s4 + $0x90] sm:$0xff]
        %v844 = vld [vmem:[%s4 + $0x98] sm:$0xff]
        %v845 = vld [vmem:[%s4 + $0xa0] sm:$0xff]
        %v846 = vld [vmem:[%s4 + $0xa8] sm:$0xff]
        %v847 = vld [vmem:[%s4 + $0xb0] sm:$0xff]
        %v848 = vld [vmem:[%s4 + $0xb8] sm:$0xff]
        %v849 = vld [vmem:[%s4 + $0xc0] sm:$0xff]
        %v850 = vld [vmem:[%s4 + $0xc8] sm:$0xff]
        %v851 = vld [vmem:[%s4 + $0xd0] sm:$0xff]
        %v852 = vld [vmem:[%s4 + $0xd8] sm:$0xff]
        %v853 = vld [vmem:[%s4 + $0xe0] sm:$0xff]
        %v854 = vld [vmem:[%s4 + $0xe8] sm:$0xff]
        %v855 = vld [vmem:[%s4 + $0xf0] sm:$0xff]
        %v856 = vld [vmem:[%s4 + $0xf8] sm:$0xff]
        %v857 = vld [vmem:[%s4 + $0x100] sm:$0xff]
        %v858 = vld [vmem:[%s4 + $0x108] sm:$0xff]
        %v859 = vld [vmem:[%s4 + $0x110] sm:$0xff]
        %v860 = vld [vmem:[%s4 + $0x118] sm:$0xff]
        %v861 = vld [vmem:[%s4 + $0x120] sm:$0xff]
        %v862 = vld [vmem:[%s4 + $0x128] sm:$0xff]
        %v863 = vld [vmem:[%s4 + $0x130] sm:$0xff]
        %v864 = vld [vmem:[%s4 + $0x138] sm:$0xff]
        %v865 = vld [vmem:[%s4 + $0x140] sm:$0xff]
        %v866 = vld [vmem:[%s4 + $0x148] sm:$0xff]
        %v867 = vld [vmem:[%s4 + $0x150] sm:$0xff]
        %v868 = vld [vmem:[%s4 + $0x158] sm:$0xff]
        %v869 = vld [vmem:[%s4 + $0x160] sm:$0xff]
        %v870 = vld [vmem:[%s4 + $0x168] sm:$0xff]
        %v871 = vld [vmem:[%s4 + $0x170] sm:$0xff]
        %v872 = vld [vmem:[%s4 + $0x178] sm:$0xff]
        %v873 = vld [vmem:[%s5] sm:$0xff]
        %v874 = vld [vmem:[%s5 + $0x8] sm:$0xf]
        %v875 = vld [vmem:[%s6] sm:$0xff]
        %v876 = vld [vmem:[%s6 + $0x8] sm:$0xff]
        %v877 = vld [vmem:[%s6 + $0x10] sm:$0xff]
        %v878 = vld [vmem:[%s6 + $0x18] sm:$0xff]
        %v879 = vld [vmem:[%s6 + $0x20] sm:$0xff]
        %v880 = vld [vmem:[%s6 + $0x28] sm:$0xff]
        %v881 = vld [vmem:[%s6 + $0x30] sm:$0xff]
        %v882 = vld [vmem:[%s6 + $0x38] sm:$0xff]
        %v883 = vld [vmem:[%s6 + $0x40] sm:$0xff]
        %v884 = vld [vmem:[%s6 + $0x48] sm:$0xff]
        %v885 = vld [vmem:[%s6 + $0x50] sm:$0xff]
        %v886 = vld [vmem:[%s6 + $0x58] sm:$0xff]
        %v887 = vld [vmem:[%s6 + $0x60] sm:$0xff]
        %v888 = vld [vmem:[%s6 + $0x68] sm:$0xff]
        %v889 = vld [vmem:[%s6 + $0x70] sm:$0xff]
        %v890 = vld [vmem:[%s6 + $0x78] sm:$0xff]
        %v891 = vld [vmem:[%s6 + $0x80] sm:$0xff]
        %v892 = vld [vmem:[%s6 + $0x88] sm:$0xff]
        %v893 = vld [vmem:[%s6 + $0x90] sm:$0xff]
        %v894 = vld [vmem:[%s6 + $0x98] sm:$0xff]
        %v895 = vld [vmem:[%s6 + $0xa0] sm:$0xff]
        %v896 = vld [vmem:[%s6 + $0xa8] sm:$0xff]
        %v897 = vld [vmem:[%s6 + $0xb0] sm:$0xff]
        %v898 = vld [vmem:[%s6 + $0xb8] sm:$0xff]
        %v899 = vld [vmem:[%s6 + $0xc0] sm:$0xff]
        %v900 = vld [vmem:[%s6 + $0xc8] sm:$0xff]
        %v901 = vld [vmem:[%s6 + $0xd0] sm:$0xff]
        %v902 = vld [vmem:[%s6 + $0xd8] sm:$0xff]
        %v903 = vld [vmem:[%s6 + $0xe0] sm:$0xff]
        %v904 = vld [vmem:[%s6 + $0xe8] sm:$0xff]
        %v905 = vld [vmem:[%s6 + $0xf0] sm:$0xff]
        %v906 = vld [vmem:[%s6 + $0xf8] sm:$0xff]
        %v907 = vld [vmem:[%s6 + $0x100] sm:$0xff]
        %v908 = vld [vmem:[%s6 + $0x108] sm:$0xff]
        %v909 = vld [vmem:[%s6 + $0x110] sm:$0xff]
        %v910 = vld [vmem:[%s6 + $0x118] sm:$0xff]
        %v911 = vld [vmem:[%s6 + $0x120] sm:$0xff]
        %v912 = vld [vmem:[%s6 + $0x128] sm:$0xff]
        %v913 = vld [vmem:[%s6 + $0x130] sm:$0xff]
        %v914 = vld [vmem:[%s6 + $0x138] sm:$0xff]
        %v915 = vld [vmem:[%s6 + $0x140] sm:$0xff]
        %v916 = vld [vmem:[%s6 + $0x148] sm:$0xff]
        %v917 = vld [vmem:[%s6 + $0x150] sm:$0xff]
        %v918 = vld [vmem:[%s6 + $0x158] sm:$0xff]
        %v919 = vld [vmem:[%s6 + $0x160] sm:$0xff]
        %v920 = vld [vmem:[%s6 + $0x168] sm:$0xff]
        %v921 = vld [vmem:[%s6 + $0x170] sm:$0xff]
        %v922 = vld [vmem:[%s6 + $0x178] sm:$0xff]
        %v923 = vld [vmem:[%s6 + $0x180] sm:$0xff]
        %v924 = vld [vmem:[%s6 + $0x188] sm:$0xff]
        %v925 = vld [vmem:[%s6 + $0x190] sm:$0xff]
        %v926 = vld [vmem:[%s6 + $0x198] sm:$0xff]
        %v927 = vld [vmem:[%s6 + $0x1a0] sm:$0xff]
        %v928 = vld [vmem:[%s6 + $0x1a8] sm:$0xff]
        %v929 = vld [vmem:[%s6 + $0x1b0] sm:$0xff]
        %v930 = vld [vmem:[%s6 + $0x1b8] sm:$0xff]
        %v931 = vld [vmem:[%s6 + $0x1c0] sm:$0xff]
        %v932 = vld [vmem:[%s6 + $0x1c8] sm:$0xff]
        %v933 = vld [vmem:[%s6 + $0x1d0] sm:$0xff]
        %v934 = vld [vmem:[%s6 + $0x1d8] sm:$0xff]
        %v935 = vld [vmem:[%s6 + $0x1e0] sm:$0xff]
        %v936 = vld [vmem:[%s6 + $0x1e8] sm:$0xff]
        %v937 = vld [vmem:[%s6 + $0x1f0] sm:$0xff]
        %v938 = vld [vmem:[%s6 + $0x1f8] sm:$0xff]
        %v939 = vld [vmem:[%s7] sm:$0x1]
        %v940 = vld [vmem:[%s8] sm:$0x1]
        %v941 = vld [vmem:[%s9] sm:$0x1]
        %v942 = vld [vmem:[%s10] sm:$0xff]
        %v943 = vld [vmem:[%s10 + $0x8] sm:$0xff]
        %v944 = vld [vmem:[%s10 + $0x10] sm:$0xff]
        %v945 = vld [vmem:[%s10 + $0x18] sm:$0xff]
        %v946 = vld [vmem:[%s10 + $0x20] sm:$0xff]
        %v947 = vld [vmem:[%s10 + $0x28] sm:$0xff]
        %v948 = vld [vmem:[%s10 + $0x30] sm:$0xff]
        %v949 = vld [vmem:[%s10 + $0x38] sm:$0xff]
        %v950 = vld [vmem:[%s10 + $0x40] sm:$0xff]
        %v951 = vld [vmem:[%s10 + $0x48] sm:$0xff]
        %v952 = vld [vmem:[%s10 + $0x50] sm:$0xff]
        %v953 = vld [vmem:[%s10 + $0x58] sm:$0xff]
        %v954 = vld [vmem:[%s10 + $0x60] sm:$0xff]
        %v955 = vld [vmem:[%s10 + $0x68] sm:$0xff]
        %v956 = vld [vmem:[%s10 + $0x70] sm:$0xff]
        %v957 = vld [vmem:[%s10 + $0x78] sm:$0xff]
        %v958 = vld [vmem:[%s11] sm:$0xf]
        %v959 = vld [vmem:[%s12] sm:$0xff]
        %v960 = vld [vmem:[%s12 + $0x8] sm:$0xff]
        %v961 = vld [vmem:[%s12 + $0x10] sm:$0xff]
        %v962 = vld [vmem:[%s12 + $0x18] sm:$0xff]
        %v963 = vld [vmem:[%s12 + $0x20] sm:$0xff]
        %v964 = vld [vmem:[%s12 + $0x28] sm:$0xff]
        %v965 = vld [vmem:[%s12 + $0x30] sm:$0xff]
        %v966 = vld [vmem:[%s12 + $0x38] sm:$0xff]
        %v967 = vld [vmem:[%s12 + $0x40] sm:$0xff]
        %v968 = vld [vmem:[%s12 + $0x48] sm:$0xff]
        %v969 = vld [vmem:[%s12 + $0x50] sm:$0xff]
        %v970 = vld [vmem:[%s12 + $0x58] sm:$0xff]
        %v971 = vld [vmem:[%s12 + $0x60] sm:$0xff]
        %v972 = vld [vmem:[%s12 + $0x68] sm:$0xff]
        %v973 = vld [vmem:[%s12 + $0x70] sm:$0xff]
        %v974 = vld [vmem:[%s12 + $0x78] sm:$0xff]
        %v975 = vld [vmem:[%s12 + $0x80] sm:$0xff]
        %v976 = vld [vmem:[%s12 + $0x88] sm:$0xff]
        %v977 = vld [vmem:[%s12 + $0x90] sm:$0xff]
        %v978 = vld [vmem:[%s12 + $0x98] sm:$0xff]
        %v979 = vld [vmem:[%s12 + $0xa0] sm:$0xff]
        %v980 = vld [vmem:[%s12 + $0xa8] sm:$0xff]
        %v981 = vld [vmem:[%s12 + $0xb0] sm:$0xff]
        %v982 = vld [vmem:[%s12 + $0xb8] sm:$0xff]
        %v983 = vld [vmem:[%s12 + $0xc0] sm:$0xff]
        %v984 = vld [vmem:[%s12 + $0xc8] sm:$0xff]
        %v985 = vld [vmem:[%s12 + $0xd0] sm:$0xff]
        %v986 = vld [vmem:[%s12 + $0xd8] sm:$0xff]
        %v987 = vld [vmem:[%s12 + $0xe0] sm:$0xff]
        %v988 = vld [vmem:[%s12 + $0xe8] sm:$0xff]
        %v989 = vld [vmem:[%s12 + $0xf0] sm:$0xff]
        %v990 = vld [vmem:[%s12 + $0xf8] sm:$0xff]
        %v991 = vld [vmem:[%s13] sm:$0xff]
        %v992 = vld [vmem:[%s14] sm:$0xff]
        %v993 = vld [vmem:[%s14 + $0x8] sm:$0xff]
        %v994 = vld [vmem:[%s14 + $0x10] sm:$0xff]
        %v995 = vld [vmem:[%s14 + $0x18] sm:$0xff]
        %v996 = vld [vmem:[%s14 + $0x20] sm:$0xff]
        %v997 = vld [vmem:[%s14 + $0x28] sm:$0xff]
        %v998 = vld [vmem:[%s14 + $0x30] sm:$0xff]
        %v999 = vld [vmem:[%s14 + $0x38] sm:$0xff]
        %v1000 = vld [vmem:[%s14 + $0x40] sm:$0xff]
        %v1001 = vld [vmem:[%s14 + $0x48] sm:$0xff]
        %v1002 = vld [vmem:[%s14 + $0x50] sm:$0xff]
        %v1003 = vld [vmem:[%s14 + $0x58] sm:$0xff]
        %v1004 = vld [vmem:[%s14 + $0x60] sm:$0xff]
        %v1005 = vld [vmem:[%s14 + $0x68] sm:$0xff]
        %v1006 = vld [vmem:[%s14 + $0x70] sm:$0xff]
        %v1007 = vld [vmem:[%s14 + $0x78] sm:$0xff]
        %v1008 = vld [vmem:[%s14 + $0x80] sm:$0xff]
        %v1009 = vld [vmem:[%s14 + $0x88] sm:$0xff]
        %v1010 = vld [vmem:[%s14 + $0x90] sm:$0xff]
        %v1011 = vld [vmem:[%s14 + $0x98] sm:$0xff]
        %v1012 = vld [vmem:[%s14 + $0xa0] sm:$0xff]
        %v1013 = vld [vmem:[%s14 + $0xa8] sm:$0xff]
        %v1014 = vld [vmem:[%s14 + $0xb0] sm:$0xff]
        %v1015 = vld [vmem:[%s14 + $0xb8] sm:$0xff]
        %v1016 = vld [vmem:[%s14 + $0xc0] sm:$0xff]
        %v1017 = vld [vmem:[%s14 + $0xc8] sm:$0xff]
        %v1018 = vld [vmem:[%s14 + $0xd0] sm:$0xff]
        %v1019 = vld [vmem:[%s14 + $0xd8] sm:$0xff]
        %v1020 = vld [vmem:[%s14 + $0xe0] sm:$0xff]
        %v1021 = vld [vmem:[%s14 + $0xe8] sm:$0xff]
        %v1022 = vld [vmem:[%s14 + $0xf0] sm:$0xff]
        %v1023 = vld [vmem:[%s14 + $0xf8] sm:$0xff]
        %v1024 = vld [vmem:[%s14 + $0x100] sm:$0xff]
        %v1025 = vld [vmem:[%s14 + $0x108] sm:$0xff]
        %v1026 = vld [vmem:[%s14 + $0x110] sm:$0xff]
        %v1027 = vld [vmem:[%s14 + $0x118] sm:$0xff]
        %v1028 = vld [vmem:[%s14 + $0x120] sm:$0xff]
        %v1029 = vld [vmem:[%s14 + $0x128] sm:$0xff]
        %v1030 = vld [vmem:[%s14 + $0x130] sm:$0xff]
        %v1031 = vld [vmem:[%s14 + $0x138] sm:$0xff]
        %v1032 = vld [vmem:[%s14 + $0x140] sm:$0xff]
        %v1033 = vld [vmem:[%s14 + $0x148] sm:$0xff]
        %v1034 = vld [vmem:[%s14 + $0x150] sm:$0xff]
        %v1035 = vld [vmem:[%s14 + $0x158] sm:$0xff]
        %v1036 = vld [vmem:[%s14 + $0x160] sm:$0xff]
        %v1037 = vld [vmem:[%s14 + $0x168] sm:$0xff]
        %v1038 = vld [vmem:[%s14 + $0x170] sm:$0xff]
        %v1039 = vld [vmem:[%s14 + $0x178] sm:$0xff]
        %v1040 = vld [vmem:[%s14 + $0x180] sm:$0xff]
        %v1041 = vld [vmem:[%s14 + $0x188] sm:$0xff]
        %v1042 = vld [vmem:[%s14 + $0x190] sm:$0xff]
        %v1043 = vld [vmem:[%s14 + $0x198] sm:$0xff]
        %v1044 = vld [vmem:[%s14 + $0x1a0] sm:$0xff]
        %v1045 = vld [vmem:[%s14 + $0x1a8] sm:$0xff]
        %v1046 = vld [vmem:[%s14 + $0x1b0] sm:$0xff]
        %v1047 = vld [vmem:[%s14 + $0x1b8] sm:$0xff]
        %v1048 = vld [vmem:[%s14 + $0x1c0] sm:$0xff]
        %v1049 = vld [vmem:[%s14 + $0x1c8] sm:$0xff]
        %v1050 = vld [vmem:[%s14 + $0x1d0] sm:$0xff]
        %v1051 = vld [vmem:[%s14 + $0x1d8] sm:$0xff]
        %v1052 = vld [vmem:[%s14 + $0x1e0] sm:$0xff]
        %v1053 = vld [vmem:[%s14 + $0x1e8] sm:$0xff]
        %v1054 = vld [vmem:[%s14 + $0x1f0] sm:$0xff]
        %v1055 = vld [vmem:[%s14 + $0x1f8] sm:$0xff]
        %v1056 = vld [vmem:[%s15] sm:$0x1]
        %v1057 = vld [vmem:[%s16] sm:$0x1]
        %v1058 = vld [vmem:[%s17] sm:$0x1]
        %v1059 = vld [vmem:[%s18] sm:$0xff]
        %v1060 = vld [vmem:[%s18 + $0x8] sm:$0xff]
        %v1061 = vld [vmem:[%s18 + $0x10] sm:$0xff]
        %v1062 = vld [vmem:[%s18 + $0x18] sm:$0xff]
        %v1063 = vld [vmem:[%s19] sm:$0x1]
        %v1064 = vld [vmem:[%s20] sm:$0xff]
        %v1065 = vld [vmem:[%s20 + $0x8] sm:$0xff]
        %v1066 = vld [vmem:[%s20 + $0x10] sm:$0xff]
        %v1067 = vld [vmem:[%s20 + $0x18] sm:$0xff]
        %v1068 = vld [vmem:[%s20 + $0x20] sm:$0xff]
        %v1069 = vld [vmem:[%s20 + $0x28] sm:$0xff]
        %v1070 = vld [vmem:[%s20 + $0x30] sm:$0xff]
        %v1071 = vld [vmem:[%s20 + $0x38] sm:$0xff]
        %v1072 = vld [vmem:[%s21] sm:$0x1]
        %v1073 = vld [vmem:[%s22] sm:$0x1]
        %v1074 = vld [vmem:[%s23] sm:$0x1]
        %v1075 = vld [vmem:[%s807] sm:$0xff]
        %v1076 = vld [vmem:[%s812] sm:$0xff]
        %v1077 = vld [vmem:[%s812 + $0x8] sm:$0xff]
        %v1078 = vld [vmem:[%s816] sm:$0xf]
        %v1079 = vunpack.c.l.bf16 %v1078
        %v1080 = vmul.f32 %v1079, -1e+09
        %v1081 = vld [vmem:[%s820] sm:$0xf]
        %v1082 = vunpack.c.l.bf16 %v1081
        %v1083 = vmul.f32 %v1082, -1e+09
        %v1086 = vlaneseq
        %v1087 = vshrl.u32 %v1086, 7
        %v1088 = vsub.s32 0, %v1087
        %v1089 = vrot.slane %v873, %v1088
        %v1090 = vlaneseq
        %v1091 = vshrl.u32 %v1090, 7
        %v1092 = vsub.s32 1, %v1091
        %v1093 = vrot.slane %v873, %v1092
        %v1094 = vlaneseq
        %v1095 = vshrl.u32 %v1094, 7
        %v1096 = vsub.s32 2, %v1095
        %v1097 = vrot.slane %v873, %v1096
        %v1098 = vlaneseq
        %v1099 = vshrl.u32 %v1098, 7
        %v1100 = vsub.s32 3, %v1099
        %v1101 = vrot.slane %v873, %v1100
        %v1102 = vlaneseq
        %v1103 = vshrl.u32 %v1102, 7
        %v1104 = vsub.s32 4, %v1103
        %v1105 = vrot.slane %v873, %v1104
        %v1106 = vlaneseq
        %v1107 = vshrl.u32 %v1106, 7
        %v1108 = vsub.s32 5, %v1107
        %v1109 = vrot.slane %v873, %v1108
        %v1110 = vlaneseq
        %v1111 = vshrl.u32 %v1110, 7
        %v1112 = vsub.s32 6, %v1111
        %v1113 = vrot.slane %v873, %v1112
        %v1114 = vlaneseq
        %v1115 = vshrl.u32 %v1114, 7
        %v1116 = vsub.s32 7, %v1115
        %v1117 = vrot.slane %v873, %v1116
        %v1118 = vlaneseq
        %v1119 = vshrl.u32 %v1118, 7
        %v1120 = vsub.s32 0, %v1119
        %v1121 = vrot.slane %v874, %v1120
        %v1122 = vlaneseq
        %v1123 = vshrl.u32 %v1122, 7
        %v1124 = vsub.s32 1, %v1123
        %v1125 = vrot.slane %v874, %v1124
        %v1126 = vlaneseq
        %v1127 = vshrl.u32 %v1126, 7
        %v1128 = vsub.s32 2, %v1127
        %v1129 = vrot.slane %v874, %v1128
        %v1130 = vlaneseq
        %v1131 = vshrl.u32 %v1130, 7
        %v1132 = vsub.s32 3, %v1131
        %v1133 = vrot.slane %v874, %v1132
        %vm1146 = vcmask 261120
        %v1148 = vsel %vm1146, %v1075, 0
        %1150 = vmatprep.subr.mxu0 0.0
        %1151 = vmatpush1.msra.mxu0 0.0
        %1152 = vmatprep.subr.mxu0 0.0
        %1153 = vmatpush1.msra.mxu0 0.0
        %1154 = vmatprep.subr.mxu0 0.0
        %1155 = vmatpush1.msra.mxu0 0.0
        %1156 = vmatprep.subr.mxu0 0.0
        %1157 = vmatpush1.msra.mxu0 0.0
        %1158 = vmatprep.subr.mxu0 0.0
        %1159 = vmatpush1.msra.mxu0 0.0
        %1160 = vmatprep.subr.mxu0 0.0
        %1161 = vmatpush1.msra.mxu0 0.0
        %1162 = vmatprep.subr.mxu0 0.0
        %1163 = vmatpush1.msra.mxu0 0.0
        %1164 = vmatprep.subr.mxu0 0.0
        %1165 = vmatpush1.msra.mxu0 0.0
        %1166 = vmatprep.subr.mxu0 0.0
        %1167 = vmatpush1.msra.mxu0 0.0
        %1168 = vmatprep.subr.mxu0 0.0
        %1169 = vmatpush1.msra.mxu0 0.0
        %1170 = vmatprep.subr.mxu0 0.0
        %1171 = vmatpush1.msra.mxu0 0.0
        %1172 = vmatprep.subr.mxu0 0.0
        %1173 = vmatpush1.msra.mxu0 0.0
        %1174 = vmatprep.subr.mxu0 %v862
        %1175 = vmatpush1.msra.mxu0 %v861
        %1176 = vmatprep.subr.mxu0 %v850
        %1177 = vmatpush1.msra.mxu0 %v849
        %1178 = vmatprep.subr.mxu0 %v838
        %1179 = vmatpush1.msra.mxu0 %v837
        %1180 = vmatprep.subr.mxu0 %v826
        %1181 = vmatpush1.msra.mxu0 %v825
        %1182 = vmatprep.subr.mxu0 0.0
        %1183 = vmatpush2.msra.mxu0 0.0
        %1184 = vmatprep.subr.mxu0 0.0
        %1185 = vmatpush2.msra.mxu0 0.0
        %1186 = vmatprep.subr.mxu0 0.0
        %1187 = vmatpush2.msra.mxu0 0.0
        %1188 = vmatprep.subr.mxu0 0.0
        %1189 = vmatpush2.msra.mxu0 0.0
        %1190 = vmatprep.subr.mxu0 0.0
        %1191 = vmatpush2.msra.mxu0 0.0
        %1192 = vmatprep.subr.mxu0 0.0
        %1193 = vmatpush2.msra.mxu0 0.0
        %1194 = vmatprep.subr.mxu0 0.0
        %1195 = vmatpush2.msra.mxu0 0.0
        %1196 = vmatprep.subr.mxu0 0.0
        %1197 = vmatpush2.msra.mxu0 0.0
        %1198 = vmatprep.subr.mxu0 0.0
        %1199 = vmatpush2.msra.mxu0 0.0
        %1200 = vmatprep.subr.mxu0 0.0
        %1201 = vmatpush2.msra.mxu0 0.0
        %1202 = vmatprep.subr.mxu0 0.0
        %1203 = vmatpush2.msra.mxu0 0.0
        %1204 = vmatprep.subr.mxu0 0.0
        %1205 = vmatpush2.msra.mxu0 0.0
        %1206 = vmatprep.subr.mxu0 0.0
        %1207 = vmatpush2.msra.mxu0 0.0
        %1208 = vmatprep.subr.mxu0 0.0
        %1209 = vmatpush2.msra.mxu0 0.0
        %1210 = vmatprep.subr.mxu0 0.0
        %1211 = vmatpush2.msra.mxu0 0.0
        %1212 = vmatprep.subr.mxu0 0.0
        %1213 = vmatpush2.msra.mxu0 0.0
        %1214 = vmatprep.mubr.f32.mxu0 0.0
        %1215 = vmatmul.mubr.f32.gmra.mxu0 %v1148
        %v1216 = vpop.f32.mrf.mxu0
        %v1217 = vadd.f32 %v1089, %v1216
        %v1218 = vpop.f32.mrf.mxu0
        %v1219 = vadd.f32 %v1093, %v1218
        %1220 = vdwg.mxu0
        %1221 = vmatprep.subr.mxu0 0.0
        %1222 = vmatpush1.msra.mxu0 0.0
        %1223 = vmatprep.subr.mxu0 0.0
        %1224 = vmatpush1.msra.mxu0 0.0
        %1225 = vmatprep.subr.mxu0 0.0
        %1226 = vmatpush1.msra.mxu0 0.0
        %1227 = vmatprep.subr.mxu0 0.0
        %1228 = vmatpush1.msra.mxu0 0.0
        %1229 = vmatprep.subr.mxu0 0.0
        %1230 = vmatpush1.msra.mxu0 0.0
        %1231 = vmatprep.subr.mxu0 0.0
        %1232 = vmatpush1.msra.mxu0 0.0
        %1233 = vmatprep.subr.mxu0 0.0
        %1234 = vmatpush1.msra.mxu0 0.0
        %1235 = vmatprep.subr.mxu0 0.0
        %1236 = vmatpush1.msra.mxu0 0.0
        %1237 = vmatprep.subr.mxu0 0.0
        %1238 = vmatpush1.msra.mxu0 0.0
        %1239 = vmatprep.subr.mxu0 0.0
        %1240 = vmatpush1.msra.mxu0 0.0
        %1241 = vmatprep.subr.mxu0 0.0
        %1242 = vmatpush1.msra.mxu0 0.0
        %1243 = vmatprep.subr.mxu0 0.0
        %1244 = vmatpush1.msra.mxu0 0.0
        %1245 = vmatprep.subr.mxu0 %v864
        %1246 = vmatpush1.msra.mxu0 %v863
        %1247 = vmatprep.subr.mxu0 %v852
        %1248 = vmatpush1.msra.mxu0 %v851
        %1249 = vmatprep.subr.mxu0 %v840
        %1250 = vmatpush1.msra.mxu0 %v839
        %1251 = vmatprep.subr.mxu0 %v828
        %1252 = vmatpush1.msra.mxu0 %v827
        %1253 = vmatprep.subr.mxu0 0.0
        %1254 = vmatpush2.msra.mxu0 0.0
        %1255 = vmatprep.subr.mxu0 0.0
        %1256 = vmatpush2.msra.mxu0 0.0
        %1257 = vmatprep.subr.mxu0 0.0
        %1258 = vmatpush2.msra.mxu0 0.0
        %1259 = vmatprep.subr.mxu0 0.0
        %1260 = vmatpush2.msra.mxu0 0.0
        %1261 = vmatprep.subr.mxu0 0.0
        %1262 = vmatpush2.msra.mxu0 0.0
        %1263 = vmatprep.subr.mxu0 0.0
        %1264 = vmatpush2.msra.mxu0 0.0
        %1265 = vmatprep.subr.mxu0 0.0
        %1266 = vmatpush2.msra.mxu0 0.0
        %1267 = vmatprep.subr.mxu0 0.0
        %1268 = vmatpush2.msra.mxu0 0.0
        %1269 = vmatprep.subr.mxu0 0.0
        %1270 = vmatpush2.msra.mxu0 0.0
        %1271 = vmatprep.subr.mxu0 0.0
        %1272 = vmatpush2.msra.mxu0 0.0
        %1273 = vmatprep.subr.mxu0 0.0
        %1274 = vmatpush2.msra.mxu0 0.0
        %1275 = vmatprep.subr.mxu0 0.0
        %1276 = vmatpush2.msra.mxu0 0.0
        %1277 = vmatprep.subr.mxu0 0.0
        %1278 = vmatpush2.msra.mxu0 0.0
        %1279 = vmatprep.subr.mxu0 0.0
        %1280 = vmatpush2.msra.mxu0 0.0
        %1281 = vmatprep.subr.mxu0 0.0
        %1282 = vmatpush2.msra.mxu0 0.0
        %1283 = vmatprep.subr.mxu0 0.0
        %1284 = vmatpush2.msra.mxu0 0.0
        %1285 = vmatprep.mubr.f32.mxu0 0.0
        %1286 = vmatmul.mubr.f32.gmra.mxu0 %v1148
        %v1287 = vpop.f32.mrf.mxu0
        %v1288 = vadd.f32 %v1097, %v1287
        %v1289 = vpop.f32.mrf.mxu0
        %v1290 = vadd.f32 %v1101, %v1289
        %1291 = vdwg.mxu0
        %1292 = vmatprep.subr.mxu0 0.0
        %1293 = vmatpush1.msra.mxu0 0.0
        %1294 = vmatprep.subr.mxu0 0.0
        %1295 = vmatpush1.msra.mxu0 0.0
        %1296 = vmatprep.subr.mxu0 0.0
        %1297 = vmatpush1.msra.mxu0 0.0
        %1298 = vmatprep.subr.mxu0 0.0
        %1299 = vmatpush1.msra.mxu0 0.0
        %1300 = vmatprep.subr.mxu0 0.0
        %1301 = vmatpush1.msra.mxu0 0.0
        %1302 = vmatprep.subr.mxu0 0.0
        %1303 = vmatpush1.msra.mxu0 0.0
        %1304 = vmatprep.subr.mxu0 0.0
        %1305 = vmatpush1.msra.mxu0 0.0
        %1306 = vmatprep.subr.mxu0 0.0
        %1307 = vmatpush1.msra.mxu0 0.0
        %1308 = vmatprep.subr.mxu0 0.0
        %1309 = vmatpush1.msra.mxu0 0.0
        %1310 = vmatprep.subr.mxu0 0.0
        %1311 = vmatpush1.msra.mxu0 0.0
        %1312 = vmatprep.subr.mxu0 0.0
        %1313 = vmatpush1.msra.mxu0 0.0
        %1314 = vmatprep.subr.mxu0 0.0
        %1315 = vmatpush1.msra.mxu0 0.0
        %1316 = vmatprep.subr.mxu0 %v866
        %1317 = vmatpush1.msra.mxu0 %v865
        %1318 = vmatprep.subr.mxu0 %v854
        %1319 = vmatpush1.msra.mxu0 %v853
        %1320 = vmatprep.subr.mxu0 %v842
        %1321 = vmatpush1.msra.mxu0 %v841
        %1322 = vmatprep.subr.mxu0 %v830
        %1323 = vmatpush1.msra.mxu0 %v829
        %1324 = vmatprep.subr.mxu0 0.0
        %1325 = vmatpush2.msra.mxu0 0.0
        %1326 = vmatprep.subr.mxu0 0.0
        %1327 = vmatpush2.msra.mxu0 0.0
        %1328 = vmatprep.subr.mxu0 0.0
        %1329 = vmatpush2.msra.mxu0 0.0
        %1330 = vmatprep.subr.mxu0 0.0
        %1331 = vmatpush2.msra.mxu0 0.0
        %1332 = vmatprep.subr.mxu0 0.0
        %1333 = vmatpush2.msra.mxu0 0.0
        %1334 = vmatprep.subr.mxu0 0.0
        %1335 = vmatpush2.msra.mxu0 0.0
        %1336 = vmatprep.subr.mxu0 0.0
        %1337 = vmatpush2.msra.mxu0 0.0
        %1338 = vmatprep.subr.mxu0 0.0
        %1339 = vmatpush2.msra.mxu0 0.0
        %1340 = vmatprep.subr.mxu0 0.0
        %1341 = vmatpush2.msra.mxu0 0.0
        %1342 = vmatprep.subr.mxu0 0.0
        %1343 = vmatpush2.msra.mxu0 0.0
        %1344 = vmatprep.subr.mxu0 0.0
        %1345 = vmatpush2.msra.mxu0 0.0
        %1346 = vmatprep.subr.mxu0 0.0
        %1347 = vmatpush2.msra.mxu0 0.0
        %1348 = vmatprep.subr.mxu0 0.0
        %1349 = vmatpush2.msra.mxu0 0.0
        %1350 = vmatprep.subr.mxu0 0.0
        %1351 = vmatpush2.msra.mxu0 0.0
        %1352 = vmatprep.subr.mxu0 0.0
        %1353 = vmatpush2.msra.mxu0 0.0
        %1354 = vmatprep.subr.mxu0 0.0
        %1355 = vmatpush2.msra.mxu0 0.0
        %1356 = vmatprep.mubr.f32.mxu0 0.0
        %1357 = vmatmul.mubr.f32.gmra.mxu0 %v1148
        %v1358 = vpop.f32.mrf.mxu0
        %v1359 = vadd.f32 %v1105, %v1358
        %v1360 = vpop.f32.mrf.mxu0
        %v1361 = vadd.f32 %v1109, %v1360
        %1362 = vdwg.mxu0
        %1363 = vmatprep.subr.mxu0 0.0
        %1364 = vmatpush1.msra.mxu0 0.0
        %1365 = vmatprep.subr.mxu0 0.0
        %1366 = vmatpush1.msra.mxu0 0.0
        %1367 = vmatprep.subr.mxu0 0.0
        %1368 = vmatpush1.msra.mxu0 0.0
        %1369 = vmatprep.subr.mxu0 0.0
        %1370 = vmatpush1.msra.mxu0 0.0
        %1371 = vmatprep.subr.mxu0 0.0
        %1372 = vmatpush1.msra.mxu0 0.0
        %1373 = vmatprep.subr.mxu0 0.0
        %1374 = vmatpush1.msra.mxu0 0.0
        %1375 = vmatprep.subr.mxu0 0.0
        %1376 = vmatpush1.msra.mxu0 0.0
        %1377 = vmatprep.subr.mxu0 0.0
        %1378 = vmatpush1.msra.mxu0 0.0
        %1379 = vmatprep.subr.mxu0 0.0
        %1380 = vmatpush1.msra.mxu0 0.0
        %1381 = vmatprep.subr.mxu0 0.0
        %1382 = vmatpush1.msra.mxu0 0.0
        %1383 = vmatprep.subr.mxu0 0.0
        %1384 = vmatpush1.msra.mxu0 0.0
        %1385 = vmatprep.subr.mxu0 0.0
        %1386 = vmatpush1.msra.mxu0 0.0
        %1387 = vmatprep.subr.mxu0 %v868
        %1388 = vmatpush1.msra.mxu0 %v867
        %1389 = vmatprep.subr.mxu0 %v856
        %1390 = vmatpush1.msra.mxu0 %v855
        %1391 = vmatprep.subr.mxu0 %v844
        %1392 = vmatpush1.msra.mxu0 %v843
        %1393 = vmatprep.subr.mxu0 %v832
        %1394 = vmatpush1.msra.mxu0 %v831
        %1395 = vmatprep.subr.mxu0 0.0
        %1396 = vmatpush2.msra.mxu0 0.0
        %1397 = vmatprep.subr.mxu0 0.0
        %1398 = vmatpush2.msra.mxu0 0.0
        %1399 = vmatprep.subr.mxu0 0.0
        %1400 = vmatpush2.msra.mxu0 0.0
        %1401 = vmatprep.subr.mxu0 0.0
        %1402 = vmatpush2.msra.mxu0 0.0
        %1403 = vmatprep.subr.mxu0 0.0
        %1404 = vmatpush2.msra.mxu0 0.0
        %1405 = vmatprep.subr.mxu0 0.0
        %1406 = vmatpush2.msra.mxu0 0.0
        %1407 = vmatprep.subr.mxu0 0.0
        %1408 = vmatpush2.msra.mxu0 0.0
        %1409 = vmatprep.subr.mxu0 0.0
        %1410 = vmatpush2.msra.mxu0 0.0
        %1411 = vmatprep.subr.mxu0 0.0
        %1412 = vmatpush2.msra.mxu0 0.0
        %1413 = vmatprep.subr.mxu0 0.0
        %1414 = vmatpush2.msra.mxu0 0.0
        %1415 = vmatprep.subr.mxu0 0.0
        %1416 = vmatpush2.msra.mxu0 0.0
        %1417 = vmatprep.subr.mxu0 0.0
        %1418 = vmatpush2.msra.mxu0 0.0
        %1419 = vmatprep.subr.mxu0 0.0
        %1420 = vmatpush2.msra.mxu0 0.0
        %1421 = vmatprep.subr.mxu0 0.0
        %1422 = vmatpush2.msra.mxu0 0.0
        %1423 = vmatprep.subr.mxu0 0.0
        %1424 = vmatpush2.msra.mxu0 0.0
        %1425 = vmatprep.subr.mxu0 0.0
        %1426 = vmatpush2.msra.mxu0 0.0
        %1427 = vmatprep.mubr.f32.mxu0 0.0
        %1428 = vmatmul.mubr.f32.gmra.mxu0 %v1148
        %v1429 = vpop.f32.mrf.mxu0
        %v1430 = vadd.f32 %v1113, %v1429
        %v1431 = vpop.f32.mrf.mxu0
        %v1432 = vadd.f32 %v1117, %v1431
        %1433 = vdwg.mxu0
        %1434 = vmatprep.subr.mxu0 0.0
        %1435 = vmatpush1.msra.mxu0 0.0
        %1436 = vmatprep.subr.mxu0 0.0
        %1437 = vmatpush1.msra.mxu0 0.0
        %1438 = vmatprep.subr.mxu0 0.0
        %1439 = vmatpush1.msra.mxu0 0.0
        %1440 = vmatprep.subr.mxu0 0.0
        %1441 = vmatpush1.msra.mxu0 0.0
        %1442 = vmatprep.subr.mxu0 0.0
        %1443 = vmatpush1.msra.mxu0 0.0
        %1444 = vmatprep.subr.mxu0 0.0
        %1445 = vmatpush1.msra.mxu0 0.0
        %1446 = vmatprep.subr.mxu0 0.0
        %1447 = vmatpush1.msra.mxu0 0.0
        %1448 = vmatprep.subr.mxu0 0.0
        %1449 = vmatpush1.msra.mxu0 0.0
        %1450 = vmatprep.subr.mxu0 0.0
        %1451 = vmatpush1.msra.mxu0 0.0
        %1452 = vmatprep.subr.mxu0 0.0
        %1453 = vmatpush1.msra.mxu0 0.0
        %1454 = vmatprep.subr.mxu0 0.0
        %1455 = vmatpush1.msra.mxu0 0.0
        %1456 = vmatprep.subr.mxu0 0.0
        %1457 = vmatpush1.msra.mxu0 0.0
        %1458 = vmatprep.subr.mxu0 %v870
        %1459 = vmatpush1.msra.mxu0 %v869
        %1460 = vmatprep.subr.mxu0 %v858
        %1461 = vmatpush1.msra.mxu0 %v857
        %1462 = vmatprep.subr.mxu0 %v846
        %1463 = vmatpush1.msra.mxu0 %v845
        %1464 = vmatprep.subr.mxu0 %v834
        %1465 = vmatpush1.msra.mxu0 %v833
        %1466 = vmatprep.subr.mxu0 0.0
        %1467 = vmatpush2.msra.mxu0 0.0
        %1468 = vmatprep.subr.mxu0 0.0
        %1469 = vmatpush2.msra.mxu0 0.0
        %1470 = vmatprep.subr.mxu0 0.0
        %1471 = vmatpush2.msra.mxu0 0.0
        %1472 = vmatprep.subr.mxu0 0.0
        %1473 = vmatpush2.msra.mxu0 0.0
        %1474 = vmatprep.subr.mxu0 0.0
        %1475 = vmatpush2.msra.mxu0 0.0
        %1476 = vmatprep.subr.mxu0 0.0
        %1477 = vmatpush2.msra.mxu0 0.0
        %1478 = vmatprep.subr.mxu0 0.0
        %1479 = vmatpush2.msra.mxu0 0.0
        %1480 = vmatprep.subr.mxu0 0.0
        %1481 = vmatpush2.msra.mxu0 0.0
        %1482 = vmatprep.subr.mxu0 0.0
        %1483 = vmatpush2.msra.mxu0 0.0
        %1484 = vmatprep.subr.mxu0 0.0
        %1485 = vmatpush2.msra.mxu0 0.0
        %1486 = vmatprep.subr.mxu0 0.0
        %1487 = vmatpush2.msra.mxu0 0.0
        %1488 = vmatprep.subr.mxu0 0.0
        %1489 = vmatpush2.msra.mxu0 0.0
        %1490 = vmatprep.subr.mxu0 0.0
        %1491 = vmatpush2.msra.mxu0 0.0
        %1492 = vmatprep.subr.mxu0 0.0
        %1493 = vmatpush2.msra.mxu0 0.0
        %1494 = vmatprep.subr.mxu0 0.0
        %1495 = vmatpush2.msra.mxu0 0.0
        %1496 = vmatprep.subr.mxu0 0.0
        %1497 = vmatpush2.msra.mxu0 0.0
        %1498 = vmatprep.mubr.f32.mxu0 0.0
        %1499 = vmatmul.mubr.f32.gmra.mxu0 %v1148
        %v1500 = vpop.f32.mrf.mxu0
        %v1501 = vadd.f32 %v1121, %v1500
        %v1502 = vpop.f32.mrf.mxu0
        %v1503 = vadd.f32 %v1125, %v1502
        %1504 = vdwg.mxu0
        %1505 = vmatprep.subr.mxu0 0.0
        %1506 = vmatpush1.msra.mxu0 0.0
        %1507 = vmatprep.subr.mxu0 0.0
        %1508 = vmatpush1.msra.mxu0 0.0
        %1509 = vmatprep.subr.mxu0 0.0
        %1510 = vmatpush1.msra.mxu0 0.0
        %1511 = vmatprep.subr.mxu0 0.0
        %1512 = vmatpush1.msra.mxu0 0.0
        %1513 = vmatprep.subr.mxu0 0.0
        %1514 = vmatpush1.msra.mxu0 0.0
        %1515 = vmatprep.subr.mxu0 0.0
        %1516 = vmatpush1.msra.mxu0 0.0
        %1517 = vmatprep.subr.mxu0 0.0
        %1518 = vmatpush1.msra.mxu0 0.0
        %1519 = vmatprep.subr.mxu0 0.0
        %1520 = vmatpush1.msra.mxu0 0.0
        %1521 = vmatprep.subr.mxu0 0.0
        %1522 = vmatpush1.msra.mxu0 0.0
        %1523 = vmatprep.subr.mxu0 0.0
        %1524 = vmatpush1.msra.mxu0 0.0
        %1525 = vmatprep.subr.mxu0 0.0
        %1526 = vmatpush1.msra.mxu0 0.0
        %1527 = vmatprep.subr.mxu0 0.0
        %1528 = vmatpush1.msra.mxu0 0.0
        %1529 = vmatprep.subr.mxu0 %v872
        %1530 = vmatpush1.msra.mxu0 %v871
        %1531 = vmatprep.subr.mxu0 %v860
        %1532 = vmatpush1.msra.mxu0 %v859
        %1533 = vmatprep.subr.mxu0 %v848
        %1534 = vmatpush1.msra.mxu0 %v847
        %1535 = vmatprep.subr.mxu0 %v836
        %1536 = vmatpush1.msra.mxu0 %v835
        %1537 = vmatprep.subr.mxu0 0.0
        %1538 = vmatpush2.msra.mxu0 0.0
        %1539 = vmatprep.subr.mxu0 0.0
        %1540 = vmatpush2.msra.mxu0 0.0
        %1541 = vmatprep.subr.mxu0 0.0
        %1542 = vmatpush2.msra.mxu0 0.0
        %1543 = vmatprep.subr.mxu0 0.0
        %1544 = vmatpush2.msra.mxu0 0.0
        %1545 = vmatprep.subr.mxu0 0.0
        %1546 = vmatpush2.msra.mxu0 0.0
        %1547 = vmatprep.subr.mxu0 0.0
        %1548 = vmatpush2.msra.mxu0 0.0
        %1549 = vmatprep.subr.mxu0 0.0
        %1550 = vmatpush2.msra.mxu0 0.0
        %1551 = vmatprep.subr.mxu0 0.0
        %1552 = vmatpush2.msra.mxu0 0.0
        %1553 = vmatprep.subr.mxu0 0.0
        %1554 = vmatpush2.msra.mxu0 0.0
        %1555 = vmatprep.subr.mxu0 0.0
        %1556 = vmatpush2.msra.mxu0 0.0
        %1557 = vmatprep.subr.mxu0 0.0
        %1558 = vmatpush2.msra.mxu0 0.0
        %1559 = vmatprep.subr.mxu0 0.0
        %1560 = vmatpush2.msra.mxu0 0.0
        %1561 = vmatprep.subr.mxu0 0.0
        %1562 = vmatpush2.msra.mxu0 0.0
        %1563 = vmatprep.subr.mxu0 0.0
        %1564 = vmatpush2.msra.mxu0 0.0
        %1565 = vmatprep.subr.mxu0 0.0
        %1566 = vmatpush2.msra.mxu0 0.0
        %1567 = vmatprep.subr.mxu0 0.0
        %1568 = vmatpush2.msra.mxu0 0.0
        %1569 = vmatprep.mubr.f32.mxu0 0.0
        %1570 = vmatmul.mubr.f32.gmra.mxu0 %v1148
        %v1571 = vpop.f32.mrf.mxu0
        %v1572 = vadd.f32 %v1129, %v1571
        %v1573 = vpop.f32.mrf.mxu0
        %v1574 = vadd.f32 %v1133, %v1573
        %1575 = vdwg.mxu0
        %v1576 = vmul.f32 %v1217, 0.35355338
        %v1577 = vmul.f32 %v1219, 0.35355338
        %v1578 = vmul.f32 %v1288, 0.35355338
        %v1579 = vmul.f32 %v1290, 0.35355338
        %1580 = vmatprep.subr.mxu0 0.0
        %1581 = vmatpush1.xpose.msra.mxu0 0.0
        %1582 = vmatprep.subr.mxu0 0.0
        %1583 = vmatpush1.xpose.msra.mxu0 0.0
        %1584 = vmatprep.subr.mxu0 0.0
        %1585 = vmatpush1.xpose.msra.mxu0 0.0
        %1586 = vmatprep.subr.mxu0 0.0
        %1587 = vmatpush1.xpose.msra.mxu0 0.0
        %1588 = vmatprep.subr.mxu0 0.0
        %1589 = vmatpush1.xpose.msra.mxu0 0.0
        %1590 = vmatprep.subr.mxu0 0.0
        %1591 = vmatpush1.xpose.msra.mxu0 0.0
        %1592 = vmatprep.subr.mxu0 0.0
        %1593 = vmatpush1.xpose.msra.mxu0 0.0
        %1594 = vmatprep.subr.mxu0 0.0
        %1595 = vmatpush1.xpose.msra.mxu0 0.0
        %1596 = vmatprep.subr.mxu0 0.0
        %1597 = vmatpush1.xpose.msra.mxu0 0.0
        %1598 = vmatprep.subr.mxu0 0.0
        %1599 = vmatpush1.xpose.msra.mxu0 0.0
        %1600 = vmatprep.subr.mxu0 0.0
        %1601 = vmatpush1.xpose.msra.mxu0 0.0
        %1602 = vmatprep.subr.mxu0 0.0
        %1603 = vmatpush1.xpose.msra.mxu0 0.0
        %1604 = vmatprep.subr.mxu0 0.0
        %1605 = vmatpush1.xpose.msra.mxu0 0.0
        %1606 = vmatprep.subr.mxu0 0.0
        %1607 = vmatpush1.xpose.msra.mxu0 0.0
        %1608 = vmatprep.subr.mxu0 0.0
        %1609 = vmatpush1.xpose.msra.mxu0 0.0
        %1610 = vmatprep.subr.mxu0 0.0
        %1611 = vmatpush1.xpose.msra.mxu0 %v1359
        %1612 = vmatprep.subr.mxu0 0.0
        %1613 = vmatpush2.xpose.msra.mxu0 0.0
        %1614 = vmatprep.subr.mxu0 0.0
        %1615 = vmatpush2.xpose.msra.mxu0 0.0
        %1616 = vmatprep.subr.mxu0 0.0
        %1617 = vmatpush2.xpose.msra.mxu0 0.0
        %1618 = vmatprep.subr.mxu0 0.0
        %1619 = vmatpush2.xpose.msra.mxu0 0.0
        %1620 = vmatprep.subr.mxu0 0.0
        %1621 = vmatpush2.xpose.msra.mxu0 0.0
        %1622 = vmatprep.subr.mxu0 0.0
        %1623 = vmatpush2.xpose.msra.mxu0 0.0
        %1624 = vmatprep.subr.mxu0 0.0
        %1625 = vmatpush2.xpose.msra.mxu0 0.0
        %1626 = vmatprep.subr.mxu0 0.0
        %1627 = vmatpush2.xpose.msra.mxu0 0.0
        %1628 = vmatprep.subr.mxu0 0.0
        %1629 = vmatpush2.xpose.msra.mxu0 0.0
        %1630 = vmatprep.subr.mxu0 0.0
        %1631 = vmatpush2.xpose.msra.mxu0 0.0
        %1632 = vmatprep.subr.mxu0 0.0
        %1633 = vmatpush2.xpose.msra.mxu0 0.0
        %1634 = vmatprep.subr.mxu0 0.0
        %1635 = vmatpush2.xpose.msra.mxu0 0.0
        %1636 = vmatprep.subr.mxu0 0.0
        %1637 = vmatpush2.xpose.msra.mxu0 0.0
        %1638 = vmatprep.subr.mxu0 0.0
        %1639 = vmatpush2.xpose.msra.mxu0 0.0
        %1640 = vmatprep.subr.mxu0 0.0
        %1641 = vmatpush2.xpose.msra.mxu0 0.0
        %1642 = vmatprep.subr.mxu0 0.0
        %1643 = vmatpush2.xpose.msra.mxu0 0.0
        %1644 = vmatprep.mubr.f32.mxu0 0.0
        %1645 = vmatmul.mubr.f32.gmra.mxu0 %v1576
        %v1646 = vpop.f32.mrf.mxu0
        %v1647 = vadd.f32 %v1080, %v1646
        %v1648 = vpop.f32.mrf.mxu0
        %1649 = vdwg.mxu0
        %vm1650 = vcmask 64512
        %v1651 = vsel %vm1650, %v1647, -inf
        %1652 = vmax.xlane.f32.xlu0 %v1651
        %v1653 = vpop.xlane.xlu0 %1652
        %v1654 = vsub.f32 %v1647, %v1653
        %v1655 = vmul.f32 %v1654, 1.442695
        %v1656 = vpow.pop %v1655
        %v1657 = vsel %vm1650, %v1656, 0.0
        %1658 = vadd.xlane.f32.xlu0 %v1657
        %v1659 = vpop.xlane.xlu0 %1658
        %v1660 = vrcp.pop %v1659
        %v1661 = vmul.f32 %v1656, %v1660
        %v1663 = vsel %vm1650, %v1661, 0
        %1665 = vmatprep.subr.mxu0 0.0
        %1666 = vmatpush1.msra.mxu0 0.0
        %1667 = vmatprep.subr.mxu0 0.0
        %1668 = vmatpush1.msra.mxu0 0.0
        %1669 = vmatprep.subr.mxu0 0.0
        %1670 = vmatpush1.msra.mxu0 0.0
        %1671 = vmatprep.subr.mxu0 0.0
        %1672 = vmatpush1.msra.mxu0 0.0
        %1673 = vmatprep.subr.mxu0 0.0
        %1674 = vmatpush1.msra.mxu0 0.0
        %1675 = vmatprep.subr.mxu0 0.0
        %1676 = vmatpush1.msra.mxu0 0.0
        %1677 = vmatprep.subr.mxu0 0.0
        %1678 = vmatpush1.msra.mxu0 0.0
        %1679 = vmatprep.subr.mxu0 0.0
        %1680 = vmatpush1.msra.mxu0 0.0
        %1681 = vmatprep.subr.mxu0 0.0
        %1682 = vmatpush1.msra.mxu0 0.0
        %1683 = vmatprep.subr.mxu0 0.0
        %1684 = vmatpush1.msra.mxu0 0.0
        %1685 = vmatprep.subr.mxu0 0.0
        %1686 = vmatpush1.msra.mxu0 0.0
        %1687 = vmatprep.subr.mxu0 0.0
        %1688 = vmatpush1.msra.mxu0 0.0
        %1689 = vmatprep.subr.mxu0 0.0
        %1690 = vmatpush1.msra.mxu0 0.0
        %1691 = vmatprep.subr.mxu0 0.0
        %1692 = vmatpush1.msra.mxu0 0.0
        %1693 = vmatprep.subr.mxu0 0.0
        %1694 = vmatpush1.msra.mxu0 0.0
        %1695 = vmatprep.subr.mxu0 0.0
        %1696 = vmatpush1.msra.mxu0 %v1501
        %1697 = vmatprep.subr.mxu0 0.0
        %1698 = vmatpush2.msra.mxu0 0.0
        %1699 = vmatprep.subr.mxu0 0.0
        %1700 = vmatpush2.msra.mxu0 0.0
        %1701 = vmatprep.subr.mxu0 0.0
        %1702 = vmatpush2.msra.mxu0 0.0
        %1703 = vmatprep.subr.mxu0 0.0
        %1704 = vmatpush2.msra.mxu0 0.0
        %1705 = vmatprep.subr.mxu0 0.0
        %1706 = vmatpush2.msra.mxu0 0.0
        %1707 = vmatprep.subr.mxu0 0.0
        %1708 = vmatpush2.msra.mxu0 0.0
        %1709 = vmatprep.subr.mxu0 0.0
        %1710 = vmatpush2.msra.mxu0 0.0
        %1711 = vmatprep.subr.mxu0 0.0
        %1712 = vmatpush2.msra.mxu0 0.0
        %1713 = vmatprep.subr.mxu0 0.0
        %1714 = vmatpush2.msra.mxu0 0.0
        %1715 = vmatprep.subr.mxu0 0.0
        %1716 = vmatpush2.msra.mxu0 0.0
        %1717 = vmatprep.subr.mxu0 0.0
        %1718 = vmatpush2.msra.mxu0 0.0
        %1719 = vmatprep.subr.mxu0 0.0
        %1720 = vmatpush2.msra.mxu0 0.0
        %1721 = vmatprep.subr.mxu0 0.0
        %1722 = vmatpush2.msra.mxu0 0.0
        %1723 = vmatprep.subr.mxu0 0.0
        %1724 = vmatpush2.msra.mxu0 0.0
        %1725 = vmatprep.subr.mxu0 0.0
        %1726 = vmatpush2.msra.mxu0 0.0
        %1727 = vmatprep.subr.mxu0 0.0
        %1728 = vmatpush2.msra.mxu0 0.0
        %1729 = vmatprep.mubr.f32.mxu0 0.0
        %1730 = vmatmul.mubr.f32.gmra.mxu0 %v1663
        %v1731 = vpop.f32.mrf.mxu0
        %v1732 = vadd.f32 0.0, %v1731
        %v1733 = vpop.f32.mrf.mxu0
        %1734 = vdwg.mxu0
        %1735 = vmatprep.subr.mxu0 0.0
        %1736 = vmatpush1.xpose.msra.mxu0 0.0
        %1737 = vmatprep.subr.mxu0 0.0
        %1738 = vmatpush1.xpose.msra.mxu0 0.0
        %1739 = vmatprep.subr.mxu0 0.0
        %1740 = vmatpush1.xpose.msra.mxu0 0.0
        %1741 = vmatprep.subr.mxu0 0.0
        %1742 = vmatpush1.xpose.msra.mxu0 0.0
        %1743 = vmatprep.subr.mxu0 0.0
        %1744 = vmatpush1.xpose.msra.mxu0 0.0
        %1745 = vmatprep.subr.mxu0 0.0
        %1746 = vmatpush1.xpose.msra.mxu0 0.0
        %1747 = vmatprep.subr.mxu0 0.0
        %1748 = vmatpush1.xpose.msra.mxu0 0.0
        %1749 = vmatprep.subr.mxu0 0.0
        %1750 = vmatpush1.xpose.msra.mxu0 0.0
        %1751 = vmatprep.subr.mxu0 0.0
        %1752 = vmatpush1.xpose.msra.mxu0 0.0
        %1753 = vmatprep.subr.mxu0 0.0
        %1754 = vmatpush1.xpose.msra.mxu0 0.0
        %1755 = vmatprep.subr.mxu0 0.0
        %1756 = vmatpush1.xpose.msra.mxu0 0.0
        %1757 = vmatprep.subr.mxu0 0.0
        %1758 = vmatpush1.xpose.msra.mxu0 0.0
        %1759 = vmatprep.subr.mxu0 0.0
        %1760 = vmatpush1.xpose.msra.mxu0 0.0
        %1761 = vmatprep.subr.mxu0 0.0
        %1762 = vmatpush1.xpose.msra.mxu0 0.0
        %1763 = vmatprep.subr.mxu0 0.0
        %1764 = vmatpush1.xpose.msra.mxu0 0.0
        %1765 = vmatprep.subr.mxu0 0.0
        %1766 = vmatpush1.xpose.msra.mxu0 %v1361
        %1767 = vmatprep.subr.mxu0 0.0
        %1768 = vmatpush2.xpose.msra.mxu0 0.0
        %1769 = vmatprep.subr.mxu0 0.0
        %1770 = vmatpush2.xpose.msra.mxu0 0.0
        %1771 = vmatprep.subr.mxu0 0.0
        %1772 = vmatpush2.xpose.msra.mxu0 0.0
        %1773 = vmatprep.subr.mxu0 0.0
        %1774 = vmatpush2.xpose.msra.mxu0 0.0
        %1775 = vmatprep.subr.mxu0 0.0
        %1776 = vmatpush2.xpose.msra.mxu0 0.0
        %1777 = vmatprep.subr.mxu0 0.0
        %1778 = vmatpush2.xpose.msra.mxu0 0.0
        %1779 = vmatprep.subr.mxu0 0.0
        %1780 = vmatpush2.xpose.msra.mxu0 0.0
        %1781 = vmatprep.subr.mxu0 0.0
        %1782 = vmatpush2.xpose.msra.mxu0 0.0
        %1783 = vmatprep.subr.mxu0 0.0
        %1784 = vmatpush2.xpose.msra.mxu0 0.0
        %1785 = vmatprep.subr.mxu0 0.0
        %1786 = vmatpush2.xpose.msra.mxu0 0.0
        %1787 = vmatprep.subr.mxu0 0.0
        %1788 = vmatpush2.xpose.msra.mxu0 0.0
        %1789 = vmatprep.subr.mxu0 0.0
        %1790 = vmatpush2.xpose.msra.mxu0 0.0
        %1791 = vmatprep.subr.mxu0 0.0
        %1792 = vmatpush2.xpose.msra.mxu0 0.0
        %1793 = vmatprep.subr.mxu0 0.0
        %1794 = vmatpush2.xpose.msra.mxu0 0.0
        %1795 = vmatprep.subr.mxu0 0.0
        %1796 = vmatpush2.xpose.msra.mxu0 0.0
        %1797 = vmatprep.subr.mxu0 0.0
        %1798 = vmatpush2.xpose.msra.mxu0 0.0
        %1799 = vmatprep.mubr.f32.mxu0 0.0
        %1800 = vmatmul.mubr.f32.gmra.mxu0 %v1577
        %v1801 = vpop.f32.mrf.mxu0
        %v1802 = vadd.f32 %v1080, %v1801
        %v1803 = vpop.f32.mrf.mxu0
        %1804 = vdwg.mxu0
        %v1805 = vsel %vm1650, %v1802, -inf
        %1806 = vmax.xlane.f32.xlu0 %v1805
        %v1807 = vpop.xlane.xlu0 %1806
        %v1808 = vsub.f32 %v1802, %v1807
        %v1809 = vmul.f32 %v1808, 1.442695
        %v1810 = vpow.pop %v1809
        %v1811 = vsel %vm1650, %v1810, 0.0
        %1812 = vadd.xlane.f32.xlu0 %v1811
        %v1813 = vpop.xlane.xlu0 %1812
        %v1814 = vrcp.pop %v1813
        %v1815 = vmul.f32 %v1810, %v1814
        %v1817 = vsel %vm1650, %v1815, 0
        %1819 = vmatprep.subr.mxu0 0.0
        %1820 = vmatpush1.msra.mxu0 0.0
        %1821 = vmatprep.subr.mxu0 0.0
        %1822 = vmatpush1.msra.mxu0 0.0
        %1823 = vmatprep.subr.mxu0 0.0
        %1824 = vmatpush1.msra.mxu0 0.0
        %1825 = vmatprep.subr.mxu0 0.0
        %1826 = vmatpush1.msra.mxu0 0.0
        %1827 = vmatprep.subr.mxu0 0.0
        %1828 = vmatpush1.msra.mxu0 0.0
        %1829 = vmatprep.subr.mxu0 0.0
        %1830 = vmatpush1.msra.mxu0 0.0
        %1831 = vmatprep.subr.mxu0 0.0
        %1832 = vmatpush1.msra.mxu0 0.0
        %1833 = vmatprep.subr.mxu0 0.0
        %1834 = vmatpush1.msra.mxu0 0.0
        %1835 = vmatprep.subr.mxu0 0.0
        %1836 = vmatpush1.msra.mxu0 0.0
        %1837 = vmatprep.subr.mxu0 0.0
        %1838 = vmatpush1.msra.mxu0 0.0
        %1839 = vmatprep.subr.mxu0 0.0
        %1840 = vmatpush1.msra.mxu0 0.0
        %1841 = vmatprep.subr.mxu0 0.0
        %1842 = vmatpush1.msra.mxu0 0.0
        %1843 = vmatprep.subr.mxu0 0.0
        %1844 = vmatpush1.msra.mxu0 0.0
        %1845 = vmatprep.subr.mxu0 0.0
        %1846 = vmatpush1.msra.mxu0 0.0
        %1847 = vmatprep.subr.mxu0 0.0
        %1848 = vmatpush1.msra.mxu0 0.0
        %1849 = vmatprep.subr.mxu0 0.0
        %1850 = vmatpush1.msra.mxu0 %v1503
        %1851 = vmatprep.subr.mxu0 0.0
        %1852 = vmatpush2.msra.mxu0 0.0
        %1853 = vmatprep.subr.mxu0 0.0
        %1854 = vmatpush2.msra.mxu0 0.0
        %1855 = vmatprep.subr.mxu0 0.0
        %1856 = vmatpush2.msra.mxu0 0.0
        %1857 = vmatprep.subr.mxu0 0.0
        %1858 = vmatpush2.msra.mxu0 0.0
        %1859 = vmatprep.subr.mxu0 0.0
        %1860 = vmatpush2.msra.mxu0 0.0
        %1861 = vmatprep.subr.mxu0 0.0
        %1862 = vmatpush2.msra.mxu0 0.0
        %1863 = vmatprep.subr.mxu0 0.0
        %1864 = vmatpush2.msra.mxu0 0.0
        %1865 = vmatprep.subr.mxu0 0.0
        %1866 = vmatpush2.msra.mxu0 0.0
        %1867 = vmatprep.subr.mxu0 0.0
        %1868 = vmatpush2.msra.mxu0 0.0
        %1869 = vmatprep.subr.mxu0 0.0
        %1870 = vmatpush2.msra.mxu0 0.0
        %1871 = vmatprep.subr.mxu0 0.0
        %1872 = vmatpush2.msra.mxu0 0.0
        %1873 = vmatprep.subr.mxu0 0.0
        %1874 = vmatpush2.msra.mxu0 0.0
        %1875 = vmatprep.subr.mxu0 0.0
        %1876 = vmatpush2.msra.mxu0 0.0
        %1877 = vmatprep.subr.mxu0 0.0
        %1878 = vmatpush2.msra.mxu0 0.0
        %1879 = vmatprep.subr.mxu0 0.0
        %1880 = vmatpush2.msra.mxu0 0.0
        %1881 = vmatprep.subr.mxu0 0.0
        %1882 = vmatpush2.msra.mxu0 0.0
        %1883 = vmatprep.mubr.f32.mxu0 0.0
        %1884 = vmatmul.mubr.f32.gmra.mxu0 %v1817
        %v1885 = vpop.f32.mrf.mxu0
        %v1886 = vadd.f32 0.0, %v1885
        %v1887 = vpop.f32.mrf.mxu0
        %1888 = vdwg.mxu0
        %1889 = vmatprep.subr.mxu0 0.0
        %1890 = vmatpush1.xpose.msra.mxu0 0.0
        %1891 = vmatprep.subr.mxu0 0.0
        %1892 = vmatpush1.xpose.msra.mxu0 0.0
        %1893 = vmatprep.subr.mxu0 0.0
        %1894 = vmatpush1.xpose.msra.mxu0 0.0
        %1895 = vmatprep.subr.mxu0 0.0
        %1896 = vmatpush1.xpose.msra.mxu0 0.0
        %1897 = vmatprep.subr.mxu0 0.0
        %1898 = vmatpush1.xpose.msra.mxu0 0.0
        %1899 = vmatprep.subr.mxu0 0.0
        %1900 = vmatpush1.xpose.msra.mxu0 0.0
        %1901 = vmatprep.subr.mxu0 0.0
        %1902 = vmatpush1.xpose.msra.mxu0 0.0
        %1903 = vmatprep.subr.mxu0 0.0
        %1904 = vmatpush1.xpose.msra.mxu0 0.0
        %1905 = vmatprep.subr.mxu0 0.0
        %1906 = vmatpush1.xpose.msra.mxu0 0.0
        %1907 = vmatprep.subr.mxu0 0.0
        %1908 = vmatpush1.xpose.msra.mxu0 0.0
        %1909 = vmatprep.subr.mxu0 0.0
        %1910 = vmatpush1.xpose.msra.mxu0 0.0
        %1911 = vmatprep.subr.mxu0 0.0
        %1912 = vmatpush1.xpose.msra.mxu0 0.0
        %1913 = vmatprep.subr.mxu0 0.0
        %1914 = vmatpush1.xpose.msra.mxu0 0.0
        %1915 = vmatprep.subr.mxu0 0.0
        %1916 = vmatpush1.xpose.msra.mxu0 0.0
        %1917 = vmatprep.subr.mxu0 0.0
        %1918 = vmatpush1.xpose.msra.mxu0 0.0
        %1919 = vmatprep.subr.mxu0 0.0
        %1920 = vmatpush1.xpose.msra.mxu0 %v1430
        %1921 = vmatprep.subr.mxu0 0.0
        %1922 = vmatpush2.xpose.msra.mxu0 0.0
        %1923 = vmatprep.subr.mxu0 0.0
        %1924 = vmatpush2.xpose.msra.mxu0 0.0
        %1925 = vmatprep.subr.mxu0 0.0
        %1926 = vmatpush2.xpose.msra.mxu0 0.0
        %1927 = vmatprep.subr.mxu0 0.0
        %1928 = vmatpush2.xpose.msra.mxu0 0.0
        %1929 = vmatprep.subr.mxu0 0.0
        %1930 = vmatpush2.xpose.msra.mxu0 0.0
        %1931 = vmatprep.subr.mxu0 0.0
        %1932 = vmatpush2.xpose.msra.mxu0 0.0
        %1933 = vmatprep.subr.mxu0 0.0
        %1934 = vmatpush2.xpose.msra.mxu0 0.0
        %1935 = vmatprep.subr.mxu0 0.0
        %1936 = vmatpush2.xpose.msra.mxu0 0.0
        %1937 = vmatprep.subr.mxu0 0.0
        %1938 = vmatpush2.xpose.msra.mxu0 0.0
        %1939 = vmatprep.subr.mxu0 0.0
        %1940 = vmatpush2.xpose.msra.mxu0 0.0
        %1941 = vmatprep.subr.mxu0 0.0
        %1942 = vmatpush2.xpose.msra.mxu0 0.0
        %1943 = vmatprep.subr.mxu0 0.0
        %1944 = vmatpush2.xpose.msra.mxu0 0.0
        %1945 = vmatprep.subr.mxu0 0.0
        %1946 = vmatpush2.xpose.msra.mxu0 0.0
        %1947 = vmatprep.subr.mxu0 0.0
        %1948 = vmatpush2.xpose.msra.mxu0 0.0
        %1949 = vmatprep.subr.mxu0 0.0
        %1950 = vmatpush2.xpose.msra.mxu0 0.0
        %1951 = vmatprep.subr.mxu0 0.0
        %1952 = vmatpush2.xpose.msra.mxu0 0.0
        %1953 = vmatprep.mubr.f32.mxu0 0.0
        %1954 = vmatmul.mubr.f32.gmra.mxu0 %v1578
        %v1955 = vpop.f32.mrf.mxu0
        %v1956 = vadd.f32 %v1080, %v1955
        %v1957 = vpop.f32.mrf.mxu0
        %1958 = vdwg.mxu0
        %v1959 = vsel %vm1650, %v1956, -inf
        %1960 = vmax.xlane.f32.xlu0 %v1959
        %v1961 = vpop.xlane.xlu0 %1960
        %v1962 = vsub.f32 %v1956, %v1961
        %v1963 = vmul.f32 %v1962, 1.442695
        %v1964 = vpow.pop %v1963
        %v1965 = vsel %vm1650, %v1964, 0.0
        %1966 = vadd.xlane.f32.xlu0 %v1965
        %v1967 = vpop.xlane.xlu0 %1966
        %v1968 = vrcp.pop %v1967
        %v1969 = vmul.f32 %v1964, %v1968
        %v1971 = vsel %vm1650, %v1969, 0
        %1973 = vmatprep.subr.mxu0 0.0
        %1974 = vmatpush1.msra.mxu0 0.0
        %1975 = vmatprep.subr.mxu0 0.0
        %1976 = vmatpush1.msra.mxu0 0.0
        %1977 = vmatprep.subr.mxu0 0.0
        %1978 = vmatpush1.msra.mxu0 0.0
        %1979 = vmatprep.subr.mxu0 0.0
        %1980 = vmatpush1.msra.mxu0 0.0
        %1981 = vmatprep.subr.mxu0 0.0
        %1982 = vmatpush1.msra.mxu0 0.0
        %1983 = vmatprep.subr.mxu0 0.0
        %1984 = vmatpush1.msra.mxu0 0.0
        %1985 = vmatprep.subr.mxu0 0.0
        %1986 = vmatpush1.msra.mxu0 0.0
        %1987 = vmatprep.subr.mxu0 0.0
        %1988 = vmatpush1.msra.mxu0 0.0
        %1989 = vmatprep.subr.mxu0 0.0
        %1990 = vmatpush1.msra.mxu0 0.0
        %1991 = vmatprep.subr.mxu0 0.0
        %1992 = vmatpush1.msra.mxu0 0.0
        %1993 = vmatprep.subr.mxu0 0.0
        %1994 = vmatpush1.msra.mxu0 0.0
        %1995 = vmatprep.subr.mxu0 0.0
        %1996 = vmatpush1.msra.mxu0 0.0
        %1997 = vmatprep.subr.mxu0 0.0
        %1998 = vmatpush1.msra.mxu0 0.0
        %1999 = vmatprep.subr.mxu0 0.0
        %2000 = vmatpush1.msra.mxu0 0.0
        %2001 = vmatprep.subr.mxu0 0.0
        %2002 = vmatpush1.msra.mxu0 0.0
        %2003 = vmatprep.subr.mxu0 0.0
        %2004 = vmatpush1.msra.mxu0 %v1572
        %2005 = vmatprep.subr.mxu0 0.0
        %2006 = vmatpush2.msra.mxu0 0.0
        %2007 = vmatprep.subr.mxu0 0.0
        %2008 = vmatpush2.msra.mxu0 0.0
        %2009 = vmatprep.subr.mxu0 0.0
        %2010 = vmatpush2.msra.mxu0 0.0
        %2011 = vmatprep.subr.mxu0 0.0
        %2012 = vmatpush2.msra.mxu0 0.0
        %2013 = vmatprep.subr.mxu0 0.0
        %2014 = vmatpush2.msra.mxu0 0.0
        %2015 = vmatprep.subr.mxu0 0.0
        %2016 = vmatpush2.msra.mxu0 0.0
        %2017 = vmatprep.subr.mxu0 0.0
        %2018 = vmatpush2.msra.mxu0 0.0
        %2019 = vmatprep.subr.mxu0 0.0
        %2020 = vmatpush2.msra.mxu0 0.0
        %2021 = vmatprep.subr.mxu0 0.0
        %2022 = vmatpush2.msra.mxu0 0.0
        %2023 = vmatprep.subr.mxu0 0.0
        %2024 = vmatpush2.msra.mxu0 0.0
        %2025 = vmatprep.subr.mxu0 0.0
        %2026 = vmatpush2.msra.mxu0 0.0
        %2027 = vmatprep.subr.mxu0 0.0
        %2028 = vmatpush2.msra.mxu0 0.0
        %2029 = vmatprep.subr.mxu0 0.0
        %2030 = vmatpush2.msra.mxu0 0.0
        %2031 = vmatprep.subr.mxu0 0.0
        %2032 = vmatpush2.msra.mxu0 0.0
        %2033 = vmatprep.subr.mxu0 0.0
        %2034 = vmatpush2.msra.mxu0 0.0
        %2035 = vmatprep.subr.mxu0 0.0
        %2036 = vmatpush2.msra.mxu0 0.0
        %2037 = vmatprep.mubr.f32.mxu0 0.0
        %2038 = vmatmul.mubr.f32.gmra.mxu0 %v1971
        %v2039 = vpop.f32.mrf.mxu0
        %v2040 = vadd.f32 0.0, %v2039
        %v2041 = vpop.f32.mrf.mxu0
        %2042 = vdwg.mxu0
        %2043 = vmatprep.subr.mxu0 0.0
        %2044 = vmatpush1.xpose.msra.mxu0 0.0
        %2045 = vmatprep.subr.mxu0 0.0
        %2046 = vmatpush1.xpose.msra.mxu0 0.0
        %2047 = vmatprep.subr.mxu0 0.0
        %2048 = vmatpush1.xpose.msra.mxu0 0.0
        %2049 = vmatprep.subr.mxu0 0.0
        %2050 = vmatpush1.xpose.msra.mxu0 0.0
        %2051 = vmatprep.subr.mxu0 0.0
        %2052 = vmatpush1.xpose.msra.mxu0 0.0
        %2053 = vmatprep.subr.mxu0 0.0
        %2054 = vmatpush1.xpose.msra.mxu0 0.0
        %2055 = vmatprep.subr.mxu0 0.0
        %2056 = vmatpush1.xpose.msra.mxu0 0.0
        %2057 = vmatprep.subr.mxu0 0.0
        %2058 = vmatpush1.xpose.msra.mxu0 0.0
        %2059 = vmatprep.subr.mxu0 0.0
        %2060 = vmatpush1.xpose.msra.mxu0 0.0
        %2061 = vmatprep.subr.mxu0 0.0
        %2062 = vmatpush1.xpose.msra.mxu0 0.0
        %2063 = vmatprep.subr.mxu0 0.0
        %2064 = vmatpush1.xpose.msra.mxu0 0.0
        %2065 = vmatprep.subr.mxu0 0.0
        %2066 = vmatpush1.xpose.msra.mxu0 0.0
        %2067 = vmatprep.subr.mxu0 0.0
        %2068 = vmatpush1.xpose.msra.mxu0 0.0
        %2069 = vmatprep.subr.mxu0 0.0
        %2070 = vmatpush1.xpose.msra.mxu0 0.0
        %2071 = vmatprep.subr.mxu0 0.0
        %2072 = vmatpush1.xpose.msra.mxu0 0.0
        %2073 = vmatprep.subr.mxu0 0.0
        %2074 = vmatpush1.xpose.msra.mxu0 %v1432
        %2075 = vmatprep.subr.mxu0 0.0
        %2076 = vmatpush2.xpose.msra.mxu0 0.0
        %2077 = vmatprep.subr.mxu0 0.0
        %2078 = vmatpush2.xpose.msra.mxu0 0.0
        %2079 = vmatprep.subr.mxu0 0.0
        %2080 = vmatpush2.xpose.msra.mxu0 0.0
        %2081 = vmatprep.subr.mxu0 0.0
        %2082 = vmatpush2.xpose.msra.mxu0 0.0
        %2083 = vmatprep.subr.mxu0 0.0
        %2084 = vmatpush2.xpose.msra.mxu0 0.0
        %2085 = vmatprep.subr.mxu0 0.0
        %2086 = vmatpush2.xpose.msra.mxu0 0.0
        %2087 = vmatprep.subr.mxu0 0.0
        %2088 = vmatpush2.xpose.msra.mxu0 0.0
        %2089 = vmatprep.subr.mxu0 0.0
        %2090 = vmatpush2.xpose.msra.mxu0 0.0
        %2091 = vmatprep.subr.mxu0 0.0
        %2092 = vmatpush2.xpose.msra.mxu0 0.0
        %2093 = vmatprep.subr.mxu0 0.0
        %2094 = vmatpush2.xpose.msra.mxu0 0.0
        %2095 = vmatprep.subr.mxu0 0.0
        %2096 = vmatpush2.xpose.msra.mxu0 0.0
        %2097 = vmatprep.subr.mxu0 0.0
        %2098 = vmatpush2.xpose.msra.mxu0 0.0
        %2099 = vmatprep.subr.mxu0 0.0
        %2100 = vmatpush2.xpose.msra.mxu0 0.0
        %2101 = vmatprep.subr.mxu0 0.0
        %2102 = vmatpush2.xpose.msra.mxu0 0.0
        %2103 = vmatprep.subr.mxu0 0.0
        %2104 = vmatpush2.xpose.msra.mxu0 0.0
        %2105 = vmatprep.subr.mxu0 0.0
        %2106 = vmatpush2.xpose.msra.mxu0 0.0
        %2107 = vmatprep.mubr.f32.mxu0 0.0
        %2108 = vmatmul.mubr.f32.gmra.mxu0 %v1579
        %v2109 = vpop.f32.mrf.mxu0
        %v2110 = vadd.f32 %v1080, %v2109
        %v2111 = vpop.f32.mrf.mxu0
        %2112 = vdwg.mxu0
        %v2113 = vsel %vm1650, %v2110, -inf
        %2114 = vmax.xlane.f32.xlu0 %v2113
        %v2115 = vpop.xlane.xlu0 %2114
        %v2116 = vsub.f32 %v2110, %v2115
        %v2117 = vmul.f32 %v2116, 1.442695
        %v2118 = vpow.pop %v2117
        %v2119 = vsel %vm1650, %v2118, 0.0
        %2120 = vadd.xlane.f32.xlu0 %v2119
        %v2121 = vpop.xlane.xlu0 %2120
        %v2122 = vrcp.pop %v2121
        %v2123 = vmul.f32 %v2118, %v2122
        %v2125 = vsel %vm1650, %v2123, 0
        %2127 = vmatprep.subr.mxu0 0.0
        %2128 = vmatpush1.msra.mxu0 0.0
        %2129 = vmatprep.subr.mxu0 0.0
        %2130 = vmatpush1.msra.mxu0 0.0
        %2131 = vmatprep.subr.mxu0 0.0
        %2132 = vmatpush1.msra.mxu0 0.0
        %2133 = vmatprep.subr.mxu0 0.0
        %2134 = vmatpush1.msra.mxu0 0.0
        %2135 = vmatprep.subr.mxu0 0.0
        %2136 = vmatpush1.msra.mxu0 0.0
        %2137 = vmatprep.subr.mxu0 0.0
        %2138 = vmatpush1.msra.mxu0 0.0
        %2139 = vmatprep.subr.mxu0 0.0
        %2140 = vmatpush1.msra.mxu0 0.0
        %2141 = vmatprep.subr.mxu0 0.0
        %2142 = vmatpush1.msra.mxu0 0.0
        %2143 = vmatprep.subr.mxu0 0.0
        %2144 = vmatpush1.msra.mxu0 0.0
        %2145 = vmatprep.subr.mxu0 0.0
        %2146 = vmatpush1.msra.mxu0 0.0
        %2147 = vmatprep.subr.mxu0 0.0
        %2148 = vmatpush1.msra.mxu0 0.0
        %2149 = vmatprep.subr.mxu0 0.0
        %2150 = vmatpush1.msra.mxu0 0.0
        %2151 = vmatprep.subr.mxu0 0.0
        %2152 = vmatpush1.msra.mxu0 0.0
        %2153 = vmatprep.subr.mxu0 0.0
        %2154 = vmatpush1.msra.mxu0 0.0
        %2155 = vmatprep.subr.mxu0 0.0
        %2156 = vmatpush1.msra.mxu0 0.0
        %2157 = vmatprep.subr.mxu0 0.0
        %2158 = vmatpush1.msra.mxu0 %v1574
        %2159 = vmatprep.subr.mxu0 0.0
        %2160 = vmatpush2.msra.mxu0 0.0
        %2161 = vmatprep.subr.mxu0 0.0
        %2162 = vmatpush2.msra.mxu0 0.0
        %2163 = vmatprep.subr.mxu0 0.0
        %2164 = vmatpush2.msra.mxu0 0.0
        %2165 = vmatprep.subr.mxu0 0.0
        %2166 = vmatpush2.msra.mxu0 0.0
        %2167 = vmatprep.subr.mxu0 0.0
        %2168 = vmatpush2.msra.mxu0 0.0
        %2169 = vmatprep.subr.mxu0 0.0
        %2170 = vmatpush2.msra.mxu0 0.0
        %2171 = vmatprep.subr.mxu0 0.0
        %2172 = vmatpush2.msra.mxu0 0.0
        %2173 = vmatprep.subr.mxu0 0.0
        %2174 = vmatpush2.msra.mxu0 0.0
        %2175 = vmatprep.subr.mxu0 0.0
        %2176 = vmatpush2.msra.mxu0 0.0
        %2177 = vmatprep.subr.mxu0 0.0
        %2178 = vmatpush2.msra.mxu0 0.0
        %2179 = vmatprep.subr.mxu0 0.0
        %2180 = vmatpush2.msra.mxu0 0.0
        %2181 = vmatprep.subr.mxu0 0.0
        %2182 = vmatpush2.msra.mxu0 0.0
        %2183 = vmatprep.subr.mxu0 0.0
        %2184 = vmatpush2.msra.mxu0 0.0
        %2185 = vmatprep.subr.mxu0 0.0
        %2186 = vmatpush2.msra.mxu0 0.0
        %2187 = vmatprep.subr.mxu0 0.0
        %2188 = vmatpush2.msra.mxu0 0.0
        %2189 = vmatprep.subr.mxu0 0.0
        %2190 = vmatpush2.msra.mxu0 0.0
        %2191 = vmatprep.mubr.f32.mxu0 0.0
        %2192 = vmatmul.mubr.f32.gmra.mxu0 %v2125
        %v2193 = vpop.f32.mrf.mxu0
        %v2194 = vadd.f32 0.0, %v2193
        %v2195 = vpop.f32.mrf.mxu0
        %2196 = vdwg.mxu0
        %v2198 = vlaneseq
        %v2199 = vshrl.u32 %v2198, 7
        %v2200 = vsub.s32 0, %v2199
        %v2201 = vrot.slane %v939, %v2200
        %2203 = vmatprep.subr.mxu0 0.0
        %2204 = vmatpush1.msra.mxu0 %v890
        %2205 = vmatprep.subr.mxu0 0.0
        %2206 = vmatpush1.msra.mxu0 %v889
        %2207 = vmatprep.subr.mxu0 0.0
        %2208 = vmatpush1.msra.mxu0 %v888
        %2209 = vmatprep.subr.mxu0 0.0
        %2210 = vmatpush1.msra.mxu0 %v887
        %2211 = vmatprep.subr.mxu0 0.0
        %2212 = vmatpush1.msra.mxu0 %v886
        %2213 = vmatprep.subr.mxu0 0.0
        %2214 = vmatpush1.msra.mxu0 %v885
        %2215 = vmatprep.subr.mxu0 0.0
        %2216 = vmatpush1.msra.mxu0 %v884
        %2217 = vmatprep.subr.mxu0 0.0
        %2218 = vmatpush1.msra.mxu0 %v883
        %2219 = vmatprep.subr.mxu0 0.0
        %2220 = vmatpush1.msra.mxu0 %v882
        %2221 = vmatprep.subr.mxu0 0.0
        %2222 = vmatpush1.msra.mxu0 %v881
        %2223 = vmatprep.subr.mxu0 0.0
        %2224 = vmatpush1.msra.mxu0 %v880
        %2225 = vmatprep.subr.mxu0 0.0
        %2226 = vmatpush1.msra.mxu0 %v879
        %2227 = vmatprep.subr.mxu0 0.0
        %2228 = vmatpush1.msra.mxu0 %v878
        %2229 = vmatprep.subr.mxu0 0.0
        %2230 = vmatpush1.msra.mxu0 %v877
        %2231 = vmatprep.subr.mxu0 0.0
        %2232 = vmatpush1.msra.mxu0 %v876
        %2233 = vmatprep.subr.mxu0 0.0
        %2234 = vmatpush1.msra.mxu0 %v875
        %2235 = vmatprep.subr.mxu0 0.0
        %2236 = vmatpush2.msra.mxu0 %v906
        %2237 = vmatprep.subr.mxu0 0.0
        %2238 = vmatpush2.msra.mxu0 %v905
        %2239 = vmatprep.subr.mxu0 0.0
        %2240 = vmatpush2.msra.mxu0 %v904
        %2241 = vmatprep.subr.mxu0 0.0
        %2242 = vmatpush2.msra.mxu0 %v903
        %2243 = vmatprep.subr.mxu0 0.0
        %2244 = vmatpush2.msra.mxu0 %v902
        %2245 = vmatprep.subr.mxu0 0.0
        %2246 = vmatpush2.msra.mxu0 %v901
        %2247 = vmatprep.subr.mxu0 0.0
        %2248 = vmatpush2.msra.mxu0 %v900
        %2249 = vmatprep.subr.mxu0 0.0
        %2250 = vmatpush2.msra.mxu0 %v899
        %2251 = vmatprep.subr.mxu0 0.0
        %2252 = vmatpush2.msra.mxu0 %v898
        %2253 = vmatprep.subr.mxu0 0.0
        %2254 = vmatpush2.msra.mxu0 %v897
        %2255 = vmatprep.subr.mxu0 0.0
        %2256 = vmatpush2.msra.mxu0 %v896
        %2257 = vmatprep.subr.mxu0 0.0
        %2258 = vmatpush2.msra.mxu0 %v895
        %2259 = vmatprep.subr.mxu0 0.0
        %2260 = vmatpush2.msra.mxu0 %v894
        %2261 = vmatprep.subr.mxu0 0.0
        %2262 = vmatpush2.msra.mxu0 %v893
        %2263 = vmatprep.subr.mxu0 0.0
        %2264 = vmatpush2.msra.mxu0 %v892
        %2265 = vmatprep.subr.mxu0 0.0
        %2266 = vmatpush2.msra.mxu0 %v891
        %2267 = vmatprep.mubr.f32.mxu0 %v1886
        %2268 = vmatmul.mubr.f32.gmra.mxu0 %v1732
        %v2269 = vpop.f32.mrf.mxu0
        %v2270 = vadd.f32 %v2201, %v2269
        %v2271 = vpop.f32.mrf.mxu0
        %2272 = vdwg.mxu0
        %2273 = vmatprep.subr.mxu0 0.0
        %2274 = vmatpush1.msra.mxu0 %v922
        %2275 = vmatprep.subr.mxu0 0.0
        %2276 = vmatpush1.msra.mxu0 %v921
        %2277 = vmatprep.subr.mxu0 0.0
        %2278 = vmatpush1.msra.mxu0 %v920
        %2279 = vmatprep.subr.mxu0 0.0
        %2280 = vmatpush1.msra.mxu0 %v919
        %2281 = vmatprep.subr.mxu0 0.0
        %2282 = vmatpush1.msra.mxu0 %v918
        %2283 = vmatprep.subr.mxu0 0.0
        %2284 = vmatpush1.msra.mxu0 %v917
        %2285 = vmatprep.subr.mxu0 0.0
        %2286 = vmatpush1.msra.mxu0 %v916
        %2287 = vmatprep.subr.mxu0 0.0
        %2288 = vmatpush1.msra.mxu0 %v915
        %2289 = vmatprep.subr.mxu0 0.0
        %2290 = vmatpush1.msra.mxu0 %v914
        %2291 = vmatprep.subr.mxu0 0.0
        %2292 = vmatpush1.msra.mxu0 %v913
        %2293 = vmatprep.subr.mxu0 0.0
        %2294 = vmatpush1.msra.mxu0 %v912
        %2295 = vmatprep.subr.mxu0 0.0
        %2296 = vmatpush1.msra.mxu0 %v911
        %2297 = vmatprep.subr.mxu0 0.0
        %2298 = vmatpush1.msra.mxu0 %v910
        %2299 = vmatprep.subr.mxu0 0.0
        %2300 = vmatpush1.msra.mxu0 %v909
        %2301 = vmatprep.subr.mxu0 0.0
        %2302 = vmatpush1.msra.mxu0 %v908
        %2303 = vmatprep.subr.mxu0 0.0
        %2304 = vmatpush1.msra.mxu0 %v907
        %2305 = vmatprep.subr.mxu0 0.0
        %2306 = vmatpush2.msra.mxu0 %v938
        %2307 = vmatprep.subr.mxu0 0.0
        %2308 = vmatpush2.msra.mxu0 %v937
        %2309 = vmatprep.subr.mxu0 0.0
        %2310 = vmatpush2.msra.mxu0 %v936
        %2311 = vmatprep.subr.mxu0 0.0
        %2312 = vmatpush2.msra.mxu0 %v935
        %2313 = vmatprep.subr.mxu0 0.0
        %2314 = vmatpush2.msra.mxu0 %v934
        %2315 = vmatprep.subr.mxu0 0.0
        %2316 = vmatpush2.msra.mxu0 %v933
        %2317 = vmatprep.subr.mxu0 0.0
        %2318 = vmatpush2.msra.mxu0 %v932
        %2319 = vmatprep.subr.mxu0 0.0
        %2320 = vmatpush2.msra.mxu0 %v931
        %2321 = vmatprep.subr.mxu0 0.0
        %2322 = vmatpush2.msra.mxu0 %v930
        %2323 = vmatprep.subr.mxu0 0.0
        %2324 = vmatpush2.msra.mxu0 %v929
        %2325 = vmatprep.subr.mxu0 0.0
        %2326 = vmatpush2.msra.mxu0 %v928
        %2327 = vmatprep.subr.mxu0 0.0
        %2328 = vmatpush2.msra.mxu0 %v927
        %2329 = vmatprep.subr.mxu0 0.0
        %2330 = vmatpush2.msra.mxu0 %v926
        %2331 = vmatprep.subr.mxu0 0.0
        %2332 = vmatpush2.msra.mxu0 %v925
        %2333 = vmatprep.subr.mxu0 0.0
        %2334 = vmatpush2.msra.mxu0 %v924
        %2335 = vmatprep.subr.mxu0 0.0
        %2336 = vmatpush2.msra.mxu0 %v923
        %2337 = vmatprep.mubr.f32.mxu0 %v2194
        %2338 = vmatmul.mubr.f32.gmra.mxu0 %v2040
        %v2339 = vpop.f32.mrf.mxu0
        %v2340 = vadd.f32 %v2270, %v2339
        %v2341 = vpop.f32.mrf.mxu0
        %2342 = vdwg.mxu0
        %v2343 = vadd.f32 %v2340, %v1075
        %v2344 = vsel %vm1146, %v2343, 0.0
        %2345 = vadd.xlane.f32.xlu0 %v2344
        %v2346 = vpop.xlane.xlu0 %2345
        %v2347 = vrcp.pop 32.0
        %v2348 = vmul.f32 %v2346, %v2347
        %v2349 = vsub.f32 %v2343, %v2348
        %v2350 = vmul.f32 %v2349, %v2349
        %v2351 = vsel %vm1146, %v2350, 0.0
        %2352 = vadd.xlane.f32.xlu0 %v2351
        %v2353 = vpop.xlane.xlu0 %2352
        %v2354 = vmul.f32 %v2353, %v2347
        %v2355 = vadd.f32 %v2354, 1e-05
        %v2356 = vrsqrt.pop %v2355
        %v2357 = vmul.f32 %v2349, %v2356
        %v2359 = vlaneseq
        %v2360 = vshrl.u32 %v2359, 7
        %v2361 = vsub.s32 0, %v2360
        %v2362 = vrot.slane %v940, %v2361
        %v2364 = vmul.f32 %v2357, %v2362
        %v2366 = vlaneseq
        %v2367 = vshrl.u32 %v2366, 7
        %v2368 = vsub.s32 0, %v2367
        %v2369 = vrot.slane %v941, %v2368
        %v2371 = vadd.f32 %v2364, %v2369
        %v2373 = vlaneseq
        %v2374 = vshrl.u32 %v2373, 7
        %v2375 = vsub.s32 0, %v2374
        %v2376 = vrot.slane %v958, %v2375
        %v2377 = vlaneseq
        %v2378 = vshrl.u32 %v2377, 7
        %v2379 = vsub.s32 1, %v2378
        %v2380 = vrot.slane %v958, %v2379
        %v2381 = vlaneseq
        %v2382 = vshrl.u32 %v2381, 7
        %v2383 = vsub.s32 2, %v2382
        %v2384 = vrot.slane %v958, %v2383
        %v2385 = vlaneseq
        %v2386 = vshrl.u32 %v2385, 7
        %v2387 = vsub.s32 3, %v2386
        %v2388 = vrot.slane %v958, %v2387
        %v2394 = vsel %vm1146, %v2371, 0
        %2396 = vmatprep.subr.mxu0 0.0
        %2397 = vmatpush1.msra.mxu0 0.0
        %2398 = vmatprep.subr.mxu0 0.0
        %2399 = vmatpush1.msra.mxu0 0.0
        %2400 = vmatprep.subr.mxu0 0.0
        %2401 = vmatpush1.msra.mxu0 0.0
        %2402 = vmatprep.subr.mxu0 0.0
        %2403 = vmatpush1.msra.mxu0 0.0
        %2404 = vmatprep.subr.mxu0 0.0
        %2405 = vmatpush1.msra.mxu0 0.0
        %2406 = vmatprep.subr.mxu0 0.0
        %2407 = vmatpush1.msra.mxu0 0.0
        %2408 = vmatprep.subr.mxu0 0.0
        %2409 = vmatpush1.msra.mxu0 0.0
        %2410 = vmatprep.subr.mxu0 0.0
        %2411 = vmatpush1.msra.mxu0 0.0
        %2412 = vmatprep.subr.mxu0 0.0
        %2413 = vmatpush1.msra.mxu0 0.0
        %2414 = vmatprep.subr.mxu0 0.0
        %2415 = vmatpush1.msra.mxu0 0.0
        %2416 = vmatprep.subr.mxu0 0.0
        %2417 = vmatpush1.msra.mxu0 0.0
        %2418 = vmatprep.subr.mxu0 0.0
        %2419 = vmatpush1.msra.mxu0 0.0
        %2420 = vmatprep.subr.mxu0 %v955
        %2421 = vmatpush1.msra.mxu0 %v954
        %2422 = vmatprep.subr.mxu0 %v951
        %2423 = vmatpush1.msra.mxu0 %v950
        %2424 = vmatprep.subr.mxu0 %v947
        %2425 = vmatpush1.msra.mxu0 %v946
        %2426 = vmatprep.subr.mxu0 %v943
        %2427 = vmatpush1.msra.mxu0 %v942
        %2428 = vmatprep.subr.mxu0 0.0
        %2429 = vmatpush2.msra.mxu0 0.0
        %2430 = vmatprep.subr.mxu0 0.0
        %2431 = vmatpush2.msra.mxu0 0.0
        %2432 = vmatprep.subr.mxu0 0.0
        %2433 = vmatpush2.msra.mxu0 0.0
        %2434 = vmatprep.subr.mxu0 0.0
        %2435 = vmatpush2.msra.mxu0 0.0
        %2436 = vmatprep.subr.mxu0 0.0
        %2437 = vmatpush2.msra.mxu0 0.0
        %2438 = vmatprep.subr.mxu0 0.0
        %2439 = vmatpush2.msra.mxu0 0.0
        %2440 = vmatprep.subr.mxu0 0.0
        %2441 = vmatpush2.msra.mxu0 0.0
        %2442 = vmatprep.subr.mxu0 0.0
        %2443 = vmatpush2.msra.mxu0 0.0
        %2444 = vmatprep.subr.mxu0 0.0
        %2445 = vmatpush2.msra.mxu0 0.0
        %2446 = vmatprep.subr.mxu0 0.0
        %2447 = vmatpush2.msra.mxu0 0.0
        %2448 = vmatprep.subr.mxu0 0.0
        %2449 = vmatpush2.msra.mxu0 0.0
        %2450 = vmatprep.subr.mxu0 0.0
        %2451 = vmatpush2.msra.mxu0 0.0
        %2452 = vmatprep.subr.mxu0 0.0
        %2453 = vmatpush2.msra.mxu0 0.0
        %2454 = vmatprep.subr.mxu0 0.0
        %2455 = vmatpush2.msra.mxu0 0.0
        %2456 = vmatprep.subr.mxu0 0.0
        %2457 = vmatpush2.msra.mxu0 0.0
        %2458 = vmatprep.subr.mxu0 0.0
        %2459 = vmatpush2.msra.mxu0 0.0
        %2460 = vmatprep.mubr.f32.mxu0 0.0
        %2461 = vmatmul.mubr.f32.gmra.mxu0 %v2394
        %v2462 = vpop.f32.mrf.mxu0
        %v2463 = vadd.f32 %v2376, %v2462
        %v2464 = vpop.f32.mrf.mxu0
        %v2465 = vadd.f32 %v2380, %v2464
        %2466 = vdwg.mxu0
        %2467 = vmatprep.subr.mxu0 0.0
        %2468 = vmatpush1.msra.mxu0 0.0
        %2469 = vmatprep.subr.mxu0 0.0
        %2470 = vmatpush1.msra.mxu0 0.0
        %2471 = vmatprep.subr.mxu0 0.0
        %2472 = vmatpush1.msra.mxu0 0.0
        %2473 = vmatprep.subr.mxu0 0.0
        %2474 = vmatpush1.msra.mxu0 0.0
        %2475 = vmatprep.subr.mxu0 0.0
        %2476 = vmatpush1.msra.mxu0 0.0
        %2477 = vmatprep.subr.mxu0 0.0
        %2478 = vmatpush1.msra.mxu0 0.0
        %2479 = vmatprep.subr.mxu0 0.0
        %2480 = vmatpush1.msra.mxu0 0.0
        %2481 = vmatprep.subr.mxu0 0.0
        %2482 = vmatpush1.msra.mxu0 0.0
        %2483 = vmatprep.subr.mxu0 0.0
        %2484 = vmatpush1.msra.mxu0 0.0
        %2485 = vmatprep.subr.mxu0 0.0
        %2486 = vmatpush1.msra.mxu0 0.0
        %2487 = vmatprep.subr.mxu0 0.0
        %2488 = vmatpush1.msra.mxu0 0.0
        %2489 = vmatprep.subr.mxu0 0.0
        %2490 = vmatpush1.msra.mxu0 0.0
        %2491 = vmatprep.subr.mxu0 %v957
        %2492 = vmatpush1.msra.mxu0 %v956
        %2493 = vmatprep.subr.mxu0 %v953
        %2494 = vmatpush1.msra.mxu0 %v952
        %2495 = vmatprep.subr.mxu0 %v949
        %2496 = vmatpush1.msra.mxu0 %v948
        %2497 = vmatprep.subr.mxu0 %v945
        %2498 = vmatpush1.msra.mxu0 %v944
        %2499 = vmatprep.subr.mxu0 0.0
        %2500 = vmatpush2.msra.mxu0 0.0
        %2501 = vmatprep.subr.mxu0 0.0
        %2502 = vmatpush2.msra.mxu0 0.0
        %2503 = vmatprep.subr.mxu0 0.0
        %2504 = vmatpush2.msra.mxu0 0.0
        %2505 = vmatprep.subr.mxu0 0.0
        %2506 = vmatpush2.msra.mxu0 0.0
        %2507 = vmatprep.subr.mxu0 0.0
        %2508 = vmatpush2.msra.mxu0 0.0
        %2509 = vmatprep.subr.mxu0 0.0
        %2510 = vmatpush2.msra.mxu0 0.0
        %2511 = vmatprep.subr.mxu0 0.0
        %2512 = vmatpush2.msra.mxu0 0.0
        %2513 = vmatprep.subr.mxu0 0.0
        %2514 = vmatpush2.msra.mxu0 0.0
        %2515 = vmatprep.subr.mxu0 0.0
        %2516 = vmatpush2.msra.mxu0 0.0
        %2517 = vmatprep.subr.mxu0 0.0
        %2518 = vmatpush2.msra.mxu0 0.0
        %2519 = vmatprep.subr.mxu0 0.0
        %2520 = vmatpush2.msra.mxu0 0.0
        %2521 = vmatprep.subr.mxu0 0.0
        %2522 = vmatpush2.msra.mxu0 0.0
        %2523 = vmatprep.subr.mxu0 0.0
        %2524 = vmatpush2.msra.mxu0 0.0
        %2525 = vmatprep.subr.mxu0 0.0
        %2526 = vmatpush2.msra.mxu0 0.0
        %2527 = vmatprep.subr.mxu0 0.0
        %2528 = vmatpush2.msra.mxu0 0.0
        %2529 = vmatprep.subr.mxu0 0.0
        %2530 = vmatpush2.msra.mxu0 0.0
        %2531 = vmatprep.mubr.f32.mxu0 0.0
        %2532 = vmatmul.mubr.f32.gmra.mxu0 %v2394
        %v2533 = vpop.f32.mrf.mxu0
        %v2534 = vadd.f32 %v2384, %v2533
        %v2535 = vpop.f32.mrf.mxu0
        %v2536 = vadd.f32 %v2388, %v2535
        %2537 = vdwg.mxu0
        %v2538 = vmul.f32 %v2463, 0.35355338
        %v2539 = vmul.f32 %v2465, 0.35355338
        %v2540 = vmul.f32 %v2534, 0.35355338
        %v2541 = vmul.f32 %v2536, 0.35355338
        %v2543 = vlaneseq
        %v2544 = vshrl.u32 %v2543, 7
        %v2545 = vsub.s32 0, %v2544
        %v2546 = vrot.slane %v991, %v2545
        %v2547 = vlaneseq
        %v2548 = vshrl.u32 %v2547, 7
        %v2549 = vsub.s32 1, %v2548
        %v2550 = vrot.slane %v991, %v2549
        %v2551 = vlaneseq
        %v2552 = vshrl.u32 %v2551, 7
        %v2553 = vsub.s32 2, %v2552
        %v2554 = vrot.slane %v991, %v2553
        %v2555 = vlaneseq
        %v2556 = vshrl.u32 %v2555, 7
        %v2557 = vsub.s32 3, %v2556
        %v2558 = vrot.slane %v991, %v2557
        %v2559 = vlaneseq
        %v2560 = vshrl.u32 %v2559, 7
        %v2561 = vsub.s32 4, %v2560
        %v2562 = vrot.slane %v991, %v2561
        %v2563 = vlaneseq
        %v2564 = vshrl.u32 %v2563, 7
        %v2565 = vsub.s32 5, %v2564
        %v2566 = vrot.slane %v991, %v2565
        %v2567 = vlaneseq
        %v2568 = vshrl.u32 %v2567, 7
        %v2569 = vsub.s32 6, %v2568
        %v2570 = vrot.slane %v991, %v2569
        %v2571 = vlaneseq
        %v2572 = vshrl.u32 %v2571, 7
        %v2573 = vsub.s32 7, %v2572
        %v2574 = vrot.slane %v991, %v2573
        %v2584 = vsel %vm1146, %v1076, 0
        %v2587 = vsel %vm1146, %v1077, 0
        %2589 = vmatprep.subr.mxu0 0.0
        %2590 = vmatpush1.msra.mxu0 0.0
        %2591 = vmatprep.subr.mxu0 0.0
        %2592 = vmatpush1.msra.mxu0 0.0
        %2593 = vmatprep.subr.mxu0 0.0
        %2594 = vmatpush1.msra.mxu0 0.0
        %2595 = vmatprep.subr.mxu0 0.0
        %2596 = vmatpush1.msra.mxu0 0.0
        %2597 = vmatprep.subr.mxu0 0.0
        %2598 = vmatpush1.msra.mxu0 0.0
        %2599 = vmatprep.subr.mxu0 0.0
        %2600 = vmatpush1.msra.mxu0 0.0
        %2601 = vmatprep.subr.mxu0 0.0
        %2602 = vmatpush1.msra.mxu0 0.0
        %2603 = vmatprep.subr.mxu0 0.0
        %2604 = vmatpush1.msra.mxu0 0.0
        %2605 = vmatprep.subr.mxu0 0.0
        %2606 = vmatpush1.msra.mxu0 0.0
        %2607 = vmatprep.subr.mxu0 0.0
        %2608 = vmatpush1.msra.mxu0 0.0
        %2609 = vmatprep.subr.mxu0 0.0
        %2610 = vmatpush1.msra.mxu0 0.0
        %2611 = vmatprep.subr.mxu0 0.0
        %2612 = vmatpush1.msra.mxu0 0.0
        %2613 = vmatprep.subr.mxu0 %v984
        %2614 = vmatpush1.msra.mxu0 %v983
        %2615 = vmatprep.subr.mxu0 %v976
        %2616 = vmatpush1.msra.mxu0 %v975
        %2617 = vmatprep.subr.mxu0 %v968
        %2618 = vmatpush1.msra.mxu0 %v967
        %2619 = vmatprep.subr.mxu0 %v960
        %2620 = vmatpush1.msra.mxu0 %v959
        %2621 = vmatprep.subr.mxu0 0.0
        %2622 = vmatpush2.msra.mxu0 0.0
        %2623 = vmatprep.subr.mxu0 0.0
        %2624 = vmatpush2.msra.mxu0 0.0
        %2625 = vmatprep.subr.mxu0 0.0
        %2626 = vmatpush2.msra.mxu0 0.0
        %2627 = vmatprep.subr.mxu0 0.0
        %2628 = vmatpush2.msra.mxu0 0.0
        %2629 = vmatprep.subr.mxu0 0.0
        %2630 = vmatpush2.msra.mxu0 0.0
        %2631 = vmatprep.subr.mxu0 0.0
        %2632 = vmatpush2.msra.mxu0 0.0
        %2633 = vmatprep.subr.mxu0 0.0
        %2634 = vmatpush2.msra.mxu0 0.0
        %2635 = vmatprep.subr.mxu0 0.0
        %2636 = vmatpush2.msra.mxu0 0.0
        %2637 = vmatprep.subr.mxu0 0.0
        %2638 = vmatpush2.msra.mxu0 0.0
        %2639 = vmatprep.subr.mxu0 0.0
        %2640 = vmatpush2.msra.mxu0 0.0
        %2641 = vmatprep.subr.mxu0 0.0
        %2642 = vmatpush2.msra.mxu0 0.0
        %2643 = vmatprep.subr.mxu0 0.0
        %2644 = vmatpush2.msra.mxu0 0.0
        %2645 = vmatprep.subr.mxu0 0.0
        %2646 = vmatpush2.msra.mxu0 0.0
        %2647 = vmatprep.subr.mxu0 0.0
        %2648 = vmatpush2.msra.mxu0 0.0
        %2649 = vmatprep.subr.mxu0 0.0
        %2650 = vmatpush2.msra.mxu0 0.0
        %2651 = vmatprep.subr.mxu0 0.0
        %2652 = vmatpush2.msra.mxu0 0.0
        %2653 = vmatprep.mubr.f32.mxu0 0.0
        %2654 = vmatmul.mubr.f32.gmra.mxu0 %v2584
        %v2655 = vpop.f32.mrf.mxu0
        %v2656 = vadd.f32 %v2546, %v2655
        %v2657 = vpop.f32.mrf.mxu0
        %v2658 = vadd.f32 %v2550, %v2657
        %2659 = vmatprep.mubr.f32.mxu0 0.0
        %2660 = vmatmul.mubr.f32.gmra.mxu0 %v2587
        %v2661 = vpop.f32.mrf.mxu0
        %v2662 = vadd.f32 %v2546, %v2661
        %v2663 = vpop.f32.mrf.mxu0
        %v2664 = vadd.f32 %v2550, %v2663
        %2665 = vdwg.mxu0
        %2666 = vmatprep.subr.mxu0 0.0
        %2667 = vmatpush1.msra.mxu0 0.0
        %2668 = vmatprep.subr.mxu0 0.0
        %2669 = vmatpush1.msra.mxu0 0.0
        %2670 = vmatprep.subr.mxu0 0.0
        %2671 = vmatpush1.msra.mxu0 0.0
        %2672 = vmatprep.subr.mxu0 0.0
        %2673 = vmatpush1.msra.mxu0 0.0
        %2674 = vmatprep.subr.mxu0 0.0
        %2675 = vmatpush1.msra.mxu0 0.0
        %2676 = vmatprep.subr.mxu0 0.0
        %2677 = vmatpush1.msra.mxu0 0.0
        %2678 = vmatprep.subr.mxu0 0.0
        %2679 = vmatpush1.msra.mxu0 0.0
        %2680 = vmatprep.subr.mxu0 0.0
        %2681 = vmatpush1.msra.mxu0 0.0
        %2682 = vmatprep.subr.mxu0 0.0
        %2683 = vmatpush1.msra.mxu0 0.0
        %2684 = vmatprep.subr.mxu0 0.0
        %2685 = vmatpush1.msra.mxu0 0.0
        %2686 = vmatprep.subr.mxu0 0.0
        %2687 = vmatpush1.msra.mxu0 0.0
        %2688 = vmatprep.subr.mxu0 0.0
        %2689 = vmatpush1.msra.mxu0 0.0
        %2690 = vmatprep.subr.mxu0 %v986
        %2691 = vmatpush1.msra.mxu0 %v985
        %2692 = vmatprep.subr.mxu0 %v978
        %2693 = vmatpush1.msra.mxu0 %v977
        %2694 = vmatprep.subr.mxu0 %v970
        %2695 = vmatpush1.msra.mxu0 %v969
        %2696 = vmatprep.subr.mxu0 %v962
        %2697 = vmatpush1.msra.mxu0 %v961
        %2698 = vmatprep.subr.mxu0 0.0
        %2699 = vmatpush2.msra.mxu0 0.0
        %2700 = vmatprep.subr.mxu0 0.0
        %2701 = vmatpush2.msra.mxu0 0.0
        %2702 = vmatprep.subr.mxu0 0.0
        %2703 = vmatpush2.msra.mxu0 0.0
        %2704 = vmatprep.subr.mxu0 0.0
        %2705 = vmatpush2.msra.mxu0 0.0
        %2706 = vmatprep.subr.mxu0 0.0
        %2707 = vmatpush2.msra.mxu0 0.0
        %2708 = vmatprep.subr.mxu0 0.0
        %2709 = vmatpush2.msra.mxu0 0.0
        %2710 = vmatprep.subr.mxu0 0.0
        %2711 = vmatpush2.msra.mxu0 0.0
        %2712 = vmatprep.subr.mxu0 0.0
        %2713 = vmatpush2.msra.mxu0 0.0
        %2714 = vmatprep.subr.mxu0 0.0
        %2715 = vmatpush2.msra.mxu0 0.0
        %2716 = vmatprep.subr.mxu0 0.0
        %2717 = vmatpush2.msra.mxu0 0.0
        %2718 = vmatprep.subr.mxu0 0.0
        %2719 = vmatpush2.msra.mxu0 0.0
        %2720 = vmatprep.subr.mxu0 0.0
        %2721 = vmatpush2.msra.mxu0 0.0
        %2722 = vmatprep.subr.mxu0 0.0
        %2723 = vmatpush2.msra.mxu0 0.0
        %2724 = vmatprep.subr.mxu0 0.0
        %2725 = vmatpush2.msra.mxu0 0.0
        %2726 = vmatprep.subr.mxu0 0.0
        %2727 = vmatpush2.msra.mxu0 0.0
        %2728 = vmatprep.subr.mxu0 0.0
        %2729 = vmatpush2.msra.mxu0 0.0
        %2730 = vmatprep.mubr.f32.mxu0 0.0
        %2731 = vmatmul.mubr.f32.gmra.mxu0 %v2584
        %v2732 = vpop.f32.mrf.mxu0
        %v2733 = vadd.f32 %v2554, %v2732
        %v2734 = vpop.f32.mrf.mxu0
        %v2735 = vadd.f32 %v2558, %v2734
        %2736 = vmatprep.mubr.f32.mxu0 0.0
        %2737 = vmatmul.mubr.f32.gmra.mxu0 %v2587
        %v2738 = vpop.f32.mrf.mxu0
        %v2739 = vadd.f32 %v2554, %v2738
        %v2740 = vpop.f32.mrf.mxu0
        %v2741 = vadd.f32 %v2558, %v2740
        %2742 = vdwg.mxu0
        %2743 = vmatprep.subr.mxu0 0.0
        %2744 = vmatpush1.msra.mxu0 0.0
        %2745 = vmatprep.subr.mxu0 0.0
        %2746 = vmatpush1.msra.mxu0 0.0
        %2747 = vmatprep.subr.mxu0 0.0
        %2748 = vmatpush1.msra.mxu0 0.0
        %2749 = vmatprep.subr.mxu0 0.0
        %2750 = vmatpush1.msra.mxu0 0.0
        %2751 = vmatprep.subr.mxu0 0.0
        %2752 = vmatpush1.msra.mxu0 0.0
        %2753 = vmatprep.subr.mxu0 0.0
        %2754 = vmatpush1.msra.mxu0 0.0
        %2755 = vmatprep.subr.mxu0 0.0
        %2756 = vmatpush1.msra.mxu0 0.0
        %2757 = vmatprep.subr.mxu0 0.0
        %2758 = vmatpush1.msra.mxu0 0.0
        %2759 = vmatprep.subr.mxu0 0.0
        %2760 = vmatpush1.msra.mxu0 0.0
        %2761 = vmatprep.subr.mxu0 0.0
        %2762 = vmatpush1.msra.mxu0 0.0
        %2763 = vmatprep.subr.mxu0 0.0
        %2764 = vmatpush1.msra.mxu0 0.0
        %2765 = vmatprep.subr.mxu0 0.0
        %2766 = vmatpush1.msra.mxu0 0.0
        %2767 = vmatprep.subr.mxu0 %v988
        %2768 = vmatpush1.msra.mxu0 %v987
        %2769 = vmatprep.subr.mxu0 %v980
        %2770 = vmatpush1.msra.mxu0 %v979
        %2771 = vmatprep.subr.mxu0 %v972
        %2772 = vmatpush1.msra.mxu0 %v971
        %2773 = vmatprep.subr.mxu0 %v964
        %2774 = vmatpush1.msra.mxu0 %v963
        %2775 = vmatprep.subr.mxu0 0.0
        %2776 = vmatpush2.msra.mxu0 0.0
        %2777 = vmatprep.subr.mxu0 0.0
        %2778 = vmatpush2.msra.mxu0 0.0
        %2779 = vmatprep.subr.mxu0 0.0
        %2780 = vmatpush2.msra.mxu0 0.0
        %2781 = vmatprep.subr.mxu0 0.0
        %2782 = vmatpush2.msra.mxu0 0.0
        %2783 = vmatprep.subr.mxu0 0.0
        %2784 = vmatpush2.msra.mxu0 0.0
        %2785 = vmatprep.subr.mxu0 0.0
        %2786 = vmatpush2.msra.mxu0 0.0
        %2787 = vmatprep.subr.mxu0 0.0
        %2788 = vmatpush2.msra.mxu0 0.0
        %2789 = vmatprep.subr.mxu0 0.0
        %2790 = vmatpush2.msra.mxu0 0.0
        %2791 = vmatprep.subr.mxu0 0.0
        %2792 = vmatpush2.msra.mxu0 0.0
        %2793 = vmatprep.subr.mxu0 0.0
        %2794 = vmatpush2.msra.mxu0 0.0
        %2795 = vmatprep.subr.mxu0 0.0
        %2796 = vmatpush2.msra.mxu0 0.0
        %2797 = vmatprep.subr.mxu0 0.0
        %2798 = vmatpush2.msra.mxu0 0.0
        %2799 = vmatprep.subr.mxu0 0.0
        %2800 = vmatpush2.msra.mxu0 0.0
        %2801 = vmatprep.subr.mxu0 0.0
        %2802 = vmatpush2.msra.mxu0 0.0
        %2803 = vmatprep.subr.mxu0 0.0
        %2804 = vmatpush2.msra.mxu0 0.0
        %2805 = vmatprep.subr.mxu0 0.0
        %2806 = vmatpush2.msra.mxu0 0.0
        %2807 = vmatprep.mubr.f32.mxu0 0.0
        %2808 = vmatmul.mubr.f32.gmra.mxu0 %v2584
        %v2809 = vpop.f32.mrf.mxu0
        %v2810 = vadd.f32 %v2562, %v2809
        %v2811 = vpop.f32.mrf.mxu0
        %v2812 = vadd.f32 %v2566, %v2811
        %2813 = vmatprep.mubr.f32.mxu0 0.0
        %2814 = vmatmul.mubr.f32.gmra.mxu0 %v2587
        %v2815 = vpop.f32.mrf.mxu0
        %v2816 = vadd.f32 %v2562, %v2815
        %v2817 = vpop.f32.mrf.mxu0
        %v2818 = vadd.f32 %v2566, %v2817
        %2819 = vdwg.mxu0
        %2820 = vmatprep.subr.mxu0 0.0
        %2821 = vmatpush1.msra.mxu0 0.0
        %2822 = vmatprep.subr.mxu0 0.0
        %2823 = vmatpush1.msra.mxu0 0.0
        %2824 = vmatprep.subr.mxu0 0.0
        %2825 = vmatpush1.msra.mxu0 0.0
        %2826 = vmatprep.subr.mxu0 0.0
        %2827 = vmatpush1.msra.mxu0 0.0
        %2828 = vmatprep.subr.mxu0 0.0
        %2829 = vmatpush1.msra.mxu0 0.0
        %2830 = vmatprep.subr.mxu0 0.0
        %2831 = vmatpush1.msra.mxu0 0.0
        %2832 = vmatprep.subr.mxu0 0.0
        %2833 = vmatpush1.msra.mxu0 0.0
        %2834 = vmatprep.subr.mxu0 0.0
        %2835 = vmatpush1.msra.mxu0 0.0
        %2836 = vmatprep.subr.mxu0 0.0
        %2837 = vmatpush1.msra.mxu0 0.0
        %2838 = vmatprep.subr.mxu0 0.0
        %2839 = vmatpush1.msra.mxu0 0.0
        %2840 = vmatprep.subr.mxu0 0.0
        %2841 = vmatpush1.msra.mxu0 0.0
        %2842 = vmatprep.subr.mxu0 0.0
        %2843 = vmatpush1.msra.mxu0 0.0
        %2844 = vmatprep.subr.mxu0 %v990
        %2845 = vmatpush1.msra.mxu0 %v989
        %2846 = vmatprep.subr.mxu0 %v982
        %2847 = vmatpush1.msra.mxu0 %v981
        %2848 = vmatprep.subr.mxu0 %v974
        %2849 = vmatpush1.msra.mxu0 %v973
        %2850 = vmatprep.subr.mxu0 %v966
        %2851 = vmatpush1.msra.mxu0 %v965
        %2852 = vmatprep.subr.mxu0 0.0
        %2853 = vmatpush2.msra.mxu0 0.0
        %2854 = vmatprep.subr.mxu0 0.0
        %2855 = vmatpush2.msra.mxu0 0.0
        %2856 = vmatprep.subr.mxu0 0.0
        %2857 = vmatpush2.msra.mxu0 0.0
        %2858 = vmatprep.subr.mxu0 0.0
        %2859 = vmatpush2.msra.mxu0 0.0
        %2860 = vmatprep.subr.mxu0 0.0
        %2861 = vmatpush2.msra.mxu0 0.0
        %2862 = vmatprep.subr.mxu0 0.0
        %2863 = vmatpush2.msra.mxu0 0.0
        %2864 = vmatprep.subr.mxu0 0.0
        %2865 = vmatpush2.msra.mxu0 0.0
        %2866 = vmatprep.subr.mxu0 0.0
        %2867 = vmatpush2.msra.mxu0 0.0
        %2868 = vmatprep.subr.mxu0 0.0
        %2869 = vmatpush2.msra.mxu0 0.0
        %2870 = vmatprep.subr.mxu0 0.0
        %2871 = vmatpush2.msra.mxu0 0.0
        %2872 = vmatprep.subr.mxu0 0.0
        %2873 = vmatpush2.msra.mxu0 0.0
        %2874 = vmatprep.subr.mxu0 0.0
        %2875 = vmatpush2.msra.mxu0 0.0
        %2876 = vmatprep.subr.mxu0 0.0
        %2877 = vmatpush2.msra.mxu0 0.0
        %2878 = vmatprep.subr.mxu0 0.0
        %2879 = vmatpush2.msra.mxu0 0.0
        %2880 = vmatprep.subr.mxu0 0.0
        %2881 = vmatpush2.msra.mxu0 0.0
        %2882 = vmatprep.subr.mxu0 0.0
        %2883 = vmatpush2.msra.mxu0 0.0
        %2884 = vmatprep.mubr.f32.mxu0 0.0
        %2885 = vmatmul.mubr.f32.gmra.mxu0 %v2584
        %v2886 = vpop.f32.mrf.mxu0
        %v2887 = vadd.f32 %v2570, %v2886
        %v2888 = vpop.f32.mrf.mxu0
        %v2889 = vadd.f32 %v2574, %v2888
        %2890 = vmatprep.mubr.f32.mxu0 0.0
        %2891 = vmatmul.mubr.f32.gmra.mxu0 %v2587
        %v2892 = vpop.f32.mrf.mxu0
        %v2893 = vadd.f32 %v2570, %v2892
        %v2894 = vpop.f32.mrf.mxu0
        %v2895 = vadd.f32 %v2574, %v2894
        %2896 = vdwg.mxu0
        %2897 = vmatprep.subr.mxu0 0.0
        %2898 = vmatpush1.xpose.msra.mxu0 0.0
        %2899 = vmatprep.subr.mxu0 0.0
        %2900 = vmatpush1.xpose.msra.mxu0 0.0
        %2901 = vmatprep.subr.mxu0 0.0
        %2902 = vmatpush1.xpose.msra.mxu0 0.0
        %2903 = vmatprep.subr.mxu0 0.0
        %2904 = vmatpush1.xpose.msra.mxu0 0.0
        %2905 = vmatprep.subr.mxu0 0.0
        %2906 = vmatpush1.xpose.msra.mxu0 0.0
        %2907 = vmatprep.subr.mxu0 0.0
        %2908 = vmatpush1.xpose.msra.mxu0 0.0
        %2909 = vmatprep.subr.mxu0 0.0
        %2910 = vmatpush1.xpose.msra.mxu0 0.0
        %2911 = vmatprep.subr.mxu0 0.0
        %2912 = vmatpush1.xpose.msra.mxu0 0.0
        %2913 = vmatprep.subr.mxu0 0.0
        %2914 = vmatpush1.xpose.msra.mxu0 0.0
        %2915 = vmatprep.subr.mxu0 0.0
        %2916 = vmatpush1.xpose.msra.mxu0 0.0
        %2917 = vmatprep.subr.mxu0 0.0
        %2918 = vmatpush1.xpose.msra.mxu0 0.0
        %2919 = vmatprep.subr.mxu0 0.0
        %2920 = vmatpush1.xpose.msra.mxu0 0.0
        %2921 = vmatprep.subr.mxu0 0.0
        %2922 = vmatpush1.xpose.msra.mxu0 0.0
        %2923 = vmatprep.subr.mxu0 0.0
        %2924 = vmatpush1.xpose.msra.mxu0 0.0
        %2925 = vmatprep.subr.mxu0 0.0
        %2926 = vmatpush1.xpose.msra.mxu0 %v2662
        %2927 = vmatprep.subr.mxu0 0.0
        %2928 = vmatpush1.xpose.msra.mxu0 %v2656
        %2929 = vmatprep.subr.mxu0 0.0
        %2930 = vmatpush2.xpose.msra.mxu0 0.0
        %2931 = vmatprep.subr.mxu0 0.0
        %2932 = vmatpush2.xpose.msra.mxu0 0.0
        %2933 = vmatprep.subr.mxu0 0.0
        %2934 = vmatpush2.xpose.msra.mxu0 0.0
        %2935 = vmatprep.subr.mxu0 0.0
        %2936 = vmatpush2.xpose.msra.mxu0 0.0
        %2937 = vmatprep.subr.mxu0 0.0
        %2938 = vmatpush2.xpose.msra.mxu0 0.0
        %2939 = vmatprep.subr.mxu0 0.0
        %2940 = vmatpush2.xpose.msra.mxu0 0.0
        %2941 = vmatprep.subr.mxu0 0.0
        %2942 = vmatpush2.xpose.msra.mxu0 0.0
        %2943 = vmatprep.subr.mxu0 0.0
        %2944 = vmatpush2.xpose.msra.mxu0 0.0
        %2945 = vmatprep.subr.mxu0 0.0
        %2946 = vmatpush2.xpose.msra.mxu0 0.0
        %2947 = vmatprep.subr.mxu0 0.0
        %2948 = vmatpush2.xpose.msra.mxu0 0.0
        %2949 = vmatprep.subr.mxu0 0.0
        %2950 = vmatpush2.xpose.msra.mxu0 0.0
        %2951 = vmatprep.subr.mxu0 0.0
        %2952 = vmatpush2.xpose.msra.mxu0 0.0
        %2953 = vmatprep.subr.mxu0 0.0
        %2954 = vmatpush2.xpose.msra.mxu0 0.0
        %2955 = vmatprep.subr.mxu0 0.0
        %2956 = vmatpush2.xpose.msra.mxu0 0.0
        %2957 = vmatprep.subr.mxu0 0.0
        %2958 = vmatpush2.xpose.msra.mxu0 0.0
        %2959 = vmatprep.subr.mxu0 0.0
        %2960 = vmatpush2.xpose.msra.mxu0 0.0
        %2961 = vmatprep.mubr.f32.mxu0 0.0
        %2962 = vmatmul.mubr.f32.gmra.mxu0 %v2538
        %v2963 = vpop.f32.mrf.mxu0
        %v2964 = vadd.f32 %v1083, %v2963
        %v2965 = vpop.f32.mrf.mxu0
        %2966 = vdwg.mxu0
        %vm2967 = vcmask 130048
        %v2968 = vsel %vm2967, %v2964, -inf
        %2969 = vmax.xlane.f32.xlu0 %v2968
        %v2970 = vpop.xlane.xlu0 %2969
        %v2971 = vsub.f32 %v2964, %v2970
        %v2972 = vmul.f32 %v2971, 1.442695
        %v2973 = vpow.pop %v2972
        %v2974 = vsel %vm2967, %v2973, 0.0
        %2975 = vadd.xlane.f32.xlu0 %v2974
        %v2976 = vpop.xlane.xlu0 %2975
        %v2977 = vrcp.pop %v2976
        %v2978 = vmul.f32 %v2973, %v2977
        %v2980 = vsel %vm2967, %v2978, 0
        %2982 = vmatprep.subr.mxu0 0.0
        %2983 = vmatpush1.msra.mxu0 0.0
        %2984 = vmatprep.subr.mxu0 0.0
        %2985 = vmatpush1.msra.mxu0 0.0
        %2986 = vmatprep.subr.mxu0 0.0
        %2987 = vmatpush1.msra.mxu0 0.0
        %2988 = vmatprep.subr.mxu0 0.0
        %2989 = vmatpush1.msra.mxu0 0.0
        %2990 = vmatprep.subr.mxu0 0.0
        %2991 = vmatpush1.msra.mxu0 0.0
        %2992 = vmatprep.subr.mxu0 0.0
        %2993 = vmatpush1.msra.mxu0 0.0
        %2994 = vmatprep.subr.mxu0 0.0
        %2995 = vmatpush1.msra.mxu0 0.0
        %2996 = vmatprep.subr.mxu0 0.0
        %2997 = vmatpush1.msra.mxu0 0.0
        %2998 = vmatprep.subr.mxu0 0.0
        %2999 = vmatpush1.msra.mxu0 0.0
        %3000 = vmatprep.subr.mxu0 0.0
        %3001 = vmatpush1.msra.mxu0 0.0
        %3002 = vmatprep.subr.mxu0 0.0
        %3003 = vmatpush1.msra.mxu0 0.0
        %3004 = vmatprep.subr.mxu0 0.0
        %3005 = vmatpush1.msra.mxu0 0.0
        %3006 = vmatprep.subr.mxu0 0.0
        %3007 = vmatpush1.msra.mxu0 0.0
        %3008 = vmatprep.subr.mxu0 0.0
        %3009 = vmatpush1.msra.mxu0 0.0
        %3010 = vmatprep.subr.mxu0 0.0
        %3011 = vmatpush1.msra.mxu0 %v2816
        %3012 = vmatprep.subr.mxu0 0.0
        %3013 = vmatpush1.msra.mxu0 %v2810
        %3014 = vmatprep.subr.mxu0 0.0
        %3015 = vmatpush2.msra.mxu0 0.0
        %3016 = vmatprep.subr.mxu0 0.0
        %3017 = vmatpush2.msra.mxu0 0.0
        %3018 = vmatprep.subr.mxu0 0.0
        %3019 = vmatpush2.msra.mxu0 0.0
        %3020 = vmatprep.subr.mxu0 0.0
        %3021 = vmatpush2.msra.mxu0 0.0
        %3022 = vmatprep.subr.mxu0 0.0
        %3023 = vmatpush2.msra.mxu0 0.0
        %3024 = vmatprep.subr.mxu0 0.0
        %3025 = vmatpush2.msra.mxu0 0.0
        %3026 = vmatprep.subr.mxu0 0.0
        %3027 = vmatpush2.msra.mxu0 0.0
        %3028 = vmatprep.subr.mxu0 0.0
        %3029 = vmatpush2.msra.mxu0 0.0
        %3030 = vmatprep.subr.mxu0 0.0
        %3031 = vmatpush2.msra.mxu0 0.0
        %3032 = vmatprep.subr.mxu0 0.0
        %3033 = vmatpush2.msra.mxu0 0.0
        %3034 = vmatprep.subr.mxu0 0.0
        %3035 = vmatpush2.msra.mxu0 0.0
        %3036 = vmatprep.subr.mxu0 0.0
        %3037 = vmatpush2.msra.mxu0 0.0
        %3038 = vmatprep.subr.mxu0 0.0
        %3039 = vmatpush2.msra.mxu0 0.0
        %3040 = vmatprep.subr.mxu0 0.0
        %3041 = vmatpush2.msra.mxu0 0.0
        %3042 = vmatprep.subr.mxu0 0.0
        %3043 = vmatpush2.msra.mxu0 0.0
        %3044 = vmatprep.subr.mxu0 0.0
        %3045 = vmatpush2.msra.mxu0 0.0
        %3046 = vmatprep.mubr.f32.mxu0 0.0
        %3047 = vmatmul.mubr.f32.gmra.mxu0 %v2980
        %v3048 = vpop.f32.mrf.mxu0
        %v3049 = vadd.f32 0.0, %v3048
        %v3050 = vpop.f32.mrf.mxu0
        %3051 = vdwg.mxu0
        %3052 = vmatprep.subr.mxu0 0.0
        %3053 = vmatpush1.xpose.msra.mxu0 0.0
        %3054 = vmatprep.subr.mxu0 0.0
        %3055 = vmatpush1.xpose.msra.mxu0 0.0
        %3056 = vmatprep.subr.mxu0 0.0
        %3057 = vmatpush1.xpose.msra.mxu0 0.0
        %3058 = vmatprep.subr.mxu0 0.0
        %3059 = vmatpush1.xpose.msra.mxu0 0.0
        %3060 = vmatprep.subr.mxu0 0.0
        %3061 = vmatpush1.xpose.msra.mxu0 0.0
        %3062 = vmatprep.subr.mxu0 0.0
        %3063 = vmatpush1.xpose.msra.mxu0 0.0
        %3064 = vmatprep.subr.mxu0 0.0
        %3065 = vmatpush1.xpose.msra.mxu0 0.0
        %3066 = vmatprep.subr.mxu0 0.0
        %3067 = vmatpush1.xpose.msra.mxu0 0.0
        %3068 = vmatprep.subr.mxu0 0.0
        %3069 = vmatpush1.xpose.msra.mxu0 0.0
        %3070 = vmatprep.subr.mxu0 0.0
        %3071 = vmatpush1.xpose.msra.mxu0 0.0
        %3072 = vmatprep.subr.mxu0 0.0
        %3073 = vmatpush1.xpose.msra.mxu0 0.0
        %3074 = vmatprep.subr.mxu0 0.0
        %3075 = vmatpush1.xpose.msra.mxu0 0.0
        %3076 = vmatprep.subr.mxu0 0.0
        %3077 = vmatpush1.xpose.msra.mxu0 0.0
        %3078 = vmatprep.subr.mxu0 0.0
        %3079 = vmatpush1.xpose.msra.mxu0 0.0
        %3080 = vmatprep.subr.mxu0 0.0
        %3081 = vmatpush1.xpose.msra.mxu0 %v2664
        %3082 = vmatprep.subr.mxu0 0.0
        %3083 = vmatpush1.xpose.msra.mxu0 %v2658
        %3084 = vmatprep.subr.mxu0 0.0
        %3085 = vmatpush2.xpose.msra.mxu0 0.0
        %3086 = vmatprep.subr.mxu0 0.0
        %3087 = vmatpush2.xpose.msra.mxu0 0.0
        %3088 = vmatprep.subr.mxu0 0.0
        %3089 = vmatpush2.xpose.msra.mxu0 0.0
        %3090 = vmatprep.subr.mxu0 0.0
        %3091 = vmatpush2.xpose.msra.mxu0 0.0
        %3092 = vmatprep.subr.mxu0 0.0
        %3093 = vmatpush2.xpose.msra.mxu0 0.0
        %3094 = vmatprep.subr.mxu0 0.0
        %3095 = vmatpush2.xpose.msra.mxu0 0.0
        %3096 = vmatprep.subr.mxu0 0.0
        %3097 = vmatpush2.xpose.msra.mxu0 0.0
        %3098 = vmatprep.subr.mxu0 0.0
        %3099 = vmatpush2.xpose.msra.mxu0 0.0
        %3100 = vmatprep.subr.mxu0 0.0
        %3101 = vmatpush2.xpose.msra.mxu0 0.0
        %3102 = vmatprep.subr.mxu0 0.0
        %3103 = vmatpush2.xpose.msra.mxu0 0.0
        %3104 = vmatprep.subr.mxu0 0.0
        %3105 = vmatpush2.xpose.msra.mxu0 0.0
        %3106 = vmatprep.subr.mxu0 0.0
        %3107 = vmatpush2.xpose.msra.mxu0 0.0
        %3108 = vmatprep.subr.mxu0 0.0
        %3109 = vmatpush2.xpose.msra.mxu0 0.0
        %3110 = vmatprep.subr.mxu0 0.0
        %3111 = vmatpush2.xpose.msra.mxu0 0.0
        %3112 = vmatprep.subr.mxu0 0.0
        %3113 = vmatpush2.xpose.msra.mxu0 0.0
        %3114 = vmatprep.subr.mxu0 0.0
        %3115 = vmatpush2.xpose.msra.mxu0 0.0
        %3116 = vmatprep.mubr.f32.mxu0 0.0
        %3117 = vmatmul.mubr.f32.gmra.mxu0 %v2539
        %v3118 = vpop.f32.mrf.mxu0
        %v3119 = vadd.f32 %v1083, %v3118
        %v3120 = vpop.f32.mrf.mxu0
        %3121 = vdwg.mxu0
        %v3122 = vsel %vm2967, %v3119, -inf
        %3123 = vmax.xlane.f32.xlu0 %v3122
        %v3124 = vpop.xlane.xlu0 %3123
        %v3125 = vsub.f32 %v3119, %v3124
        %v3126 = vmul.f32 %v3125, 1.442695
        %v3127 = vpow.pop %v3126
        %v3128 = vsel %vm2967, %v3127, 0.0
        %3129 = vadd.xlane.f32.xlu0 %v3128
        %v3130 = vpop.xlane.xlu0 %3129
        %v3131 = vrcp.pop %v3130
        %v3132 = vmul.f32 %v3127, %v3131
        %v3134 = vsel %vm2967, %v3132, 0
        %3136 = vmatprep.subr.mxu0 0.0
        %3137 = vmatpush1.msra.mxu0 0.0
        %3138 = vmatprep.subr.mxu0 0.0
        %3139 = vmatpush1.msra.mxu0 0.0
        %3140 = vmatprep.subr.mxu0 0.0
        %3141 = vmatpush1.msra.mxu0 0.0
        %3142 = vmatprep.subr.mxu0 0.0
        %3143 = vmatpush1.msra.mxu0 0.0
        %3144 = vmatprep.subr.mxu0 0.0
        %3145 = vmatpush1.msra.mxu0 0.0
        %3146 = vmatprep.subr.mxu0 0.0
        %3147 = vmatpush1.msra.mxu0 0.0
        %3148 = vmatprep.subr.mxu0 0.0
        %3149 = vmatpush1.msra.mxu0 0.0
        %3150 = vmatprep.subr.mxu0 0.0
        %3151 = vmatpush1.msra.mxu0 0.0
        %3152 = vmatprep.subr.mxu0 0.0
        %3153 = vmatpush1.msra.mxu0 0.0
        %3154 = vmatprep.subr.mxu0 0.0
        %3155 = vmatpush1.msra.mxu0 0.0
        %3156 = vmatprep.subr.mxu0 0.0
        %3157 = vmatpush1.msra.mxu0 0.0
        %3158 = vmatprep.subr.mxu0 0.0
        %3159 = vmatpush1.msra.mxu0 0.0
        %3160 = vmatprep.subr.mxu0 0.0
        %3161 = vmatpush1.msra.mxu0 0.0
        %3162 = vmatprep.subr.mxu0 0.0
        %3163 = vmatpush1.msra.mxu0 0.0
        %3164 = vmatprep.subr.mxu0 0.0
        %3165 = vmatpush1.msra.mxu0 %v2818
        %3166 = vmatprep.subr.mxu0 0.0
        %3167 = vmatpush1.msra.mxu0 %v2812
        %3168 = vmatprep.subr.mxu0 0.0
        %3169 = vmatpush2.msra.mxu0 0.0
        %3170 = vmatprep.subr.mxu0 0.0
        %3171 = vmatpush2.msra.mxu0 0.0
        %3172 = vmatprep.subr.mxu0 0.0
        %3173 = vmatpush2.msra.mxu0 0.0
        %3174 = vmatprep.subr.mxu0 0.0
        %3175 = vmatpush2.msra.mxu0 0.0
        %3176 = vmatprep.subr.mxu0 0.0
        %3177 = vmatpush2.msra.mxu0 0.0
        %3178 = vmatprep.subr.mxu0 0.0
        %3179 = vmatpush2.msra.mxu0 0.0
        %3180 = vmatprep.subr.mxu0 0.0
        %3181 = vmatpush2.msra.mxu0 0.0
        %3182 = vmatprep.subr.mxu0 0.0
        %3183 = vmatpush2.msra.mxu0 0.0
        %3184 = vmatprep.subr.mxu0 0.0
        %3185 = vmatpush2.msra.mxu0 0.0
        %3186 = vmatprep.subr.mxu0 0.0
        %3187 = vmatpush2.msra.mxu0 0.0
        %3188 = vmatprep.subr.mxu0 0.0
        %3189 = vmatpush2.msra.mxu0 0.0
        %3190 = vmatprep.subr.mxu0 0.0
        %3191 = vmatpush2.msra.mxu0 0.0
        %3192 = vmatprep.subr.mxu0 0.0
        %3193 = vmatpush2.msra.mxu0 0.0
        %3194 = vmatprep.subr.mxu0 0.0
        %3195 = vmatpush2.msra.mxu0 0.0
        %3196 = vmatprep.subr.mxu0 0.0
        %3197 = vmatpush2.msra.mxu0 0.0
        %3198 = vmatprep.subr.mxu0 0.0
        %3199 = vmatpush2.msra.mxu0 0.0
        %3200 = vmatprep.mubr.f32.mxu0 0.0
        %3201 = vmatmul.mubr.f32.gmra.mxu0 %v3134
        %v3202 = vpop.f32.mrf.mxu0
        %v3203 = vadd.f32 0.0, %v3202
        %v3204 = vpop.f32.mrf.mxu0
        %3205 = vdwg.mxu0
        %3206 = vmatprep.subr.mxu0 0.0
        %3207 = vmatpush1.xpose.msra.mxu0 0.0
        %3208 = vmatprep.subr.mxu0 0.0
        %3209 = vmatpush1.xpose.msra.mxu0 0.0
        %3210 = vmatprep.subr.mxu0 0.0
        %3211 = vmatpush1.xpose.msra.mxu0 0.0
        %3212 = vmatprep.subr.mxu0 0.0
        %3213 = vmatpush1.xpose.msra.mxu0 0.0
        %3214 = vmatprep.subr.mxu0 0.0
        %3215 = vmatpush1.xpose.msra.mxu0 0.0
        %3216 = vmatprep.subr.mxu0 0.0
        %3217 = vmatpush1.xpose.msra.mxu0 0.0
        %3218 = vmatprep.subr.mxu0 0.0
        %3219 = vmatpush1.xpose.msra.mxu0 0.0
        %3220 = vmatprep.subr.mxu0 0.0
        %3221 = vmatpush1.xpose.msra.mxu0 0.0
        %3222 = vmatprep.subr.mxu0 0.0
        %3223 = vmatpush1.xpose.msra.mxu0 0.0
        %3224 = vmatprep.subr.mxu0 0.0
        %3225 = vmatpush1.xpose.msra.mxu0 0.0
        %3226 = vmatprep.subr.mxu0 0.0
        %3227 = vmatpush1.xpose.msra.mxu0 0.0
        %3228 = vmatprep.subr.mxu0 0.0
        %3229 = vmatpush1.xpose.msra.mxu0 0.0
        %3230 = vmatprep.subr.mxu0 0.0
        %3231 = vmatpush1.xpose.msra.mxu0 0.0
        %3232 = vmatprep.subr.mxu0 0.0
        %3233 = vmatpush1.xpose.msra.mxu0 0.0
        %3234 = vmatprep.subr.mxu0 0.0
        %3235 = vmatpush1.xpose.msra.mxu0 %v2739
        %3236 = vmatprep.subr.mxu0 0.0
        %3237 = vmatpush1.xpose.msra.mxu0 %v2733
        %3238 = vmatprep.subr.mxu0 0.0
        %3239 = vmatpush2.xpose.msra.mxu0 0.0
        %3240 = vmatprep.subr.mxu0 0.0
        %3241 = vmatpush2.xpose.msra.mxu0 0.0
        %3242 = vmatprep.subr.mxu0 0.0
        %3243 = vmatpush2.xpose.msra.mxu0 0.0
        %3244 = vmatprep.subr.mxu0 0.0
        %3245 = vmatpush2.xpose.msra.mxu0 0.0
        %3246 = vmatprep.subr.mxu0 0.0
        %3247 = vmatpush2.xpose.msra.mxu0 0.0
        %3248 = vmatprep.subr.mxu0 0.0
        %3249 = vmatpush2.xpose.msra.mxu0 0.0
        %3250 = vmatprep.subr.mxu0 0.0
        %3251 = vmatpush2.xpose.msra.mxu0 0.0
        %3252 = vmatprep.subr.mxu0 0.0
        %3253 = vmatpush2.xpose.msra.mxu0 0.0
        %3254 = vmatprep.subr.mxu0 0.0
        %3255 = vmatpush2.xpose.msra.mxu0 0.0
        %3256 = vmatprep.subr.mxu0 0.0
        %3257 = vmatpush2.xpose.msra.mxu0 0.0
        %3258 = vmatprep.subr.mxu0 0.0
        %3259 = vmatpush2.xpose.msra.mxu0 0.0
        %3260 = vmatprep.subr.mxu0 0.0
        %3261 = vmatpush2.xpose.msra.mxu0 0.0
        %3262 = vmatprep.subr.mxu0 0.0
        %3263 = vmatpush2.xpose.msra.mxu0 0.0
        %3264 = vmatprep.subr.mxu0 0.0
        %3265 = vmatpush2.xpose.msra.mxu0 0.0
        %3266 = vmatprep.subr.mxu0 0.0
        %3267 = vmatpush2.xpose.msra.mxu0 0.0
        %3268 = vmatprep.subr.mxu0 0.0
        %3269 = vmatpush2.xpose.msra.mxu0 0.0
        %3270 = vmatprep.mubr.f32.mxu0 0.0
        %3271 = vmatmul.mubr.f32.gmra.mxu0 %v2540
        %v3272 = vpop.f32.mrf.mxu0
        %v3273 = vadd.f32 %v1083, %v3272
        %v3274 = vpop.f32.mrf.mxu0
        %3275 = vdwg.mxu0
        %v3276 = vsel %vm2967, %v3273, -inf
        %3277 = vmax.xlane.f32.xlu0 %v3276
        %v3278 = vpop.xlane.xlu0 %3277
        %v3279 = vsub.f32 %v3273, %v3278
        %v3280 = vmul.f32 %v3279, 1.442695
        %v3281 = vpow.pop %v3280
        %v3282 = vsel %vm2967, %v3281, 0.0
        %3283 = vadd.xlane.f32.xlu0 %v3282
        %v3284 = vpop.xlane.xlu0 %3283
        %v3285 = vrcp.pop %v3284
        %v3286 = vmul.f32 %v3281, %v3285
        %v3288 = vsel %vm2967, %v3286, 0
        %3290 = vmatprep.subr.mxu0 0.0
        %3291 = vmatpush1.msra.mxu0 0.0
        %3292 = vmatprep.subr.mxu0 0.0
        %3293 = vmatpush1.msra.mxu0 0.0
        %3294 = vmatprep.subr.mxu0 0.0
        %3295 = vmatpush1.msra.mxu0 0.0
        %3296 = vmatprep.subr.mxu0 0.0
        %3297 = vmatpush1.msra.mxu0 0.0
        %3298 = vmatprep.subr.mxu0 0.0
        %3299 = vmatpush1.msra.mxu0 0.0
        %3300 = vmatprep.subr.mxu0 0.0
        %3301 = vmatpush1.msra.mxu0 0.0
        %3302 = vmatprep.subr.mxu0 0.0
        %3303 = vmatpush1.msra.mxu0 0.0
        %3304 = vmatprep.subr.mxu0 0.0
        %3305 = vmatpush1.msra.mxu0 0.0
        %3306 = vmatprep.subr.mxu0 0.0
        %3307 = vmatpush1.msra.mxu0 0.0
        %3308 = vmatprep.subr.mxu0 0.0
        %3309 = vmatpush1.msra.mxu0 0.0
        %3310 = vmatprep.subr.mxu0 0.0
        %3311 = vmatpush1.msra.mxu0 0.0
        %3312 = vmatprep.subr.mxu0 0.0
        %3313 = vmatpush1.msra.mxu0 0.0
        %3314 = vmatprep.subr.mxu0 0.0
        %3315 = vmatpush1.msra.mxu0 0.0
        %3316 = vmatprep.subr.mxu0 0.0
        %3317 = vmatpush1.msra.mxu0 0.0
        %3318 = vmatprep.subr.mxu0 0.0
        %3319 = vmatpush1.msra.mxu0 %v2893
        %3320 = vmatprep.subr.mxu0 0.0
        %3321 = vmatpush1.msra.mxu0 %v2887
        %3322 = vmatprep.subr.mxu0 0.0
        %3323 = vmatpush2.msra.mxu0 0.0
        %3324 = vmatprep.subr.mxu0 0.0
        %3325 = vmatpush2.msra.mxu0 0.0
        %3326 = vmatprep.subr.mxu0 0.0
        %3327 = vmatpush2.msra.mxu0 0.0
        %3328 = vmatprep.subr.mxu0 0.0
        %3329 = vmatpush2.msra.mxu0 0.0
        %3330 = vmatprep.subr.mxu0 0.0
        %3331 = vmatpush2.msra.mxu0 0.0
        %3332 = vmatprep.subr.mxu0 0.0
        %3333 = vmatpush2.msra.mxu0 0.0
        %3334 = vmatprep.subr.mxu0 0.0
        %3335 = vmatpush2.msra.mxu0 0.0
        %3336 = vmatprep.subr.mxu0 0.0
        %3337 = vmatpush2.msra.mxu0 0.0
        %3338 = vmatprep.subr.mxu0 0.0
        %3339 = vmatpush2.msra.mxu0 0.0
        %3340 = vmatprep.subr.mxu0 0.0
        %3341 = vmatpush2.msra.mxu0 0.0
        %3342 = vmatprep.subr.mxu0 0.0
        %3343 = vmatpush2.msra.mxu0 0.0
        %3344 = vmatprep.subr.mxu0 0.0
        %3345 = vmatpush2.msra.mxu0 0.0
        %3346 = vmatprep.subr.mxu0 0.0
        %3347 = vmatpush2.msra.mxu0 0.0
        %3348 = vmatprep.subr.mxu0 0.0
        %3349 = vmatpush2.msra.mxu0 0.0
        %3350 = vmatprep.subr.mxu0 0.0
        %3351 = vmatpush2.msra.mxu0 0.0
        %3352 = vmatprep.subr.mxu0 0.0
        %3353 = vmatpush2.msra.mxu0 0.0
        %3354 = vmatprep.mubr.f32.mxu0 0.0
        %3355 = vmatmul.mubr.f32.gmra.mxu0 %v3288
        %v3356 = vpop.f32.mrf.mxu0
        %v3357 = vadd.f32 0.0, %v3356
        %v3358 = vpop.f32.mrf.mxu0
        %3359 = vdwg.mxu0
        %3360 = vmatprep.subr.mxu0 0.0
        %3361 = vmatpush1.xpose.msra.mxu0 0.0
        %3362 = vmatprep.subr.mxu0 0.0
        %3363 = vmatpush1.xpose.msra.mxu0 0.0
        %3364 = vmatprep.subr.mxu0 0.0
        %3365 = vmatpush1.xpose.msra.mxu0 0.0
        %3366 = vmatprep.subr.mxu0 0.0
        %3367 = vmatpush1.xpose.msra.mxu0 0.0
        %3368 = vmatprep.subr.mxu0 0.0
        %3369 = vmatpush1.xpose.msra.mxu0 0.0
        %3370 = vmatprep.subr.mxu0 0.0
        %3371 = vmatpush1.xpose.msra.mxu0 0.0
        %3372 = vmatprep.subr.mxu0 0.0
        %3373 = vmatpush1.xpose.msra.mxu0 0.0
        %3374 = vmatprep.subr.mxu0 0.0
        %3375 = vmatpush1.xpose.msra.mxu0 0.0
        %3376 = vmatprep.subr.mxu0 0.0
        %3377 = vmatpush1.xpose.msra.mxu0 0.0
        %3378 = vmatprep.subr.mxu0 0.0
        %3379 = vmatpush1.xpose.msra.mxu0 0.0
        %3380 = vmatprep.subr.mxu0 0.0
        %3381 = vmatpush1.xpose.msra.mxu0 0.0
        %3382 = vmatprep.subr.mxu0 0.0
        %3383 = vmatpush1.xpose.msra.mxu0 0.0
        %3384 = vmatprep.subr.mxu0 0.0
        %3385 = vmatpush1.xpose.msra.mxu0 0.0
        %3386 = vmatprep.subr.mxu0 0.0
        %3387 = vmatpush1.xpose.msra.mxu0 0.0
        %3388 = vmatprep.subr.mxu0 0.0
        %3389 = vmatpush1.xpose.msra.mxu0 %v2741
        %3390 = vmatprep.subr.mxu0 0.0
        %3391 = vmatpush1.xpose.msra.mxu0 %v2735
        %3392 = vmatprep.subr.mxu0 0.0
        %3393 = vmatpush2.xpose.msra.mxu0 0.0
        %3394 = vmatprep.subr.mxu0 0.0
        %3395 = vmatpush2.xpose.msra.mxu0 0.0
        %3396 = vmatprep.subr.mxu0 0.0
        %3397 = vmatpush2.xpose.msra.mxu0 0.0
        %3398 = vmatprep.subr.mxu0 0.0
        %3399 = vmatpush2.xpose.msra.mxu0 0.0
        %3400 = vmatprep.subr.mxu0 0.0
        %3401 = vmatpush2.xpose.msra.mxu0 0.0
        %3402 = vmatprep.subr.mxu0 0.0
        %3403 = vmatpush2.xpose.msra.mxu0 0.0
        %3404 = vmatprep.subr.mxu0 0.0
        %3405 = vmatpush2.xpose.msra.mxu0 0.0
        %3406 = vmatprep.subr.mxu0 0.0
        %3407 = vmatpush2.xpose.msra.mxu0 0.0
        %3408 = vmatprep.subr.mxu0 0.0
        %3409 = vmatpush2.xpose.msra.mxu0 0.0
        %3410 = vmatprep.subr.mxu0 0.0
        %3411 = vmatpush2.xpose.msra.mxu0 0.0
        %3412 = vmatprep.subr.mxu0 0.0
        %3413 = vmatpush2.xpose.msra.mxu0 0.0
        %3414 = vmatprep.subr.mxu0 0.0
        %3415 = vmatpush2.xpose.msra.mxu0 0.0
        %3416 = vmatprep.subr.mxu0 0.0
        %3417 = vmatpush2.xpose.msra.mxu0 0.0
        %3418 = vmatprep.subr.mxu0 0.0
        %3419 = vmatpush2.xpose.msra.mxu0 0.0
        %3420 = vmatprep.subr.mxu0 0.0
        %3421 = vmatpush2.xpose.msra.mxu0 0.0
        %3422 = vmatprep.subr.mxu0 0.0
        %3423 = vmatpush2.xpose.msra.mxu0 0.0
        %3424 = vmatprep.mubr.f32.mxu0 0.0
        %3425 = vmatmul.mubr.f32.gmra.mxu0 %v2541
        %v3426 = vpop.f32.mrf.mxu0
        %v3427 = vadd.f32 %v1083, %v3426
        %v3428 = vpop.f32.mrf.mxu0
        %3429 = vdwg.mxu0
        %v3430 = vsel %vm2967, %v3427, -inf
        %3431 = vmax.xlane.f32.xlu0 %v3430
        %v3432 = vpop.xlane.xlu0 %3431
        %v3433 = vsub.f32 %v3427, %v3432
        %v3434 = vmul.f32 %v3433, 1.442695
        %v3435 = vpow.pop %v3434
        %v3436 = vsel %vm2967, %v3435, 0.0
        %3437 = vadd.xlane.f32.xlu0 %v3436
        %v3438 = vpop.xlane.xlu0 %3437
        %v3439 = vrcp.pop %v3438
        %v3440 = vmul.f32 %v3435, %v3439
        %v3442 = vsel %vm2967, %v3440, 0
        %3444 = vmatprep.subr.mxu0 0.0
        %3445 = vmatpush1.msra.mxu0 0.0
        %3446 = vmatprep.subr.mxu0 0.0
        %3447 = vmatpush1.msra.mxu0 0.0
        %3448 = vmatprep.subr.mxu0 0.0
        %3449 = vmatpush1.msra.mxu0 0.0
        %3450 = vmatprep.subr.mxu0 0.0
        %3451 = vmatpush1.msra.mxu0 0.0
        %3452 = vmatprep.subr.mxu0 0.0
        %3453 = vmatpush1.msra.mxu0 0.0
        %3454 = vmatprep.subr.mxu0 0.0
        %3455 = vmatpush1.msra.mxu0 0.0
        %3456 = vmatprep.subr.mxu0 0.0
        %3457 = vmatpush1.msra.mxu0 0.0
        %3458 = vmatprep.subr.mxu0 0.0
        %3459 = vmatpush1.msra.mxu0 0.0
        %3460 = vmatprep.subr.mxu0 0.0
        %3461 = vmatpush1.msra.mxu0 0.0
        %3462 = vmatprep.subr.mxu0 0.0
        %3463 = vmatpush1.msra.mxu0 0.0
        %3464 = vmatprep.subr.mxu0 0.0
        %3465 = vmatpush1.msra.mxu0 0.0
        %3466 = vmatprep.subr.mxu0 0.0
        %3467 = vmatpush1.msra.mxu0 0.0
        %3468 = vmatprep.subr.mxu0 0.0
        %3469 = vmatpush1.msra.mxu0 0.0
        %3470 = vmatprep.subr.mxu0 0.0
        %3471 = vmatpush1.msra.mxu0 0.0
        %3472 = vmatprep.subr.mxu0 0.0
        %3473 = vmatpush1.msra.mxu0 %v2895
        %3474 = vmatprep.subr.mxu0 0.0
        %3475 = vmatpush1.msra.mxu0 %v2889
        %3476 = vmatprep.subr.mxu0 0.0
        %3477 = vmatpush2.msra.mxu0 0.0
        %3478 = vmatprep.subr.mxu0 0.0
        %3479 = vmatpush2.msra.mxu0 0.0
        %3480 = vmatprep.subr.mxu0 0.0
        %3481 = vmatpush2.msra.mxu0 0.0
        %3482 = vmatprep.subr.mxu0 0.0
        %3483 = vmatpush2.msra.mxu0 0.0
        %3484 = vmatprep.subr.mxu0 0.0
        %3485 = vmatpush2.msra.mxu0 0.0
        %3486 = vmatprep.subr.mxu0 0.0
        %3487 = vmatpush2.msra.mxu0 0.0
        %3488 = vmatprep.subr.mxu0 0.0
        %3489 = vmatpush2.msra.mxu0 0.0
        %3490 = vmatprep.subr.mxu0 0.0
        %3491 = vmatpush2.msra.mxu0 0.0
        %3492 = vmatprep.subr.mxu0 0.0
        %3493 = vmatpush2.msra.mxu0 0.0
        %3494 = vmatprep.subr.mxu0 0.0
        %3495 = vmatpush2.msra.mxu0 0.0
        %3496 = vmatprep.subr.mxu0 0.0
        %3497 = vmatpush2.msra.mxu0 0.0
        %3498 = vmatprep.subr.mxu0 0.0
        %3499 = vmatpush2.msra.mxu0 0.0
        %3500 = vmatprep.subr.mxu0 0.0
        %3501 = vmatpush2.msra.mxu0 0.0
        %3502 = vmatprep.subr.mxu0 0.0
        %3503 = vmatpush2.msra.mxu0 0.0
        %3504 = vmatprep.subr.mxu0 0.0
        %3505 = vmatpush2.msra.mxu0 0.0
        %3506 = vmatprep.subr.mxu0 0.0
        %3507 = vmatpush2.msra.mxu0 0.0
        %3508 = vmatprep.mubr.f32.mxu0 0.0
        %3509 = vmatmul.mubr.f32.gmra.mxu0 %v3442
        %v3510 = vpop.f32.mrf.mxu0
        %v3511 = vadd.f32 0.0, %v3510
        %v3512 = vpop.f32.mrf.mxu0
        %3513 = vdwg.mxu0
        %v3515 = vlaneseq
        %v3516 = vshrl.u32 %v3515, 7
        %v3517 = vsub.s32 0, %v3516
        %v3518 = vrot.slane %v1056, %v3517
        %3520 = vmatprep.subr.mxu0 0.0
        %3521 = vmatpush1.msra.mxu0 %v1007
        %3522 = vmatprep.subr.mxu0 0.0
        %3523 = vmatpush1.msra.mxu0 %v1006
        %3524 = vmatprep.subr.mxu0 0.0
        %3525 = vmatpush1.msra.mxu0 %v1005
        %3526 = vmatprep.subr.mxu0 0.0
        %3527 = vmatpush1.msra.mxu0 %v1004
        %3528 = vmatprep.subr.mxu0 0.0
        %3529 = vmatpush1.msra.mxu0 %v1003
        %3530 = vmatprep.subr.mxu0 0.0
        %3531 = vmatpush1.msra.mxu0 %v1002
        %3532 = vmatprep.subr.mxu0 0.0
        %3533 = vmatpush1.msra.mxu0 %v1001
        %3534 = vmatprep.subr.mxu0 0.0
        %3535 = vmatpush1.msra.mxu0 %v1000
        %3536 = vmatprep.subr.mxu0 0.0
        %3537 = vmatpush1.msra.mxu0 %v999
        %3538 = vmatprep.subr.mxu0 0.0
        %3539 = vmatpush1.msra.mxu0 %v998
        %3540 = vmatprep.subr.mxu0 0.0
        %3541 = vmatpush1.msra.mxu0 %v997
        %3542 = vmatprep.subr.mxu0 0.0
        %3543 = vmatpush1.msra.mxu0 %v996
        %3544 = vmatprep.subr.mxu0 0.0
        %3545 = vmatpush1.msra.mxu0 %v995
        %3546 = vmatprep.subr.mxu0 0.0
        %3547 = vmatpush1.msra.mxu0 %v994
        %3548 = vmatprep.subr.mxu0 0.0
        %3549 = vmatpush1.msra.mxu0 %v993
        %3550 = vmatprep.subr.mxu0 0.0
        %3551 = vmatpush1.msra.mxu0 %v992
        %3552 = vmatprep.subr.mxu0 0.0
        %3553 = vmatpush2.msra.mxu0 %v1023
        %3554 = vmatprep.subr.mxu0 0.0
        %3555 = vmatpush2.msra.mxu0 %v1022
        %3556 = vmatprep.subr.mxu0 0.0
        %3557 = vmatpush2.msra.mxu0 %v1021
        %3558 = vmatprep.subr.mxu0 0.0
        %3559 = vmatpush2.msra.mxu0 %v1020
        %3560 = vmatprep.subr.mxu0 0.0
        %3561 = vmatpush2.msra.mxu0 %v1019
        %3562 = vmatprep.subr.mxu0 0.0
        %3563 = vmatpush2.msra.mxu0 %v1018
        %3564 = vmatprep.subr.mxu0 0.0
        %3565 = vmatpush2.msra.mxu0 %v1017
        %3566 = vmatprep.subr.mxu0 0.0
        %3567 = vmatpush2.msra.mxu0 %v1016
        %3568 = vmatprep.subr.mxu0 0.0
        %3569 = vmatpush2.msra.mxu0 %v1015
        %3570 = vmatprep.subr.mxu0 0.0
        %3571 = vmatpush2.msra.mxu0 %v1014
        %3572 = vmatprep.subr.mxu0 0.0
        %3573 = vmatpush2.msra.mxu0 %v1013
        %3574 = vmatprep.subr.mxu0 0.0
        %3575 = vmatpush2.msra.mxu0 %v1012
        %3576 = vmatprep.subr.mxu0 0.0
        %3577 = vmatpush2.msra.mxu0 %v1011
        %3578 = vmatprep.subr.mxu0 0.0
        %3579 = vmatpush2.msra.mxu0 %v1010
        %3580 = vmatprep.subr.mxu0 0.0
        %3581 = vmatpush2.msra.mxu0 %v1009
        %3582 = vmatprep.subr.mxu0 0.0
        %3583 = vmatpush2.msra.mxu0 %v1008
        %3584 = vmatprep.mubr.f32.mxu0 %v3203
        %3585 = vmatmul.mubr.f32.gmra.mxu0 %v3049
        %v3586 = vpop.f32.mrf.mxu0
        %v3587 = vadd.f32 %v3518, %v3586
        %v3588 = vpop.f32.mrf.mxu0
        %3589 = vdwg.mxu0
        %3590 = vmatprep.subr.mxu0 0.0
        %3591 = vmatpush1.msra.mxu0 %v1039
        %3592 = vmatprep.subr.mxu0 0.0
        %3593 = vmatpush1.msra.mxu0 %v1038
        %3594 = vmatprep.subr.mxu0 0.0
        %3595 = vmatpush1.msra.mxu0 %v1037
        %3596 = vmatprep.subr.mxu0 0.0
        %3597 = vmatpush1.msra.mxu0 %v1036
        %3598 = vmatprep.subr.mxu0 0.0
        %3599 = vmatpush1.msra.mxu0 %v1035
        %3600 = vmatprep.subr.mxu0 0.0
        %3601 = vmatpush1.msra.mxu0 %v1034
        %3602 = vmatprep.subr.mxu0 0.0
        %3603 = vmatpush1.msra.mxu0 %v1033
        %3604 = vmatprep.subr.mxu0 0.0
        %3605 = vmatpush1.msra.mxu0 %v1032
        %3606 = vmatprep.subr.mxu0 0.0
        %3607 = vmatpush1.msra.mxu0 %v1031
        %3608 = vmatprep.subr.mxu0 0.0
        %3609 = vmatpush1.msra.mxu0 %v1030
        %3610 = vmatprep.subr.mxu0 0.0
        %3611 = vmatpush1.msra.mxu0 %v1029
        %3612 = vmatprep.subr.mxu0 0.0
        %3613 = vmatpush1.msra.mxu0 %v1028
        %3614 = vmatprep.subr.mxu0 0.0
        %3615 = vmatpush1.msra.mxu0 %v1027
        %3616 = vmatprep.subr.mxu0 0.0
        %3617 = vmatpush1.msra.mxu0 %v1026
        %3618 = vmatprep.subr.mxu0 0.0
        %3619 = vmatpush1.msra.mxu0 %v1025
        %3620 = vmatprep.subr.mxu0 0.0
        %3621 = vmatpush1.msra.mxu0 %v1024
        %3622 = vmatprep.subr.mxu0 0.0
        %3623 = vmatpush2.msra.mxu0 %v1055
        %3624 = vmatprep.subr.mxu0 0.0
        %3625 = vmatpush2.msra.mxu0 %v1054
        %3626 = vmatprep.subr.mxu0 0.0
        %3627 = vmatpush2.msra.mxu0 %v1053
        %3628 = vmatprep.subr.mxu0 0.0
        %3629 = vmatpush2.msra.mxu0 %v1052
        %3630 = vmatprep.subr.mxu0 0.0
        %3631 = vmatpush2.msra.mxu0 %v1051
        %3632 = vmatprep.subr.mxu0 0.0
        %3633 = vmatpush2.msra.mxu0 %v1050
        %3634 = vmatprep.subr.mxu0 0.0
        %3635 = vmatpush2.msra.mxu0 %v1049
        %3636 = vmatprep.subr.mxu0 0.0
        %3637 = vmatpush2.msra.mxu0 %v1048
        %3638 = vmatprep.subr.mxu0 0.0
        %3639 = vmatpush2.msra.mxu0 %v1047
        %3640 = vmatprep.subr.mxu0 0.0
        %3641 = vmatpush2.msra.mxu0 %v1046
        %3642 = vmatprep.subr.mxu0 0.0
        %3643 = vmatpush2.msra.mxu0 %v1045
        %3644 = vmatprep.subr.mxu0 0.0
        %3645 = vmatpush2.msra.mxu0 %v1044
        %3646 = vmatprep.subr.mxu0 0.0
        %3647 = vmatpush2.msra.mxu0 %v1043
        %3648 = vmatprep.subr.mxu0 0.0
        %3649 = vmatpush2.msra.mxu0 %v1042
        %3650 = vmatprep.subr.mxu0 0.0
        %3651 = vmatpush2.msra.mxu0 %v1041
        %3652 = vmatprep.subr.mxu0 0.0
        %3653 = vmatpush2.msra.mxu0 %v1040
        %3654 = vmatprep.mubr.f32.mxu0 %v3511
        %3655 = vmatmul.mubr.f32.gmra.mxu0 %v3357
        %v3656 = vpop.f32.mrf.mxu0
        %v3657 = vadd.f32 %v3587, %v3656
        %v3658 = vpop.f32.mrf.mxu0
        %3659 = vdwg.mxu0
        %3660 = vrot.lane.b32.xlu0 %v3132, 16
        %v3661 = vpop.permute.xlu0 %3660
        %3663 = vrot.lane.b32.xlu0 %v3286, 32
        %v3664 = vpop.permute.xlu0 %3663
        %3666 = vrot.lane.b32.xlu0 %v3440, 48
        %v3667 = vpop.permute.xlu0 %3666
        %v3669 = vsel %vm2967, %v2978, %v3661
        %v3670 = vsel %vm1146, %v3669, %v3664
        %vm3671 = vcmask 392192
        %v3672 = vsel %vm3671, %v3670, %v3667
        %vm3673 = vcmask 523264
        %3674 = vst.msk [vmem:[%s824] sm:$0xff] %vm3673, %v3672
        %v3675 = vadd.f32 %v3657, %v2371
        %v3676 = vsel %vm1146, %v3675, 0.0
        %3677 = vadd.xlane.f32.xlu0 %v3676
        %v3678 = vpop.xlane.xlu0 %3677
        %v3679 = vmul.f32 %v3678, %v2347
        %v3680 = vsub.f32 %v3675, %v3679
        %v3681 = vmul.f32 %v3680, %v3680
        %v3682 = vsel %vm1146, %v3681, 0.0
        %3683 = vadd.xlane.f32.xlu0 %v3682
        %v3684 = vpop.xlane.xlu0 %3683
        %v3685 = vmul.f32 %v3684, %v2347
        %v3686 = vadd.f32 %v3685, 1e-05
        %v3687 = vrsqrt.pop %v3686
        %v3688 = vmul.f32 %v3680, %v3687
        %v3690 = vlaneseq
        %v3691 = vshrl.u32 %v3690, 7
        %v3692 = vsub.s32 0, %v3691
        %v3693 = vrot.slane %v1057, %v3692
        %v3695 = vmul.f32 %v3688, %v3693
        %v3697 = vlaneseq
        %v3698 = vshrl.u32 %v3697, 7
        %v3699 = vsub.s32 0, %v3698
        %v3700 = vrot.slane %v1058, %v3699
        %v3702 = vadd.f32 %v3695, %v3700
        %v3704 = vlaneseq
        %v3705 = vshrl.u32 %v3704, 7
        %v3706 = vsub.s32 0, %v3705
        %v3707 = vrot.slane %v1063, %v3706
        %v3710 = vsel %vm1146, %v3702, 0
        %3712 = vmatprep.subr.mxu0 0.0
        %3713 = vmatpush1.msra.mxu0 0.0
        %3714 = vmatprep.subr.mxu0 0.0
        %3715 = vmatpush1.msra.mxu0 0.0
        %3716 = vmatprep.subr.mxu0 0.0
        %3717 = vmatpush1.msra.mxu0 0.0
        %3718 = vmatprep.subr.mxu0 0.0
        %3719 = vmatpush1.msra.mxu0 0.0
        %3720 = vmatprep.subr.mxu0 0.0
        %3721 = vmatpush1.msra.mxu0 0.0
        %3722 = vmatprep.subr.mxu0 0.0
        %3723 = vmatpush1.msra.mxu0 0.0
        %3724 = vmatprep.subr.mxu0 0.0
        %3725 = vmatpush1.msra.mxu0 0.0
        %3726 = vmatprep.subr.mxu0 0.0
        %3727 = vmatpush1.msra.mxu0 0.0
        %3728 = vmatprep.subr.mxu0 0.0
        %3729 = vmatpush1.msra.mxu0 0.0
        %3730 = vmatprep.subr.mxu0 0.0
        %3731 = vmatpush1.msra.mxu0 0.0
        %3732 = vmatprep.subr.mxu0 0.0
        %3733 = vmatpush1.msra.mxu0 0.0
        %3734 = vmatprep.subr.mxu0 0.0
        %3735 = vmatpush1.msra.mxu0 0.0
        %3736 = vmatprep.subr.mxu0 0.0
        %3737 = vmatpush1.msra.mxu0 %v1062
        %3738 = vmatprep.subr.mxu0 0.0
        %3739 = vmatpush1.msra.mxu0 %v1061
        %3740 = vmatprep.subr.mxu0 0.0
        %3741 = vmatpush1.msra.mxu0 %v1060
        %3742 = vmatprep.subr.mxu0 0.0
        %3743 = vmatpush1.msra.mxu0 %v1059
        %3744 = vmatprep.subr.mxu0 0.0
        %3745 = vmatpush2.msra.mxu0 0.0
        %3746 = vmatprep.subr.mxu0 0.0
        %3747 = vmatpush2.msra.mxu0 0.0
        %3748 = vmatprep.subr.mxu0 0.0
        %3749 = vmatpush2.msra.mxu0 0.0
        %3750 = vmatprep.subr.mxu0 0.0
        %3751 = vmatpush2.msra.mxu0 0.0
        %3752 = vmatprep.subr.mxu0 0.0
        %3753 = vmatpush2.msra.mxu0 0.0
        %3754 = vmatprep.subr.mxu0 0.0
        %3755 = vmatpush2.msra.mxu0 0.0
        %3756 = vmatprep.subr.mxu0 0.0
        %3757 = vmatpush2.msra.mxu0 0.0
        %3758 = vmatprep.subr.mxu0 0.0
        %3759 = vmatpush2.msra.mxu0 0.0
        %3760 = vmatprep.subr.mxu0 0.0
        %3761 = vmatpush2.msra.mxu0 0.0
        %3762 = vmatprep.subr.mxu0 0.0
        %3763 = vmatpush2.msra.mxu0 0.0
        %3764 = vmatprep.subr.mxu0 0.0
        %3765 = vmatpush2.msra.mxu0 0.0
        %3766 = vmatprep.subr.mxu0 0.0
        %3767 = vmatpush2.msra.mxu0 0.0
        %3768 = vmatprep.subr.mxu0 0.0
        %3769 = vmatpush2.msra.mxu0 0.0
        %3770 = vmatprep.subr.mxu0 0.0
        %3771 = vmatpush2.msra.mxu0 0.0
        %3772 = vmatprep.subr.mxu0 0.0
        %3773 = vmatpush2.msra.mxu0 0.0
        %3774 = vmatprep.subr.mxu0 0.0
        %3775 = vmatpush2.msra.mxu0 0.0
        %3776 = vmatprep.mubr.f32.mxu0 0.0
        %3777 = vmatmul.mubr.f32.gmra.mxu0 %v3710
        %v3778 = vpop.f32.mrf.mxu0
        %v3779 = vadd.f32 %v3707, %v3778
        %v3780 = vpop.f32.mrf.mxu0
        %3781 = vdwg.mxu0
        %v3782 = vmax.f32 %v3779, 0.0
        %v3784 = vlaneseq
        %v3785 = vshrl.u32 %v3784, 7
        %v3786 = vsub.s32 0, %v3785
        %v3787 = vrot.slane %v1072, %v3786
        %v3790 = vsel %vm3673, %v3782, 0
        %3792 = vmatprep.subr.mxu0 0.0
        %3793 = vmatpush1.msra.mxu0 0.0
        %3794 = vmatprep.subr.mxu0 0.0
        %3795 = vmatpush1.msra.mxu0 0.0
        %3796 = vmatprep.subr.mxu0 0.0
        %3797 = vmatpush1.msra.mxu0 0.0
        %3798 = vmatprep.subr.mxu0 0.0
        %3799 = vmatpush1.msra.mxu0 0.0
        %3800 = vmatprep.subr.mxu0 0.0
        %3801 = vmatpush1.msra.mxu0 0.0
        %3802 = vmatprep.subr.mxu0 0.0
        %3803 = vmatpush1.msra.mxu0 0.0
        %3804 = vmatprep.subr.mxu0 0.0
        %3805 = vmatpush1.msra.mxu0 0.0
        %3806 = vmatprep.subr.mxu0 0.0
        %3807 = vmatpush1.msra.mxu0 0.0
        %3808 = vmatprep.subr.mxu0 0.0
        %3809 = vmatpush1.msra.mxu0 %v1071
        %3810 = vmatprep.subr.mxu0 0.0
        %3811 = vmatpush1.msra.mxu0 %v1070
        %3812 = vmatprep.subr.mxu0 0.0
        %3813 = vmatpush1.msra.mxu0 %v1069
        %3814 = vmatprep.subr.mxu0 0.0
        %3815 = vmatpush1.msra.mxu0 %v1068
        %3816 = vmatprep.subr.mxu0 0.0
        %3817 = vmatpush1.msra.mxu0 %v1067
        %3818 = vmatprep.subr.mxu0 0.0
        %3819 = vmatpush1.msra.mxu0 %v1066
        %3820 = vmatprep.subr.mxu0 0.0
        %3821 = vmatpush1.msra.mxu0 %v1065
        %3822 = vmatprep.subr.mxu0 0.0
        %3823 = vmatpush1.msra.mxu0 %v1064
        %3824 = vmatprep.subr.mxu0 0.0
        %3825 = vmatpush2.msra.mxu0 0.0
        %3826 = vmatprep.subr.mxu0 0.0
        %3827 = vmatpush2.msra.mxu0 0.0
        %3828 = vmatprep.subr.mxu0 0.0
        %3829 = vmatpush2.msra.mxu0 0.0
        %3830 = vmatprep.subr.mxu0 0.0
        %3831 = vmatpush2.msra.mxu0 0.0
        %3832 = vmatprep.subr.mxu0 0.0
        %3833 = vmatpush2.msra.mxu0 0.0
        %3834 = vmatprep.subr.mxu0 0.0
        %3835 = vmatpush2.msra.mxu0 0.0
        %3836 = vmatprep.subr.mxu0 0.0
        %3837 = vmatpush2.msra.mxu0 0.0
        %3838 = vmatprep.subr.mxu0 0.0
        %3839 = vmatpush2.msra.mxu0 0.0
        %3840 = vmatprep.subr.mxu0 0.0
        %3841 = vmatpush2.msra.mxu0 0.0
        %3842 = vmatprep.subr.mxu0 0.0
        %3843 = vmatpush2.msra.mxu0 0.0
        %3844 = vmatprep.subr.mxu0 0.0
        %3845 = vmatpush2.msra.mxu0 0.0
        %3846 = vmatprep.subr.mxu0 0.0
        %3847 = vmatpush2.msra.mxu0 0.0
        %3848 = vmatprep.subr.mxu0 0.0
        %3849 = vmatpush2.msra.mxu0 0.0
        %3850 = vmatprep.subr.mxu0 0.0
        %3851 = vmatpush2.msra.mxu0 0.0
        %3852 = vmatprep.subr.mxu0 0.0
        %3853 = vmatpush2.msra.mxu0 0.0
        %3854 = vmatprep.subr.mxu0 0.0
        %3855 = vmatpush2.msra.mxu0 0.0
        %3856 = vmatprep.mubr.f32.mxu0 0.0
        %3857 = vmatmul.mubr.f32.gmra.mxu0 %v3790
        %v3858 = vpop.f32.mrf.mxu0
        %v3859 = vadd.f32 %v3787, %v3858
        %v3860 = vpop.f32.mrf.mxu0
        %3861 = vdwg.mxu0
        %v3862 = vadd.f32 %v3859, %v3702
        %v3863 = vsel %vm1146, %v3862, 0.0
        %3864 = vadd.xlane.f32.xlu0 %v3863
        %v3865 = vpop.xlane.xlu0 %3864
        %v3866 = vmul.f32 %v3865, %v2347
        %v3867 = vsub.f32 %v3862, %v3866
        %v3868 = vmul.f32 %v3867, %v3867
        %v3869 = vsel %vm1146, %v3868, 0.0
        %3870 = vadd.xlane.f32.xlu0 %v3869
        %v3871 = vpop.xlane.xlu0 %3870
        %v3872 = vmul.f32 %v3871, %v2347
        %v3873 = vadd.f32 %v3872, 1e-05
        %v3874 = vrsqrt.pop %v3873
        %v3875 = vmul.f32 %v3867, %v3874
        %v3877 = vlaneseq
        %v3878 = vshrl.u32 %v3877, 7
        %v3879 = vsub.s32 0, %v3878
        %v3880 = vrot.slane %v1073, %v3879
        %v3882 = vmul.f32 %v3875, %v3880
        %v3884 = vlaneseq
        %v3885 = vshrl.u32 %v3884, 7
        %v3886 = vsub.s32 0, %v3885
        %v3887 = vrot.slane %v1074, %v3886
        %v3889 = vadd.f32 %v3882, %v3887
        %3890 = vst.msk [vmem:[%s797] sm:$0xff] %vm1146, %v3889
        %s3891 = sand.u32 %s572, 1
        %s3892 = scalar_lea.sflag [#allocation3], %s3891
        %s3893 = sand.u32 %s572, 1
        %s3894 = smul.addr %s3893, 8
        %s3895 = scalar_lea.vmem [#allocation2], %s3894
        %p3896 = scmp.lt.s32.totalorder %s40, 1
        %s3897 = scalar_select %p3896, %s40, 1
        %s3898 = smul.addr %s3897, 8
        %s3899 = scalar_lea.vmem %s25, %s3898
        // Predicated region
        $region117: #{decoder_block.1} parent=115 // pred_check
          %p3900 = pneg %p582
        $region118: #{decoder_block.1} parent=115 // pred_check_branch
          %3902 = sbr.rel (%p3900) target = $region120
        $region119: #{decoder_block.1} parent=115 // pred_region
          %s3904 = ssub.s32 128, 128
          %3905 = vsyncadd %s3892, %s3904
          %s3906 = smul.addr %s40, 128
          %s3907 = scalar_lea.hbm %s24, %s3906
          %s3909 = sshll.u32 %s3895, 4
          %s3910 = int_to_ptr.vmem [resolvable:$true] %s3909
          %3912 = dma.vmem_to_hbm [thread:$0]  %s3910, 128, %s3907, %s3892
        $region120: #{decoder_block.1} parent=115 // pred_fallthru
          _
        // Predicated region
        $region121: #{decoder_block.1} parent=115 // pred_check
          %p3913 = pneg %p608
        $region122: #{decoder_block.1} parent=115 // pred_check_branch
          %3915 = sbr.rel (%p3913) target = $region124
        $region123: #{decoder_block.1} parent=115 // pred_region
          _
        $region124: #{decoder_block.1} parent=115 // pred_fallthru
          _
      $region116: #{decoder_block.1} parent=5 // pred_fallthru
        _
      %p3916 = scmp.le.s32.totalorder 2, %s35
      // Predicated region
      $region125: #{decoder_block.1} parent=5 // pred_check
        %p3917 = pneg %p3916
      $region126: #{decoder_block.1} parent=5 // pred_check_branch
        %3919 = sbr.rel (%p3917) target = $region128
      $region127: #{decoder_block.1} parent=5 // pred_region
        %s3920 = ssub.s32 %s35, 2
        // Predicated region
        $region129: #{decoder_block.1} parent=127 // pred_check
          %p3921 = pneg %p588
        $region130: #{decoder_block.1} parent=127 // pred_check_branch
          %3923 = sbr.rel (%p3921) target = $region132
        $region131: #{decoder_block.1} parent=127 // pred_region
          %s3924 = sand.u32 %s573, 1
          %s3925 = scalar_lea.sflag [#allocation3], %s3924
          %s3926 = sand.u32 %s573, 1
          %s3927 = smul.addr %s3926, 8
          %s3928 = scalar_lea.vmem [#allocation2], %s3927
          %3929 = dma.done %s3925, 128
        $region132: #{decoder_block.1} parent=127 // pred_fallthru
          _
        // Predicated region
        $region133: #{decoder_block.1} parent=127 // pred_check
          %p3930 = pneg %p614
        $region134: #{decoder_block.1} parent=127 // pred_check_branch
          %3932 = sbr.rel (%p3930) target = $region136
        $region135: #{decoder_block.1} parent=127 // pred_region
          %p3933 = scmp.lt.s32.totalorder %s41, 1
          %s3934 = scalar_select %p3933, %s41, 1
          %s3935 = smul.addr %s3934, 8
          %s3936 = scalar_lea.vmem %s25, %s3935
        $region136: #{decoder_block.1} parent=127 // pred_fallthru
          _
      $region128: #{decoder_block.1} parent=5 // pred_fallthru
        _
    $region6: #{decoder_block.1} parent=1 // loop_footer
      %s39 = sadd.s32 1, %s35
    $region7: #{decoder_block.1} parent=1 // loop_footer_branch
      %34 = sbr.rel target = $region3
    $region8: #{decoder_block.1} parent=1 // loop_exit
      _
    %3937 = vsyncpa [#allocation3], 1
    %s3938 = scalar_lea.sflag [#allocation3], 1
    %3939 = vsyncpa %s3938, 1

</llo_original>
